<compile_context>
chip_gen: v6e
topology: v6e:2x2x1
jax: 0.10.0
libtpu: 0.0.40
codegen_flags: <defaults>
</compile_context>

<pallas_src>
import functools

import jax
import jax.numpy as jnp
from jax import lax
from jax.experimental import pallas as pl
from jax.experimental.pallas import tpu as pltpu


# --------------------------------------------------------------------------
# Kernel 1: global LayerNorm statistics.
# torch.nn.functional.layer_norm(x_reshape, x_reshape.shape) normalizes over ALL
# B*L*C elements (one mean / biased var, eps=1e-5, no affine).  x is tiny at these
# configurations, so the whole tensor stays resident and we use a stable two-pass
# variance in a single grid step.  Output is a (1, 2) [mean, rstd] tensor.
# --------------------------------------------------------------------------


def _ln_stats_kernel(x_ref, o_ref, *, n_total):
    x = x_ref[...]
    mean = jnp.sum(x, keepdims=True) * (1.0 / n_total)              # (1, 1)
    diff = x - mean
    var = jnp.sum(diff * diff, keepdims=True) * (1.0 / n_total)     # (1, 1)
    rstd = lax.rsqrt(var + 1e-5)
    o_ref[...] = jnp.concatenate([mean, rstd], axis=-1)             # (1, 2)


def layernorm_stats(x2d):
    M, N = x2d.shape
    kernel = functools.partial(_ln_stats_kernel, n_total=float(M * N))
    return pl.pallas_call(
        kernel,
        out_shape=jax.ShapeDtypeStruct((1, 2), jnp.float32),
        grid=(1,),
        in_specs=[pl.BlockSpec((M, N), lambda i: (0, 0))],
        out_specs=pl.BlockSpec((1, 2), lambda i: (0, 0)),
    )(x2d)


# --------------------------------------------------------------------------
# Kernel 2: fully fused LMHSA forward, one grid step per (batch, L-tile).
# --------------------------------------------------------------------------


def _lmhsa_fused_kernel(stats_ref, xseq_ref, xraw_ref, taps_ref,
                        wq_ref, bq_ref, wk_ref, bk_ref, wv_ref, bv_ref,
                        bias_ref, wo_ref, bo_ref, o_ref,
                        *, heads, d_k, d_v, scale):
    st = stats_ref[...]                    # (1, 2) [mean, rstd]
    mean = st[:, 0:1]
    rstd = st[:, 1:2]

    # ---- LayerNorm (global stats) fused into the Q projection ----
    xn = (xseq_ref[0] - mean) * rstd                                  # [tl, C] f32
    q = jnp.dot(xn.astype(jnp.bfloat16), wq_ref[...],
                preferred_element_type=jnp.float32) + bq_ref[...]     # [tl, h*dk]

    # ---- depthwise 3x3 strided conv + K/V projections, each as ONE matmul:
    #      taps [S, 9*C] @ (w_dw ⊙ W_proj) [9*C, h*d] ----
    taps = taps_ref[0].astype(jnp.bfloat16)                           # [S, 9*C]
    k = jnp.dot(taps, wk_ref[...],
                preferred_element_type=jnp.float32) + bk_ref[...]     # [S, h*dk]
    v = jnp.dot(taps, wv_ref[...],
                preferred_element_type=jnp.float32) + bv_ref[...]     # [S, h*dv]

    # ---- multi-head attention (static lane slices per head) ----
    outs = []
    for h in range(heads):
        qh = q[:, h * d_k:(h + 1) * d_k].astype(jnp.bfloat16)         # [tl, dk]
        kh = k[:, h * d_k:(h + 1) * d_k].astype(jnp.bfloat16)         # [S,  dk]
        vh = v[:, h * d_v:(h + 1) * d_v].astype(jnp.bfloat16)         # [S,  dv]
        s = lax.dot_general(qh, kh, (((1,), (1,)), ((), ())),
                            preferred_element_type=jnp.float32)       # [tl, S]
        s = s * scale + bias_ref[0, h]                                # + rel-pos B
        m = jnp.max(s, axis=-1, keepdims=True)
        p = jnp.exp(s - m)
        denom = jnp.sum(p, axis=-1, keepdims=True)
        attn = p * pl.reciprocal(denom, approx=True)
        outs.append(jnp.dot(attn.astype(jnp.bfloat16), vh,
                            preferred_element_type=jnp.float32))      # [tl, dv]
    attn_out = jnp.concatenate(outs, axis=-1)                         # [tl, h*dv]

    # ---- fc_o + residual (raw-view layout, matching torch's .view) ----
    y = jnp.dot(attn_out.astype(jnp.bfloat16), wo_ref[...],
                preferred_element_type=jnp.float32) + bo_ref[...]     # [tl, C]
    o_ref[0] = y + xraw_ref[0]


# ------------------------------ LMHSA forward --------------------------------


def lmhsa_forward(x, params, *, heads, d_k, d_v, stride):
    """x: [B, C, H, W] (NCHW, matching the PyTorch module)."""
    B, C, H, W = x.shape
    L = H * W
    Ho = (H - 1) // stride + 1
    Wo = (W - 1) // stride + 1
    S = Ho * Wo
    hdk = heads * d_k
    hdv = heads * d_v

    # ---------- tiny glue (views / pads / weight folding only) ----------
    x_seq = jnp.transpose(x.reshape(B, C, L), (0, 2, 1))      # [B, L, C] (permuted)
    x_raw = x.reshape(B, L, C)                                # raw view, for residual
    x_stats = x.reshape(B * C, L)                             # any flat view works (global LN)

    # Depthwise-conv tap gather: taps[b, oh*Wo+ow, (i*3+j)*C + c] = xpad[b, s*oh+i, s*ow+j, c]
    x_nhwc = jnp.transpose(x, (0, 2, 3, 1))
    xp = jnp.pad(x_nhwc, ((0, 0), (1, 1), (1, 1), (0, 0)))
    tap_list = []
    for i in range(3):
        for j in range(3):
            t = xp[:, i:i + stride * (Ho - 1) + 1:stride,
                      j:j + stride * (Wo - 1) + 1:stride, :]          # [B, Ho, Wo, C]
            tap_list.append(t.reshape(B, S, C))
    taps = jnp.concatenate(tap_list, axis=-1)                         # [B, S, 9*C]

    # Fold depthwise weights into the K/V projection weights (conv + linear = one matmul)
    wk_comb = (params["wk_dw"].reshape(9, C, 1)
               * params["wk_t"].reshape(1, C, hdk)).reshape(9 * C, hdk).astype(jnp.bfloat16)
    wv_comb = (params["wv_dw"].reshape(9, C, 1)
               * params["wv_t"].reshape(1, C, hdv)).reshape(9 * C, hdv).astype(jnp.bfloat16)
    bk_eff = params["bk_dw"] @ params["wk_t"] + params["bk"]          # (1, hdk)
    bv_eff = params["bv_dw"] @ params["wv_t"] + params["bv"]          # (1, hdv)
    wq_bf = params["wq_t"].astype(jnp.bfloat16)
    wo_bf = params["wo_t"].astype(jnp.bfloat16)

    # ---------- kernel 1: global LN stats ----------
    stats = layernorm_stats(x_stats)                                  # (1, 2)

    # ---------- kernel 2: fused LMHSA ----------
    tl = 128 if L % 128 == 0 else L     # extra parallel grid steps for v7x megacore
    scale = float(d_k) ** -0.5
    kernel = functools.partial(_lmhsa_fused_kernel, heads=heads, d_k=d_k,
                               d_v=d_v, scale=scale)

    out = pl.pallas_call(
        kernel,
        out_shape=jax.ShapeDtypeStruct((B, L, C), jnp.float32),
        grid=(B, L // tl),
        in_specs=[
            pl.BlockSpec((1, 2), lambda b, i: (0, 0)),                # LN stats (resident)
            pl.BlockSpec((1, tl, C), lambda b, i: (b, i, 0)),         # x, seq layout
            pl.BlockSpec((1, tl, C), lambda b, i: (b, i, 0)),         # x, raw view (residual)
            pl.BlockSpec((1, S, 9 * C), lambda b, i: (b, 0, 0)),      # conv tap slab
            pl.BlockSpec((C, hdk), lambda b, i: (0, 0)),              # Wq        (resident)
            pl.BlockSpec((1, hdk), lambda b, i: (0, 0)),              # bq
            pl.BlockSpec((9 * C, hdk), lambda b, i: (0, 0)),          # dw_k ⊙ Wk (resident)
            pl.BlockSpec((1, hdk), lambda b, i: (0, 0)),              # bk_eff
            pl.BlockSpec((9 * C, hdv), lambda b, i: (0, 0)),          # dw_v ⊙ Wv (resident)
            pl.BlockSpec((1, hdv), lambda b, i: (0, 0)),              # bv_eff
            pl.BlockSpec((1, heads, tl, S), lambda b, i: (0, 0, i, 0)),  # rel-pos bias B
            pl.BlockSpec((hdv, C), lambda b, i: (0, 0)),              # Wo        (resident)
            pl.BlockSpec((1, C), lambda b, i: (0, 0)),                # bo
        ],
        out_specs=pl.BlockSpec((1, tl, C), lambda b, i: (b, i, 0)),
        compiler_params=pltpu.CompilerParams(
            dimension_semantics=("parallel", "parallel")),
    )(stats, x_seq, x_raw, taps, wq_bf, params["bq"],
      wk_comb, bk_eff, wv_comb, bv_eff, params["B"], wo_bf, params["bo"])

    # torch: result.view(b, channels, h, w) is a RAW view of the [B, L, C] buffer
    return out.reshape(B, C, H, W)


# ----------------------------- parameter setup -------------------------------


def init_params(key, channels, heads, d_k, d_v, input_size, stride):
    ks = jax.random.split(key, 12)

    def lin(kw, kb, cin, cout):
        w_t = jax.random.normal(kw, (cin, cout), jnp.float32) * 0.05   # stored [Cin, Cout]
        b = jax.random.normal(kb, (1, cout), jnp.float32) * 0.05
        return w_t, b

    wq_t, bq = lin(ks[0], ks[1], channels, heads * d_k)
    wk_t, bk = lin(ks[2], ks[3], channels, heads * d_k)
    wv_t, bv = lin(ks[4], ks[5], channels, heads * d_v)
    wo_t, bo = lin(ks[6], ks[7], heads * d_v, channels)

    wk_dw = jax.random.normal(ks[8], (3, 3, channels), jnp.float32) * 0.1
    bk_dw = jax.random.normal(ks[9], (1, channels), jnp.float32) * 0.1
    wv_dw = jax.random.normal(ks[10], (3, 3, channels), jnp.float32) * 0.1
    bv_dw = jax.random.normal(ks[11], (1, channels), jnp.float32) * 0.1

    # nn.init.zeros_(self.B)
    Bparam = jnp.zeros(
        (1, heads, input_size ** 2, (input_size // stride) ** 2), jnp.float32)

    return dict(
        wq_t=wq_t, bq=bq, wk_t=wk_t, bk=bk, wv_t=wv_t, bv=bv, wo_t=wo_t, bo=bo,
        wk_dw=wk_dw, bk_dw=bk_dw, wv_dw=wv_dw, bv_dw=bv_dw, B=Bparam,
    )


# ---------------------------------- main -------------------------------------

if __name__ == "__main__":
    # small config consistent with the module (dropout is unused in forward)
    batch, channels, input_size = 2, 32, 16
    heads, d_k, d_v, stride = 2, 16, 16, 2

    key = jax.random.PRNGKey(0)
    kx, kp = jax.random.split(key)
    x = jax.random.normal(kx, (batch, channels, input_size, input_size), jnp.float32)
    params = init_params(kp, channels, heads, d_k, d_v, input_size, stride)

    fwd = jax.jit(
        functools.partial(lmhsa_forward, heads=heads, d_k=d_k, d_v=d_v, stride=stride)
    )
    out = fwd(x, params)
    jax.block_until_ready(out)
    assert out.shape == (batch, channels, input_size, input_size)
    assert out.dtype == jnp.float32
    print("KERNEL_OK")
</pallas_src>

<mosaic_0001>
module attributes {stable_mosaic.version = 11 : i64} {
  func.func @_ln_stats_kernel(%arg0: i32, %arg1: memref<64x256xf32, #tpu.memory_space<vmem>>, %arg2: memref<1x2xf32, #tpu.memory_space<vmem>>) attributes {dimension_semantics = [#tpu.dimension_semantics<arbitrary>], iteration_bounds = array<i64: 1>, scalar_prefetch = 0 : i64, scratch_operands = 0 : i64, tpu.core_type = #tpu.core_type<tc>, window_params = [{pipeline_mode = #tpu.pipeline_mode<synchronous>, transform_indices = @transform_0, window_bounds = array<i64: 64, 256>}, {pipeline_mode = #tpu.pipeline_mode<synchronous>, transform_indices = @transform_1, window_bounds = array<i64: 1, 2>}]} {
    %c0 = arith.constant 0 : index
    %c0_0 = arith.constant 0 : index
    %0 = vector.load %arg1[%c0, %c0_0] : memref<64x256xf32, #tpu.memory_space<vmem>>, vector<64x256xf32>
    %1 = vector.shape_cast %0 : vector<64x256xf32> to vector<1x64x256xf32>
    %cst = arith.constant dense<0.000000e+00> : vector<1xf32>
    %2 = vector.multi_reduction <add>, %1, %cst [1, 2] : vector<1x64x256xf32> to vector<1xf32>
    %3 = vector.shape_cast %2 : vector<1xf32> to vector<1x1x1xf32>
    %4 = vector.extract %3[0, 0, 0] : f32 from vector<1x1x1xf32>
    %5 = vector.broadcast %4 : f32 to vector<1x1xf32>
    %cst_1 = arith.constant 6.10351563E-5 : f32
    %6 = vector.broadcast %cst_1 : f32 to vector<1x1xf32>
    %7 = arith.mulf %5, %6 : vector<1x1xf32>
    %8 = vector.broadcast %7 : vector<1x1xf32> to vector<64x256xf32>
    %9 = arith.subf %0, %8 : vector<64x256xf32>
    %10 = arith.mulf %9, %9 : vector<64x256xf32>
    %11 = vector.shape_cast %10 : vector<64x256xf32> to vector<1x64x256xf32>
    %cst_2 = arith.constant dense<0.000000e+00> : vector<1xf32>
    %12 = vector.multi_reduction <add>, %11, %cst_2 [1, 2] : vector<1x64x256xf32> to vector<1xf32>
    %13 = vector.shape_cast %12 : vector<1xf32> to vector<1x1x1xf32>
    %14 = vector.extract %13[0, 0, 0] : f32 from vector<1x1x1xf32>
    %15 = vector.broadcast %14 : f32 to vector<1x1xf32>
    %cst_3 = arith.constant 6.10351563E-5 : f32
    %16 = vector.broadcast %cst_3 : f32 to vector<1x1xf32>
    %17 = arith.mulf %15, %16 : vector<1x1xf32>
    %cst_4 = arith.constant 9.99999974E-6 : f32
    %18 = vector.broadcast %cst_4 : f32 to vector<1x1xf32>
    %19 = arith.addf %17, %18 : vector<1x1xf32>
    %20 = math.rsqrt %19 : vector<1x1xf32>
    %21 = tpu.concatenate %7, %20 in 1 : vector<1x1xf32>, vector<1x1xf32> -> vector<1x2xf32>
    %c0_5 = arith.constant 0 : index
    %c0_6 = arith.constant 0 : index
    %22 = vector.load %arg2[%c0_5, %c0_6] : memref<1x2xf32, #tpu.memory_space<vmem>>, vector<1x2xf32>
    tpu.vector_store %arg2[%c0_5, %c0_6], %21 {strides = array<i32>} : memref<1x2xf32, #tpu.memory_space<vmem>>, vector<1x2xf32>,
    return
  }
  func.func @transform_0(%arg0: i32) -> (i32, i32) {
    %c0_i32 = arith.constant 0 : i32
    %c0_i32_0 = arith.constant 0 : i32
    %c0_i32_1 = arith.constant 0 : i32
    return %c0_i32, %c0_i32_0 : i32, i32
  }
  func.func @transform_1(%arg0: i32) -> (i32, i32) {
    %c0_i32 = arith.constant 0 : i32
    %c0_i32_0 = arith.constant 0 : i32
    %c0_i32_1 = arith.constant 0 : i32
    return %c0_i32, %c0_i32_0 : i32, i32
  }
}

module attributes {stable_mosaic.version = 11 : i64} {
  func.func @_lmhsa_fused_kernel(%arg0: i32, %arg1: i32, %arg2: memref<1x2xf32, #tpu.memory_space<vmem>>, %arg3: memref<1x128x32xf32, #tpu.memory_space<vmem>>, %arg4: memref<1x128x32xf32, #tpu.memory_space<vmem>>, %arg5: memref<1x64x288xf32, #tpu.memory_space<vmem>>, %arg6: memref<32x32xbf16, #tpu.memory_space<vmem>>, %arg7: memref<1x32xf32, #tpu.memory_space<vmem>>, %arg8: memref<288x32xbf16, #tpu.memory_space<vmem>>, %arg9: memref<1x32xf32, #tpu.memory_space<vmem>>, %arg10: memref<288x32xbf16, #tpu.memory_space<vmem>>, %arg11: memref<1x32xf32, #tpu.memory_space<vmem>>, %arg12: memref<1x2x128x64xf32, #tpu.memory_space<vmem>>, %arg13: memref<32x32xbf16, #tpu.memory_space<vmem>>, %arg14: memref<1x32xf32, #tpu.memory_space<vmem>>, %arg15: memref<1x128x32xf32, #tpu.memory_space<vmem>>) attributes {dimension_semantics = [#tpu.dimension_semantics<parallel>, #tpu.dimension_semantics<parallel>], iteration_bounds = array<i64: 2, 2>, scalar_prefetch = 0 : i64, scratch_operands = 0 : i64, tpu.core_type = #tpu.core_type<tc>, window_params = [{pipeline_mode = #tpu.pipeline_mode<synchronous>, transform_indices = @transform_0, window_bounds = array<i64: 1, 2>}, {transform_indices = @transform_1, window_bounds = array<i64: 1, 128, 32>}, {transform_indices = @transform_2, window_bounds = array<i64: 1, 128, 32>}, {transform_indices = @transform_3, window_bounds = array<i64: 1, 64, 288>}, {pipeline_mode = #tpu.pipeline_mode<synchronous>, transform_indices = @transform_4, window_bounds = array<i64: 32, 32>}, {pipeline_mode = #tpu.pipeline_mode<synchronous>, transform_indices = @transform_5, window_bounds = array<i64: 1, 32>}, {pipeline_mode = #tpu.pipeline_mode<synchronous>, transform_indices = @transform_6, window_bounds = array<i64: 288, 32>}, {pipeline_mode = #tpu.pipeline_mode<synchronous>, transform_indices = @transform_7, window_bounds = array<i64: 1, 32>}, {pipeline_mode = #tpu.pipeline_mode<synchronous>, transform_indices = @transform_8, window_bounds = array<i64: 288, 32>}, {pipeline_mode = #tpu.pipeline_mode<synchronous>, transform_indices = @transform_9, window_bounds = array<i64: 1, 32>}, {transform_indices = @transform_10, window_bounds = array<i64: 1, 2, 128, 64>}, {pipeline_mode = #tpu.pipeline_mode<synchronous>, transform_indices = @transform_11, window_bounds = array<i64: 32, 32>}, {pipeline_mode = #tpu.pipeline_mode<synchronous>, transform_indices = @transform_12, window_bounds = array<i64: 1, 32>}, {transform_indices = @transform_13, window_bounds = array<i64: 1, 128, 32>}]} {
    %c0 = arith.constant 0 : index
    %c0_0 = arith.constant 0 : index
    %0 = vector.load %arg2[%c0, %c0_0] : memref<1x2xf32, #tpu.memory_space<vmem>>, vector<1x2xf32>
    %1 = vector.extract_strided_slice %0 {offsets = [0, 0], sizes = [1, 1], strides = [1, 1]} : vector<1x2xf32> to vector<1x1xf32>
    %2 = vector.extract_strided_slice %0 {offsets = [0, 1], sizes = [1, 1], strides = [1, 1]} : vector<1x2xf32> to vector<1x1xf32>
    %c0_1 = arith.constant 0 : index
    %c0_2 = arith.constant 0 : index
    %c0_3 = arith.constant 0 : index
    %3 = vector.load %arg3[%c0_1, %c0_2, %c0_3] : memref<1x128x32xf32, #tpu.memory_space<vmem>>, vector<1x128x32xf32>
    %4 = vector.shape_cast %3 : vector<1x128x32xf32> to vector<128x32xf32>
    %5 = vector.broadcast %1 : vector<1x1xf32> to vector<128x32xf32>
    %6 = arith.subf %4, %5 : vector<128x32xf32>
    %7 = vector.broadcast %2 : vector<1x1xf32> to vector<128x32xf32>
    %8 = arith.mulf %6, %7 : vector<128x32xf32>
    %9 = arith.truncf %8 : vector<128x32xf32> to vector<128x32xbf16>
    %c0_4 = arith.constant 0 : index
    %c0_5 = arith.constant 0 : index
    %10 = vector.load %arg6[%c0_4, %c0_5] : memref<32x32xbf16, #tpu.memory_space<vmem>>, vector<32x32xbf16>
    %cst = arith.constant dense<0.000000e+00> : vector<128x32xf32>
    %11 = tpu.matmul %9, %10, %cst {dimension_numbers = #tpu.dot_dimension_numbers<[1], [0], [0], [1], [0, 0, 1, 1], [], []>} : vector<128x32xbf16>, vector<32x32xbf16>, vector<128x32xf32> -> vector<128x32xf32>
    %c0_6 = arith.constant 0 : index
    %c0_7 = arith.constant 0 : index
    %12 = vector.load %arg7[%c0_6, %c0_7] : memref<1x32xf32, #tpu.memory_space<vmem>>, vector<1x32xf32>
    %13 = vector.broadcast %12 : vector<1x32xf32> to vector<128x32xf32>
    %14 = arith.addf %11, %13 : vector<128x32xf32>
    %c0_8 = arith.constant 0 : index
    %c0_9 = arith.constant 0 : index
    %c0_10 = arith.constant 0 : index
    %15 = vector.load %arg5[%c0_8, %c0_9, %c0_10] : memref<1x64x288xf32, #tpu.memory_space<vmem>>, vector<1x64x288xf32>
    %16 = vector.shape_cast %15 : vector<1x64x288xf32> to vector<64x288xf32>
    %17 = arith.truncf %16 : vector<64x288xf32> to vector<64x288xbf16>
    %c0_11 = arith.constant 0 : index
    %c0_12 = arith.constant 0 : index
    %18 = vector.load %arg8[%c0_11, %c0_12] : memref<288x32xbf16, #tpu.memory_space<vmem>>, vector<288x32xbf16>
    %cst_13 = arith.constant dense<0.000000e+00> : vector<64x32xf32>
    %19 = tpu.matmul %17, %18, %cst_13 {dimension_numbers = #tpu.dot_dimension_numbers<[1], [0], [0], [1], [0, 0, 1, 1], [], []>} : vector<64x288xbf16>, vector<288x32xbf16>, vector<64x32xf32> -> vector<64x32xf32>
    %c0_14 = arith.constant 0 : index
    %c0_15 = arith.constant 0 : index
    %20 = vector.load %arg9[%c0_14, %c0_15] : memref<1x32xf32, #tpu.memory_space<vmem>>, vector<1x32xf32>
    %21 = vector.broadcast %20 : vector<1x32xf32> to vector<64x32xf32>
    %22 = arith.addf %19, %21 : vector<64x32xf32>
    %c0_16 = arith.constant 0 : index
    %c0_17 = arith.constant 0 : index
    %23 = vector.load %arg10[%c0_16, %c0_17] : memref<288x32xbf16, #tpu.memory_space<vmem>>, vector<288x32xbf16>
    %cst_18 = arith.constant dense<0.000000e+00> : vector<64x32xf32>
    %24 = tpu.matmul %17, %23, %cst_18 {dimension_numbers = #tpu.dot_dimension_numbers<[1], [0], [0], [1], [0, 0, 1, 1], [], []>} : vector<64x288xbf16>, vector<288x32xbf16>, vector<64x32xf32> -> vector<64x32xf32>
    %c0_19 = arith.constant 0 : index
    %c0_20 = arith.constant 0 : index
    %25 = vector.load %arg11[%c0_19, %c0_20] : memref<1x32xf32, #tpu.memory_space<vmem>>, vector<1x32xf32>
    %26 = vector.broadcast %25 : vector<1x32xf32> to vector<64x32xf32>
    %27 = arith.addf %24, %26 : vector<64x32xf32>
    %28 = vector.extract_strided_slice %14 {offsets = [0, 0], sizes = [128, 16], strides = [1, 1]} : vector<128x32xf32> to vector<128x16xf32>
    %29 = arith.truncf %28 : vector<128x16xf32> to vector<128x16xbf16>
    %30 = vector.extract_strided_slice %22 {offsets = [0, 0], sizes = [64, 16], strides = [1, 1]} : vector<64x32xf32> to vector<64x16xf32>
    %31 = arith.truncf %30 : vector<64x16xf32> to vector<64x16xbf16>
    %32 = vector.extract_strided_slice %27 {offsets = [0, 0], sizes = [64, 16], strides = [1, 1]} : vector<64x32xf32> to vector<64x16xf32>
    %33 = arith.truncf %32 : vector<64x16xf32> to vector<64x16xbf16>
    %cst_21 = arith.constant dense<0.000000e+00> : vector<128x64xf32>
    %34 = tpu.matmul %29, %31, %cst_21 {dimension_numbers = #tpu.dot_dimension_numbers<[1], [1], [0], [0], [0, 0, 1, 0], [], []>} : vector<128x16xbf16>, vector<64x16xbf16>, vector<128x64xf32> -> vector<128x64xf32>
    %cst_22 = arith.constant 2.500000e-01 : f32
    %35 = vector.broadcast %cst_22 : f32 to vector<128x64xf32>
    %36 = arith.mulf %34, %35 : vector<128x64xf32>
    %c0_23 = arith.constant 0 : index
    %c0_24 = arith.constant 0 : index
    %c0_25 = arith.constant 0 : index
    %c0_26 = arith.constant 0 : index
    %37 = vector.load %arg12[%c0_23, %c0_24, %c0_25, %c0_26] : memref<1x2x128x64xf32, #tpu.memory_space<vmem>>, vector<1x1x128x64xf32>
    %38 = vector.shape_cast %37 : vector<1x1x128x64xf32> to vector<128x64xf32>
    %39 = arith.addf %36, %38 : vector<128x64xf32>
    %cst_27 = arith.constant dense<0xFF800000> : vector<128xf32>
    %40 = vector.multi_reduction <maximumf>, %39, %cst_27 [1] : vector<128x64xf32> to vector<128xf32>
    %41 = vector.shape_cast %40 : vector<128xf32> to vector<128x1xf32>
    %42 = vector.broadcast %41 : vector<128x1xf32> to vector<128x64xf32>
    %43 = arith.subf %39, %42 : vector<128x64xf32>
    %44 = math.exp %43 : vector<128x64xf32>
    %cst_28 = arith.constant dense<0.000000e+00> : vector<128xf32>
    %45 = vector.multi_reduction <add>, %44, %cst_28 [1] : vector<128x64xf32> to vector<128xf32>
    %46 = vector.shape_cast %45 : vector<128xf32> to vector<128x1xf32>
    %47 = tpu.reciprocal %46 {approx = true} : vector<128x1xf32> -> vector<128x1xf32>
    %48 = vector.broadcast %47 : vector<128x1xf32> to vector<128x64xf32>
    %49 = arith.mulf %44, %48 : vector<128x64xf32>
    %50 = arith.truncf %49 : vector<128x64xf32> to vector<128x64xbf16>
    %cst_29 = arith.constant dense<0.000000e+00> : vector<128x16xf32>
    %51 = tpu.matmul %50, %33, %cst_29 {dimension_numbers = #tpu.dot_dimension_numbers<[1], [0], [0], [1], [0, 0, 1, 1], [], []>} : vector<128x64xbf16>, vector<64x16xbf16>, vector<128x16xf32> -> vector<128x16xf32>
    %52 = vector.extract_strided_slice %14 {offsets = [0, 16], sizes = [128, 16], strides = [1, 1]} : vector<128x32xf32> to vector<128x16xf32>
    %53 = arith.truncf %52 : vector<128x16xf32> to vector<128x16xbf16>
    %54 = vector.extract_strided_slice %22 {offsets = [0, 16], sizes = [64, 16], strides = [1, 1]} : vector<64x32xf32> to vector<64x16xf32>
    %55 = arith.truncf %54 : vector<64x16xf32> to vector<64x16xbf16>
    %56 = vector.extract_strided_slice %27 {offsets = [0, 16], sizes = [64, 16], strides = [1, 1]} : vector<64x32xf32> to vector<64x16xf32>
    %57 = arith.truncf %56 : vector<64x16xf32> to vector<64x16xbf16>
    %cst_30 = arith.constant dense<0.000000e+00> : vector<128x64xf32>
    %58 = tpu.matmul %53, %55, %cst_30 {dimension_numbers = #tpu.dot_dimension_numbers<[1], [1], [0], [0], [0, 0, 1, 0], [], []>} : vector<128x16xbf16>, vector<64x16xbf16>, vector<128x64xf32> -> vector<128x64xf32>
    %cst_31 = arith.constant 2.500000e-01 : f32
    %59 = vector.broadcast %cst_31 : f32 to vector<128x64xf32>
    %60 = arith.mulf %58, %59 : vector<128x64xf32>
    %c0_32 = arith.constant 0 : index
    %c1 = arith.constant 1 : index
    %c0_33 = arith.constant 0 : index
    %c0_34 = arith.constant 0 : index
    %61 = vector.load %arg12[%c0_32, %c1, %c0_33, %c0_34] : memref<1x2x128x64xf32, #tpu.memory_space<vmem>>, vector<1x1x128x64xf32>
    %62 = vector.shape_cast %61 : vector<1x1x128x64xf32> to vector<128x64xf32>
    %63 = arith.addf %60, %62 : vector<128x64xf32>
    %cst_35 = arith.constant dense<0xFF800000> : vector<128xf32>
    %64 = vector.multi_reduction <maximumf>, %63, %cst_35 [1] : vector<128x64xf32> to vector<128xf32>
    %65 = vector.shape_cast %64 : vector<128xf32> to vector<128x1xf32>
    %66 = vector.broadcast %65 : vector<128x1xf32> to vector<128x64xf32>
    %67 = arith.subf %63, %66 : vector<128x64xf32>
    %68 = math.exp %67 : vector<128x64xf32>
    %cst_36 = arith.constant dense<0.000000e+00> : vector<128xf32>
    %69 = vector.multi_reduction <add>, %68, %cst_36 [1] : vector<128x64xf32> to vector<128xf32>
    %70 = vector.shape_cast %69 : vector<128xf32> to vector<128x1xf32>
    %71 = tpu.reciprocal %70 {approx = true} : vector<128x1xf32> -> vector<128x1xf32>
    %72 = vector.broadcast %71 : vector<128x1xf32> to vector<128x64xf32>
    %73 = arith.mulf %68, %72 : vector<128x64xf32>
    %74 = arith.truncf %73 : vector<128x64xf32> to vector<128x64xbf16>
    %cst_37 = arith.constant dense<0.000000e+00> : vector<128x16xf32>
    %75 = tpu.matmul %74, %57, %cst_37 {dimension_numbers = #tpu.dot_dimension_numbers<[1], [0], [0], [1], [0, 0, 1, 1], [], []>} : vector<128x64xbf16>, vector<64x16xbf16>, vector<128x16xf32> -> vector<128x16xf32>
    %76 = tpu.concatenate %51, %75 in 1 : vector<128x16xf32>, vector<128x16xf32> -> vector<128x32xf32>
    %77 = arith.truncf %76 : vector<128x32xf32> to vector<128x32xbf16>
    %c0_38 = arith.constant 0 : index
    %c0_39 = arith.constant 0 : index
    %78 = vector.load %arg13[%c0_38, %c0_39] : memref<32x32xbf16, #tpu.memory_space<vmem>>, vector<32x32xbf16>
    %cst_40 = arith.constant dense<0.000000e+00> : vector<128x32xf32>
    %79 = tpu.matmul %77, %78, %cst_40 {dimension_numbers = #tpu.dot_dimension_numbers<[1], [0], [0], [1], [0, 0, 1, 1], [], []>} : vector<128x32xbf16>, vector<32x32xbf16>, vector<128x32xf32> -> vector<128x32xf32>
    %c0_41 = arith.constant 0 : index
    %c0_42 = arith.constant 0 : index
    %80 = vector.load %arg14[%c0_41, %c0_42] : memref<1x32xf32, #tpu.memory_space<vmem>>, vector<1x32xf32>
    %81 = vector.broadcast %80 : vector<1x32xf32> to vector<128x32xf32>
    %82 = arith.addf %79, %81 : vector<128x32xf32>
    %c0_43 = arith.constant 0 : index
    %c0_44 = arith.constant 0 : index
    %c0_45 = arith.constant 0 : index
    %83 = vector.load %arg4[%c0_43, %c0_44, %c0_45] : memref<1x128x32xf32, #tpu.memory_space<vmem>>, vector<1x128x32xf32>
    %84 = vector.shape_cast %83 : vector<1x128x32xf32> to vector<128x32xf32>
    %85 = arith.addf %82, %84 : vector<128x32xf32>
    %c0_46 = arith.constant 0 : index
    %c0_47 = arith.constant 0 : index
    %c0_48 = arith.constant 0 : index
    %86 = vector.load %arg15[%c0_46, %c0_47, %c0_48] : memref<1x128x32xf32, #tpu.memory_space<vmem>>, vector<1x128x32xf32>
    %87 = vector.shape_cast %86 : vector<1x128x32xf32> to vector<128x32xf32>
    %88 = vector.shape_cast %85 : vector<128x32xf32> to vector<1x128x32xf32>
    tpu.vector_store %arg15[%c0_46, %c0_47, %c0_48], %88 {strides = array<i32>} : memref<1x128x32xf32, #tpu.memory_space<vmem>>, vector<1x128x32xf32>,
    return
  }
  func.func @transform_0(%arg0: i32, %arg1: i32) -> (i32, i32) {
    %c0_i32 = arith.constant 0 : i32
    %c0_i32_0 = arith.constant 0 : i32
    %c0_i32_1 = arith.constant 0 : i32
    return %c0_i32, %c0_i32_0 : i32, i32
  }
  func.func @transform_1(%arg0: i32, %arg1: i32) -> (i32, i32, i32) {
    %c0_i32 = arith.constant 0 : i32
    %c0_i32_0 = arith.constant 0 : i32
    return %arg0, %arg1, %c0_i32 : i32, i32, i32
  }
  func.func @transform_2(%arg0: i32, %arg1: i32) -> (i32, i32, i32) {
    %c0_i32 = arith.constant 0 : i32
    %c0_i32_0 = arith.constant 0 : i32
    return %arg0, %arg1, %c0_i32 : i32, i32, i32
  }
  func.func @transform_3(%arg0: i32, %arg1: i32) -> (i32, i32, i32) {
    %c0_i32 = arith.constant 0 : i32
    %c0_i32_0 = arith.constant 0 : i32
    %c0_i32_1 = arith.constant 0 : i32
    return %arg0, %c0_i32, %c0_i32_0 : i32, i32, i32
  }
  func.func @transform_4(%arg0: i32, %arg1: i32) -> (i32, i32) {
    %c0_i32 = arith.constant 0 : i32
    %c0_i32_0 = arith.constant 0 : i32
    %c0_i32_1 = arith.constant 0 : i32
    return %c0_i32, %c0_i32_0 : i32, i32
  }
  func.func @transform_5(%arg0: i32, %arg1: i32) -> (i32, i32) {
    %c0_i32 = arith.constant 0 : i32
    %c0_i32_0 = arith.constant 0 : i32
    %c0_i32_1 = arith.constant 0 : i32
    return %c0_i32, %c0_i32_0 : i32, i32
  }
  func.func @transform_6(%arg0: i32, %arg1: i32) -> (i32, i32) {
    %c0_i32 = arith.constant 0 : i32
    %c0_i32_0 = arith.constant 0 : i32
    %c0_i32_1 = arith.constant 0 : i32
    return %c0_i32, %c0_i32_0 : i32, i32
  }
  func.func @transform_7(%arg0: i32, %arg1: i32) -> (i32, i32) {
    %c0_i32 = arith.constant 0 : i32
    %c0_i32_0 = arith.constant 0 : i32
    %c0_i32_1 = arith.constant 0 : i32
    return %c0_i32, %c0_i32_0 : i32, i32
  }
  func.func @transform_8(%arg0: i32, %arg1: i32) -> (i32, i32) {
    %c0_i32 = arith.constant 0 : i32
    %c0_i32_0 = arith.constant 0 : i32
    %c0_i32_1 = arith.constant 0 : i32
    return %c0_i32, %c0_i32_0 : i32, i32
  }
  func.func @transform_9(%arg0: i32, %arg1: i32) -> (i32, i32) {
    %c0_i32 = arith.constant 0 : i32
    %c0_i32_0 = arith.constant 0 : i32
    %c0_i32_1 = arith.constant 0 : i32
    return %c0_i32, %c0_i32_0 : i32, i32
  }
  func.func @transform_10(%arg0: i32, %arg1: i32) -> (i32, i32, i32, i32) {
    %c0_i32 = arith.constant 0 : i32
    %c0_i32_0 = arith.constant 0 : i32
    %c0_i32_1 = arith.constant 0 : i32
    %c0_i32_2 = arith.constant 0 : i32
    return %c0_i32, %c0_i32_0, %arg1, %c0_i32_1 : i32, i32, i32, i32
  }
  func.func @transform_11(%arg0: i32, %arg1: i32) -> (i32, i32) {
    %c0_i32 = arith.constant 0 : i32
    %c0_i32_0 = arith.constant 0 : i32
    %c0_i32_1 = arith.constant 0 : i32
    return %c0_i32, %c0_i32_0 : i32, i32
  }
  func.func @transform_12(%arg0: i32, %arg1: i32) -> (i32, i32) {
    %c0_i32 = arith.constant 0 : i32
    %c0_i32_0 = arith.constant 0 : i32
    %c0_i32_1 = arith.constant 0 : i32
    return %c0_i32, %c0_i32_0 : i32, i32
  }
  func.func @transform_13(%arg0: i32, %arg1: i32) -> (i32, i32, i32) {
    %c0_i32 = arith.constant 0 : i32
    %c0_i32_0 = arith.constant 0 : i32
    return %arg0, %arg1, %c0_i32 : i32, i32, i32
  }
}

</mosaic_0001>

<llo_original>
// kernel: lmhsa_forward.2
$region0: #{lmhsa_forward.2}
  #allocation0 [shape = 'u32[]', space=smem, size = 0x4, offset = 0x4, fixed_abs, tag = 'smem constant byte address 0x4 - core index']
  #allocation1 [shape = 'u32[144,128]{1,0:T(1,128)}', space=vmem, size = 0x12000, scoped, tag = 'internal scratch']
  %s0 = inlined_call_operand.vmem [shape: f32[64,256], index: 0, kind: input, shape index: {}]
  %s1 = inlined_call_operand.vmem [shape: f32[1,2], index: 1, kind: output, shape index: {}]
  %s2 = sld [smem:[#allocation0]]
  $region14: #{lmhsa_forward.2} parent=0
    _
  %s4 = ssub.s32 1, %s2
  %s5 = scalar_select 0, %s4, %s2
  // Predicated region
  $region2: #{lmhsa_forward.2} parent=0 // pred_check
    _
  $region3: #{lmhsa_forward.2} parent=0 // pred_check_branch
    %7 = sbr.rel (0) target = $region5
  $region4: #{lmhsa_forward.2} parent=0 // pred_region
    _
  $region5: #{lmhsa_forward.2} parent=0 // pred_fallthru
    _
  %v8 = vld [vmem:[%s0] sm:$0xff]
  %v9 = vld [vmem:[%s0 + $0x8] sm:$0xff]
  %v10 = vld [vmem:[%s0 + $0x10] sm:$0xff]
  %v11 = vld [vmem:[%s0 + $0x18] sm:$0xff]
  %v12 = vld [vmem:[%s0 + $0x20] sm:$0xff]
  %v13 = vld [vmem:[%s0 + $0x28] sm:$0xff]
  %v14 = vld [vmem:[%s0 + $0x30] sm:$0xff]
  %v15 = vld [vmem:[%s0 + $0x38] sm:$0xff]
  %v16 = vld [vmem:[%s0 + $0x40] sm:$0xff]
  %v17 = vld [vmem:[%s0 + $0x48] sm:$0xff]
  %v18 = vld [vmem:[%s0 + $0x50] sm:$0xff]
  %v19 = vld [vmem:[%s0 + $0x58] sm:$0xff]
  %v20 = vld [vmem:[%s0 + $0x60] sm:$0xff]
  %v21 = vld [vmem:[%s0 + $0x68] sm:$0xff]
  %v22 = vld [vmem:[%s0 + $0x70] sm:$0xff]
  %v23 = vld [vmem:[%s0 + $0x78] sm:$0xff]
  %v24 = vadd.f32 %v8, %v9
  %v25 = vadd.f32 %v24, %v10
  %v26 = vadd.f32 %v25, %v11
  %v27 = vadd.f32 %v26, %v12
  %v28 = vadd.f32 %v27, %v13
  %v29 = vadd.f32 %v28, %v14
  %v30 = vadd.f32 %v29, %v15
  %v31 = vadd.f32 %v30, %v16
  %v32 = vadd.f32 %v31, %v17
  %v33 = vadd.f32 %v32, %v18
  %v34 = vadd.f32 %v33, %v19
  %v35 = vadd.f32 %v34, %v20
  %v36 = vadd.f32 %v35, %v21
  %v37 = vadd.f32 %v36, %v22
  %v38 = vadd.f32 %v37, %v23
  %39 = vadd.xlane.f32.xlu0 %v38
  %v40 = vpop.xlane.xlu0 %39
  %v41 = vrot.slane %v40, 4
  %v42 = vadd.f32 %v40, %v41
  %v43 = vrot.slane %v42, 2
  %v44 = vadd.f32 %v42, %v43
  %v45 = vrot.slane %v44, 1
  %v46 = vadd.f32 %v44, %v45
  %s47 = vtos %v46
  %v48 = vstv %s47
  %v49 = vmul.f32 %v48, 6.1035156e-05
  %v50 = vsub.f32 %v8, %v49
  %v51 = vsub.f32 %v9, %v49
  %v52 = vsub.f32 %v10, %v49
  %v53 = vsub.f32 %v11, %v49
  %v54 = vsub.f32 %v12, %v49
  %v55 = vsub.f32 %v13, %v49
  %v56 = vsub.f32 %v14, %v49
  %v57 = vsub.f32 %v15, %v49
  %v58 = vsub.f32 %v16, %v49
  %v59 = vsub.f32 %v17, %v49
  %v60 = vsub.f32 %v18, %v49
  %v61 = vsub.f32 %v19, %v49
  %v62 = vsub.f32 %v20, %v49
  %v63 = vsub.f32 %v21, %v49
  %v64 = vsub.f32 %v22, %v49
  %v65 = vsub.f32 %v23, %v49
  %v66 = vmul.f32 %v50, %v50
  %v67 = vmul.f32 %v51, %v51
  %v68 = vmul.f32 %v52, %v52
  %v69 = vmul.f32 %v53, %v53
  %v70 = vmul.f32 %v54, %v54
  %v71 = vmul.f32 %v55, %v55
  %v72 = vmul.f32 %v56, %v56
  %v73 = vmul.f32 %v57, %v57
  %v74 = vmul.f32 %v58, %v58
  %v75 = vmul.f32 %v59, %v59
  %v76 = vmul.f32 %v60, %v60
  %v77 = vmul.f32 %v61, %v61
  %v78 = vmul.f32 %v62, %v62
  %v79 = vmul.f32 %v63, %v63
  %v80 = vmul.f32 %v64, %v64
  %v81 = vmul.f32 %v65, %v65
  %v82 = vadd.f32 %v66, %v67
  %v83 = vadd.f32 %v82, %v68
  %v84 = vadd.f32 %v83, %v69
  %v85 = vadd.f32 %v84, %v70
  %v86 = vadd.f32 %v85, %v71
  %v87 = vadd.f32 %v86, %v72
  %v88 = vadd.f32 %v87, %v73
  %v89 = vadd.f32 %v88, %v74
  %v90 = vadd.f32 %v89, %v75
  %v91 = vadd.f32 %v90, %v76
  %v92 = vadd.f32 %v91, %v77
  %v93 = vadd.f32 %v92, %v78
  %v94 = vadd.f32 %v93, %v79
  %v95 = vadd.f32 %v94, %v80
  %v96 = vadd.f32 %v95, %v81
  %97 = vadd.xlane.f32.xlu0 %v96
  %v98 = vpop.xlane.xlu0 %97
  %v99 = vrot.slane %v98, 4
  %v100 = vadd.f32 %v98, %v99
  %v101 = vrot.slane %v100, 2
  %v102 = vadd.f32 %v100, %v101
  %v103 = vrot.slane %v102, 1
  %v104 = vadd.f32 %v102, %v103
  %s105 = vtos %v104
  %v106 = vstv %s105
  %v107 = vmul.f32 %v106, 6.1035156e-05
  %v108 = vadd.f32 %v107, 1e-05
  %v109 = vrsqrt.pop %v108
  %vm110 = vcmask 7168
  %v111 = vsel %vm110, %v49, %v109
  %vm112 = vcmask 8192
  %113 = vst.msk [vmem:[%s1] sm:$0x1] %vm112, %v111
  // Predicated region
  $region6: #{lmhsa_forward.2} parent=0 // pred_check
    _
  $region7: #{lmhsa_forward.2} parent=0 // pred_check_branch
    %115 = sbr.rel (0) target = $region9
  $region8: #{lmhsa_forward.2} parent=0 // pred_region
    _
  $region9: #{lmhsa_forward.2} parent=0 // pred_fallthru
    _
  // Predicated region
  $region10: #{lmhsa_forward.2} parent=0 // pred_check
    _
  $region11: #{lmhsa_forward.2} parent=0 // pred_check_branch
    %117 = sbr.rel (0) target = $region13
  $region12: #{lmhsa_forward.2} parent=0 // pred_region
    _
  $region13: #{lmhsa_forward.2} parent=0 // pred_fallthru
    _

// kernel: lmhsa_forward.3
$region0: #{lmhsa_forward.3}
  #allocation0 [shape = 'u32[]', space=smem, size = 0x4, offset = 0x4, fixed_abs, tag = 'smem constant byte address 0x4 - core index']
  #allocation1 [shape = 'u32[144,128]{1,0:T(1,128)}', space=vmem, size = 0x12000, scoped, tag = 'internal scratch']
  %s0 = inlined_call_operand.vmem [shape: f32[1,2], index: 0, kind: input, shape index: {}]
  %s1 = inlined_call_operand.vmem [shape: f32[2,256,32], index: 1, kind: input, shape index: {}]
  %s2 = inlined_call_operand.vmem [shape: f32[2,256,32], index: 2, kind: input, shape index: {}]
  %s3 = inlined_call_operand.vmem [shape: f32[2,64,288], index: 3, kind: input, shape index: {}]
  %s4 = inlined_call_operand.vmem [shape: bf16[32,32], index: 4, kind: input, shape index: {}]
  %s5 = inlined_call_operand.vmem [shape: f32[1,32], index: 5, kind: input, shape index: {}]
  %s6 = inlined_call_operand.vmem [shape: bf16[288,32], index: 6, kind: input, shape index: {}]
  %s7 = inlined_call_operand.vmem [shape: f32[1,32], index: 7, kind: input, shape index: {}]
  %s8 = inlined_call_operand.vmem [shape: bf16[288,32], index: 8, kind: input, shape index: {}]
  %s9 = inlined_call_operand.vmem [shape: f32[1,32], index: 9, kind: input, shape index: {}]
  %s10 = inlined_call_operand.vmem [shape: f32[1,2,256,64], index: 10, kind: input, shape index: {}]
  %s11 = inlined_call_operand.vmem [shape: bf16[32,32], index: 11, kind: input, shape index: {}]
  %s12 = inlined_call_operand.vmem [shape: f32[1,32], index: 12, kind: input, shape index: {}]
  %s13 = inlined_call_operand.vmem [shape: f32[2,256,32], index: 13, kind: output, shape index: {}]
  %s14 = sld [smem:[#allocation0]]
  $region123: #{lmhsa_forward.3} parent=0
    _
  %s16 = ssub.s32 1, %s14
  %s17 = scalar_select 0, %s16, %s14
  $region1: #{lmhsa_forward.3} parent=0
    #allocation2 [shape = 'u8[262144]{0}', space=vmem, size = 0x40000, scoped, tag = 'input window, operand 10']
    loop: start=0, step=1, limit=6
    $region2: #{lmhsa_forward.3} parent=1 // loop_pre_header
      _
    $region3: #{lmhsa_forward.3} parent=1 // loop_header
      %s19 = sphi 0, %s23
      %p20 = scmp.ge.s32.totalorder %s19, 6
      %s26 = sphi 0, %s38
      %s27 = sphi 0, %s34
      %s28 = sphi 0, %s26
      %s29 = sphi 0, %s27
      %s30 = sphi 0, %s28
      %s31 = sphi 0, %s29
      %s39 = sphi 0, %s39
      %s41 = sphi 0, %s39
      %s42 = sphi 0, %s41
      %s56 = sphi 0, %s42
      %s64 = sphi 0, %s66
      %s67 = sphi 0, %s64
      %s68 = sphi 0, %s67
      %s84 = sphi 0, %s68
      %s92 = sphi 0, %s94
      %s95 = sphi 0, %s92
      %s96 = sphi 0, %s95
      %s112 = sphi 0, %s96
      %s118 = sphi 0, %s120
      %s121 = sphi 0, %s118
      %s122 = sphi 0, %s121
      %s138 = sphi 0, %s122
      %s142 = sphi 0, %s142
      %s144 = sphi 0, %s142
      %s145 = sphi 0, %s144
      %s159 = sphi 0, %s145
      %s163 = sphi 0, %s163
      %s165 = sphi 0, %s163
      %s166 = sphi 0, %s165
      %s180 = sphi 0, %s166
      %s184 = sphi 0, %s184
      %s186 = sphi 0, %s184
      %s187 = sphi 0, %s186
      %s201 = sphi 0, %s187
      %s205 = sphi 0, %s205
      %s207 = sphi 0, %s205
      %s208 = sphi 0, %s207
      %s222 = sphi 0, %s208
      %s226 = sphi 0, %s226
      %s228 = sphi 0, %s226
      %s229 = sphi 0, %s228
      %s243 = sphi 0, %s229
      %s247 = sphi 0, %s247
      %s249 = sphi 0, %s247
      %s250 = sphi 0, %s249
      %s264 = sphi 0, %s250
      %s270 = sphi 0, %s272
      %s273 = sphi 0, %s270
      %s274 = sphi 0, %s273
      %s290 = sphi 0, %s274
      %s294 = sphi 0, %s294
      %s296 = sphi 0, %s294
      %s297 = sphi 0, %s296
      %s311 = sphi 0, %s297
      %s315 = sphi 0, %s315
      %s317 = sphi 0, %s315
      %s318 = sphi 0, %s317
      %s332 = sphi 0, %s318
      %s340 = sphi 0, %s342
      %s343 = sphi 0, %s340
      %s344 = sphi 0, %s343
      %s360 = sphi 0, %s344
    $region4: #{lmhsa_forward.3} parent=1 // loop_header_branch
      %22 = sbr.rel (%p20) target = $region8
    $region5: #{lmhsa_forward.3} parent=1 // loop_body
      %s24 = ssub.s32 %s19, 1
      %s25 = ssub.s32 %s19, 2
      %s32 = sadd.s32 1, %s27
      %p33 = scmp.ge.s32.totalorder %s32, 2
      %s34 = scalar_select %p33, 0, %s32
      %s35 = sadd.s32 1, %s26
      %s36 = scalar_select %p33, %s35, %s26
      %p37 = scmp.ge.s32.totalorder %s36, 2
      %s38 = scalar_select %p37, 0, %s36
      %s40 = sadd.s32 %s39, 1
      %p43 = scmp.eq.s32.totalorder %s19, 3
      %p44 = scmp.ne.s32.totalorder %s39, %s41
      %p45 = scmp.eq.s32.totalorder %s19, 0
      %p46 = por %p44, %p45
      %p47 = scmp.ne.s32.totalorder %s39, %s41
      %p48 = scmp.eq.s32.totalorder %s24, 3
      %p49 = por %p47, %p48
      %p50 = scmp.ne.s32.totalorder %s41, %s42
      %p51 = scmp.eq.s32.totalorder %s24, 0
      %p52 = por %p50, %p51
      %p53 = scmp.ne.s32.totalorder %s41, %s42
      %p54 = scmp.eq.s32.totalorder %s25, 3
      %p55 = por %p53, %p54
      %p57 = scmp.ne.s32.totalorder %s42, %s56
      %p58 = scmp.eq.s32.totalorder %s25, 0
      %p59 = por %p57, %p58
      %s60 = ssub.s32 %s26, %s38
      %s61 = ssub.s32 %s27, %s34
      %s62 = sor.u32 %s60, %s61
      %p63 = scmp.eq.s32.totalorder %s62, 0
      %s65 = sadd.s32 %s64, 1
      %s66 = scalar_select %p63, %s64, %s65
      %p69 = pneg %p63
      %p70 = scmp.eq.s32.totalorder %s19, 3
      %p71 = por %p69, %p70
      %p72 = scmp.ne.s32.totalorder %s64, %s67
      %p73 = scmp.eq.s32.totalorder %s19, 0
      %p74 = por %p72, %p73
      %p75 = scmp.ne.s32.totalorder %s64, %s67
      %p76 = scmp.eq.s32.totalorder %s24, 3
      %p77 = por %p75, %p76
      %p78 = scmp.ne.s32.totalorder %s67, %s68
      %p79 = scmp.eq.s32.totalorder %s24, 0
      %p80 = por %p78, %p79
      %p81 = scmp.ne.s32.totalorder %s67, %s68
      %p82 = scmp.eq.s32.totalorder %s25, 3
      %p83 = por %p81, %p82
      %p85 = scmp.ne.s32.totalorder %s68, %s84
      %p86 = scmp.eq.s32.totalorder %s25, 0
      %p87 = por %p85, %p86
      %s88 = ssub.s32 %s26, %s38
      %s89 = ssub.s32 %s27, %s34
      %s90 = sor.u32 %s88, %s89
      %p91 = scmp.eq.s32.totalorder %s90, 0
      %s93 = sadd.s32 %s92, 1
      %s94 = scalar_select %p91, %s92, %s93
      %p97 = pneg %p91
      %p98 = scmp.eq.s32.totalorder %s19, 3
      %p99 = por %p97, %p98
      %p100 = scmp.ne.s32.totalorder %s92, %s95
      %p101 = scmp.eq.s32.totalorder %s19, 0
      %p102 = por %p100, %p101
      %p103 = scmp.ne.s32.totalorder %s92, %s95
      %p104 = scmp.eq.s32.totalorder %s24, 3
      %p105 = por %p103, %p104
      %p106 = scmp.ne.s32.totalorder %s95, %s96
      %p107 = scmp.eq.s32.totalorder %s24, 0
      %p108 = por %p106, %p107
      %p109 = scmp.ne.s32.totalorder %s95, %s96
      %p110 = scmp.eq.s32.totalorder %s25, 3
      %p111 = por %p109, %p110
      %p113 = scmp.ne.s32.totalorder %s96, %s112
      %p114 = scmp.eq.s32.totalorder %s25, 0
      %p115 = por %p113, %p114
      %s116 = ssub.s32 %s26, %s38
      %p117 = scmp.eq.s32.totalorder %s116, 0
      %s119 = sadd.s32 %s118, 1
      %s120 = scalar_select %p117, %s118, %s119
      %p123 = pneg %p117
      %p124 = scmp.eq.s32.totalorder %s19, 3
      %p125 = por %p123, %p124
      %p126 = scmp.ne.s32.totalorder %s118, %s121
      %p127 = scmp.eq.s32.totalorder %s19, 0
      %p128 = por %p126, %p127
      %p129 = scmp.ne.s32.totalorder %s118, %s121
      %p130 = scmp.eq.s32.totalorder %s24, 3
      %p131 = por %p129, %p130
      %p132 = scmp.ne.s32.totalorder %s121, %s122
      %p133 = scmp.eq.s32.totalorder %s24, 0
      %p134 = por %p132, %p133
      %p135 = scmp.ne.s32.totalorder %s121, %s122
      %p136 = scmp.eq.s32.totalorder %s25, 3
      %p137 = por %p135, %p136
      %p139 = scmp.ne.s32.totalorder %s122, %s138
      %p140 = scmp.eq.s32.totalorder %s25, 0
      %p141 = por %p139, %p140
      %s143 = sadd.s32 %s142, 1
      %p146 = scmp.eq.s32.totalorder %s19, 3
      %p147 = scmp.ne.s32.totalorder %s142, %s144
      %p148 = scmp.eq.s32.totalorder %s19, 0
      %p149 = por %p147, %p148
      %p150 = scmp.ne.s32.totalorder %s142, %s144
      %p151 = scmp.eq.s32.totalorder %s24, 3
      %p152 = por %p150, %p151
      %p153 = scmp.ne.s32.totalorder %s144, %s145
      %p154 = scmp.eq.s32.totalorder %s24, 0
      %p155 = por %p153, %p154
      %p156 = scmp.ne.s32.totalorder %s144, %s145
      %p157 = scmp.eq.s32.totalorder %s25, 3
      %p158 = por %p156, %p157
      %p160 = scmp.ne.s32.totalorder %s145, %s159
      %p161 = scmp.eq.s32.totalorder %s25, 0
      %p162 = por %p160, %p161
      %s164 = sadd.s32 %s163, 1
      %p167 = scmp.eq.s32.totalorder %s19, 3
      %p168 = scmp.ne.s32.totalorder %s163, %s165
      %p169 = scmp.eq.s32.totalorder %s19, 0
      %p170 = por %p168, %p169
      %p171 = scmp.ne.s32.totalorder %s163, %s165
      %p172 = scmp.eq.s32.totalorder %s24, 3
      %p173 = por %p171, %p172
      %p174 = scmp.ne.s32.totalorder %s165, %s166
      %p175 = scmp.eq.s32.totalorder %s24, 0
      %p176 = por %p174, %p175
      %p177 = scmp.ne.s32.totalorder %s165, %s166
      %p178 = scmp.eq.s32.totalorder %s25, 3
      %p179 = por %p177, %p178
      %p181 = scmp.ne.s32.totalorder %s166, %s180
      %p182 = scmp.eq.s32.totalorder %s25, 0
      %p183 = por %p181, %p182
      %s185 = sadd.s32 %s184, 1
      %p188 = scmp.eq.s32.totalorder %s19, 3
      %p189 = scmp.ne.s32.totalorder %s184, %s186
      %p190 = scmp.eq.s32.totalorder %s19, 0
      %p191 = por %p189, %p190
      %p192 = scmp.ne.s32.totalorder %s184, %s186
      %p193 = scmp.eq.s32.totalorder %s24, 3
      %p194 = por %p192, %p193
      %p195 = scmp.ne.s32.totalorder %s186, %s187
      %p196 = scmp.eq.s32.totalorder %s24, 0
      %p197 = por %p195, %p196
      %p198 = scmp.ne.s32.totalorder %s186, %s187
      %p199 = scmp.eq.s32.totalorder %s25, 3
      %p200 = por %p198, %p199
      %p202 = scmp.ne.s32.totalorder %s187, %s201
      %p203 = scmp.eq.s32.totalorder %s25, 0
      %p204 = por %p202, %p203
      %s206 = sadd.s32 %s205, 1
      %p209 = scmp.eq.s32.totalorder %s19, 3
      %p210 = scmp.ne.s32.totalorder %s205, %s207
      %p211 = scmp.eq.s32.totalorder %s19, 0
      %p212 = por %p210, %p211
      %p213 = scmp.ne.s32.totalorder %s205, %s207
      %p214 = scmp.eq.s32.totalorder %s24, 3
      %p215 = por %p213, %p214
      %p216 = scmp.ne.s32.totalorder %s207, %s208
      %p217 = scmp.eq.s32.totalorder %s24, 0
      %p218 = por %p216, %p217
      %p219 = scmp.ne.s32.totalorder %s207, %s208
      %p220 = scmp.eq.s32.totalorder %s25, 3
      %p221 = por %p219, %p220
      %p223 = scmp.ne.s32.totalorder %s208, %s222
      %p224 = scmp.eq.s32.totalorder %s25, 0
      %p225 = por %p223, %p224
      %s227 = sadd.s32 %s226, 1
      %p230 = scmp.eq.s32.totalorder %s19, 3
      %p231 = scmp.ne.s32.totalorder %s226, %s228
      %p232 = scmp.eq.s32.totalorder %s19, 0
      %p233 = por %p231, %p232
      %p234 = scmp.ne.s32.totalorder %s226, %s228
      %p235 = scmp.eq.s32.totalorder %s24, 3
      %p236 = por %p234, %p235
      %p237 = scmp.ne.s32.totalorder %s228, %s229
      %p238 = scmp.eq.s32.totalorder %s24, 0
      %p239 = por %p237, %p238
      %p240 = scmp.ne.s32.totalorder %s228, %s229
      %p241 = scmp.eq.s32.totalorder %s25, 3
      %p242 = por %p240, %p241
      %p244 = scmp.ne.s32.totalorder %s229, %s243
      %p245 = scmp.eq.s32.totalorder %s25, 0
      %p246 = por %p244, %p245
      %s248 = sadd.s32 %s247, 1
      %p251 = scmp.eq.s32.totalorder %s19, 3
      %p252 = scmp.ne.s32.totalorder %s247, %s249
      %p253 = scmp.eq.s32.totalorder %s19, 0
      %p254 = por %p252, %p253
      %p255 = scmp.ne.s32.totalorder %s247, %s249
      %p256 = scmp.eq.s32.totalorder %s24, 3
      %p257 = por %p255, %p256
      %p258 = scmp.ne.s32.totalorder %s249, %s250
      %p259 = scmp.eq.s32.totalorder %s24, 0
      %p260 = por %p258, %p259
      %p261 = scmp.ne.s32.totalorder %s249, %s250
      %p262 = scmp.eq.s32.totalorder %s25, 3
      %p263 = por %p261, %p262
      %p265 = scmp.ne.s32.totalorder %s250, %s264
      %p266 = scmp.eq.s32.totalorder %s25, 0
      %p267 = por %p265, %p266
      %s268 = ssub.s32 %s27, %s34
      %p269 = scmp.eq.s32.totalorder %s268, 0
      %s271 = sadd.s32 %s270, 1
      %s272 = scalar_select %p269, %s270, %s271
      %p275 = pneg %p269
      %p276 = scmp.eq.s32.totalorder %s19, 3
      %p277 = por %p275, %p276
      %p278 = scmp.ne.s32.totalorder %s270, %s273
      %p279 = scmp.eq.s32.totalorder %s19, 0
      %p280 = por %p278, %p279
      %p281 = scmp.ne.s32.totalorder %s270, %s273
      %p282 = scmp.eq.s32.totalorder %s24, 3
      %p283 = por %p281, %p282
      %p284 = scmp.ne.s32.totalorder %s273, %s274
      %p285 = scmp.eq.s32.totalorder %s24, 0
      %p286 = por %p284, %p285
      %p287 = scmp.ne.s32.totalorder %s273, %s274
      %p288 = scmp.eq.s32.totalorder %s25, 3
      %p289 = por %p287, %p288
      %p291 = scmp.ne.s32.totalorder %s274, %s290
      %p292 = scmp.eq.s32.totalorder %s25, 0
      %p293 = por %p291, %p292
      %s295 = sadd.s32 %s294, 1
      %p298 = scmp.eq.s32.totalorder %s19, 3
      %p299 = scmp.ne.s32.totalorder %s294, %s296
      %p300 = scmp.eq.s32.totalorder %s19, 0
      %p301 = por %p299, %p300
      %p302 = scmp.ne.s32.totalorder %s294, %s296
      %p303 = scmp.eq.s32.totalorder %s24, 3
      %p304 = por %p302, %p303
      %p305 = scmp.ne.s32.totalorder %s296, %s297
      %p306 = scmp.eq.s32.totalorder %s24, 0
      %p307 = por %p305, %p306
      %p308 = scmp.ne.s32.totalorder %s296, %s297
      %p309 = scmp.eq.s32.totalorder %s25, 3
      %p310 = por %p308, %p309
      %p312 = scmp.ne.s32.totalorder %s297, %s311
      %p313 = scmp.eq.s32.totalorder %s25, 0
      %p314 = por %p312, %p313
      %s316 = sadd.s32 %s315, 1
      %p319 = scmp.eq.s32.totalorder %s19, 3
      %p320 = scmp.ne.s32.totalorder %s315, %s317
      %p321 = scmp.eq.s32.totalorder %s19, 0
      %p322 = por %p320, %p321
      %p323 = scmp.ne.s32.totalorder %s315, %s317
      %p324 = scmp.eq.s32.totalorder %s24, 3
      %p325 = por %p323, %p324
      %p326 = scmp.ne.s32.totalorder %s317, %s318
      %p327 = scmp.eq.s32.totalorder %s24, 0
      %p328 = por %p326, %p327
      %p329 = scmp.ne.s32.totalorder %s317, %s318
      %p330 = scmp.eq.s32.totalorder %s25, 3
      %p331 = por %p329, %p330
      %p333 = scmp.ne.s32.totalorder %s318, %s332
      %p334 = scmp.eq.s32.totalorder %s25, 0
      %p335 = por %p333, %p334
      %s336 = ssub.s32 %s26, %s38
      %s337 = ssub.s32 %s27, %s34
      %s338 = sor.u32 %s336, %s337
      %p339 = scmp.eq.s32.totalorder %s338, 0
      %s341 = sadd.s32 %s340, 1
      %s342 = scalar_select %p339, %s340, %s341
      %p345 = pneg %p339
      %p346 = scmp.eq.s32.totalorder %s19, 3
      %p347 = por %p345, %p346
      %p348 = scmp.ne.s32.totalorder %s340, %s343
      %p349 = scmp.eq.s32.totalorder %s19, 0
      %p350 = por %p348, %p349
      %p351 = scmp.ne.s32.totalorder %s340, %s343
      %p352 = scmp.eq.s32.totalorder %s24, 3
      %p353 = por %p351, %p352
      %p354 = scmp.ne.s32.totalorder %s343, %s344
      %p355 = scmp.eq.s32.totalorder %s24, 0
      %p356 = por %p354, %p355
      %p357 = scmp.ne.s32.totalorder %s343, %s344
      %p358 = scmp.eq.s32.totalorder %s25, 3
      %p359 = por %p357, %p358
      %p361 = scmp.ne.s32.totalorder %s344, %s360
      %p362 = scmp.eq.s32.totalorder %s25, 0
      %p363 = por %p361, %p362
      %p364 = scmp.le.s32.totalorder 1, %s19
      %p365 = scmp.lt.s32.totalorder %s19, 5
      %p366 = pnand %p364, %p365
      %p367 = pneg %p366
      // Predicated region
      $region9: #{lmhsa_forward.3} parent=5 // pred_check
        _
      $region10: #{lmhsa_forward.3} parent=5 // pred_check_branch
        %369 = sbr.rel (%p366) target = $region12
      $region11: #{lmhsa_forward.3} parent=5 // pred_region
        %s370 = ssub.s32 %s19, 1
        // Predicated region
        $region13: #{lmhsa_forward.3} parent=11 // pred_check
          %p371 = pneg %p52
        $region14: #{lmhsa_forward.3} parent=11 // pred_check_branch
          %373 = sbr.rel (%p371) target = $region16
        $region15: #{lmhsa_forward.3} parent=11 // pred_region
          _
        $region16: #{lmhsa_forward.3} parent=11 // pred_fallthru
          _
        // Predicated region
        $region17: #{lmhsa_forward.3} parent=11 // pred_check
          %p374 = pneg %p155
        $region18: #{lmhsa_forward.3} parent=11 // pred_check_branch
          %376 = sbr.rel (%p374) target = $region20
        $region19: #{lmhsa_forward.3} parent=11 // pred_region
          _
        $region20: #{lmhsa_forward.3} parent=11 // pred_fallthru
          _
        // Predicated region
        $region21: #{lmhsa_forward.3} parent=11 // pred_check
          %p377 = pneg %p176
        $region22: #{lmhsa_forward.3} parent=11 // pred_check_branch
          %379 = sbr.rel (%p377) target = $region24
        $region23: #{lmhsa_forward.3} parent=11 // pred_region
          _
        $region24: #{lmhsa_forward.3} parent=11 // pred_fallthru
          _
        // Predicated region
        $region25: #{lmhsa_forward.3} parent=11 // pred_check
          %p380 = pneg %p197
        $region26: #{lmhsa_forward.3} parent=11 // pred_check_branch
          %382 = sbr.rel (%p380) target = $region28
        $region27: #{lmhsa_forward.3} parent=11 // pred_region
          _
        $region28: #{lmhsa_forward.3} parent=11 // pred_fallthru
          _
        // Predicated region
        $region29: #{lmhsa_forward.3} parent=11 // pred_check
          %p383 = pneg %p218
        $region30: #{lmhsa_forward.3} parent=11 // pred_check_branch
          %385 = sbr.rel (%p383) target = $region32
        $region31: #{lmhsa_forward.3} parent=11 // pred_region
          _
        $region32: #{lmhsa_forward.3} parent=11 // pred_fallthru
          _
        // Predicated region
        $region33: #{lmhsa_forward.3} parent=11 // pred_check
          %p386 = pneg %p239
        $region34: #{lmhsa_forward.3} parent=11 // pred_check_branch
          %388 = sbr.rel (%p386) target = $region36
        $region35: #{lmhsa_forward.3} parent=11 // pred_region
          _
        $region36: #{lmhsa_forward.3} parent=11 // pred_fallthru
          _
        // Predicated region
        $region37: #{lmhsa_forward.3} parent=11 // pred_check
          %p389 = pneg %p260
        $region38: #{lmhsa_forward.3} parent=11 // pred_check_branch
          %391 = sbr.rel (%p389) target = $region40
        $region39: #{lmhsa_forward.3} parent=11 // pred_region
          _
        $region40: #{lmhsa_forward.3} parent=11 // pred_fallthru
          _
        // Predicated region
        $region41: #{lmhsa_forward.3} parent=11 // pred_check
          %p392 = pneg %p307
        $region42: #{lmhsa_forward.3} parent=11 // pred_check_branch
          %394 = sbr.rel (%p392) target = $region44
        $region43: #{lmhsa_forward.3} parent=11 // pred_region
          _
        $region44: #{lmhsa_forward.3} parent=11 // pred_fallthru
          _
        // Predicated region
        $region45: #{lmhsa_forward.3} parent=11 // pred_check
          %p395 = pneg %p328
        $region46: #{lmhsa_forward.3} parent=11 // pred_check_branch
          %397 = sbr.rel (%p395) target = $region48
        $region47: #{lmhsa_forward.3} parent=11 // pred_region
          _
        $region48: #{lmhsa_forward.3} parent=11 // pred_fallthru
          _
      $region12: #{lmhsa_forward.3} parent=5 // pred_fallthru
        _
      %p398 = scmp.lt.s32.totalorder %s19, 4
      // Predicated region
      $region49: #{lmhsa_forward.3} parent=5 // pred_check
        %p399 = pneg %p398
      $region50: #{lmhsa_forward.3} parent=5 // pred_check_branch
        %401 = sbr.rel (%p399) target = $region52
      $region51: #{lmhsa_forward.3} parent=5 // pred_region
        // Predicated region
        $region53: #{lmhsa_forward.3} parent=51 // pred_check
          %p402 = pneg %p74
        $region54: #{lmhsa_forward.3} parent=51 // pred_check_branch
          %404 = sbr.rel (%p402) target = $region56
        $region55: #{lmhsa_forward.3} parent=51 // pred_region
          %s405 = smul.u32 16, %s27
          %p406 = scmp.lt.s32.totalorder %s26, 1
          %s407 = scalar_select %p406, %s26, 1
          %p408 = scmp.lt.s32.totalorder %s405, 31
          %s409 = scalar_select %p408, %s405, 31
          %s410 = smul.addr %s407, 32
          %s411 = sadd.s32 %s409, %s410
          %s412 = smul.addr %s411, 8
          %s413 = scalar_lea.vmem %s1, %s412
          %s414 = smul.u32 16, %s27
        $region56: #{lmhsa_forward.3} parent=51 // pred_fallthru
          _
        // Predicated region
        $region57: #{lmhsa_forward.3} parent=51 // pred_check
          %p415 = pneg %p102
        $region58: #{lmhsa_forward.3} parent=51 // pred_check_branch
          %417 = sbr.rel (%p415) target = $region60
        $region59: #{lmhsa_forward.3} parent=51 // pred_region
          %s418 = smul.u32 16, %s27
          %p419 = scmp.lt.s32.totalorder %s26, 1
          %s420 = scalar_select %p419, %s26, 1
          %p421 = scmp.lt.s32.totalorder %s418, 31
          %s422 = scalar_select %p421, %s418, 31
          %s423 = smul.addr %s420, 32
          %s424 = sadd.s32 %s422, %s423
          %s425 = smul.addr %s424, 8
          %s426 = scalar_lea.vmem %s2, %s425
          %s427 = smul.u32 16, %s27
        $region60: #{lmhsa_forward.3} parent=51 // pred_fallthru
          _
        // Predicated region
        $region61: #{lmhsa_forward.3} parent=51 // pred_check
          %p428 = pneg %p128
        $region62: #{lmhsa_forward.3} parent=51 // pred_check_branch
          %430 = sbr.rel (%p428) target = $region64
        $region63: #{lmhsa_forward.3} parent=51 // pred_region
          %p431 = scmp.lt.s32.totalorder %s26, 1
          %s432 = scalar_select %p431, %s26, 1
          %s433 = smul.addr %s432, 24
          %s434 = smul.addr %s433, 8
          %s435 = scalar_lea.vmem %s3, %s434
        $region64: #{lmhsa_forward.3} parent=51 // pred_fallthru
          _
        // Predicated region
        $region65: #{lmhsa_forward.3} parent=51 // pred_check
          %p436 = pneg %p280
        $region66: #{lmhsa_forward.3} parent=51 // pred_check_branch
          %438 = sbr.rel (%p436) target = $region68
        $region67: #{lmhsa_forward.3} parent=51 // pred_region
          %s439 = sand.u32 %s270, 1
          %s440 = sand.u32 %s270, 1
          %s441 = smul.addr %s440, 256
          %s442 = scalar_lea.vmem [#allocation2], %s441
          %s443 = smul.u32 16, %s27
          %s444 = smul.addr %s443, 8
          %s445 = scalar_lea.vmem %s10, %s444
          // Predicated region
          $region69: #{lmhsa_forward.3} parent=67 // pred_check
            _
          $region70: #{lmhsa_forward.3} parent=67 // pred_check_branch
            %447 = sbr.rel (0) target = $region72
          $region71: #{lmhsa_forward.3} parent=67 // pred_region
            // Predicated region
            $region73: #{lmhsa_forward.3} parent=71 // pred_check
              _
            $region74: #{lmhsa_forward.3} parent=71 // pred_check_branch
              %449 = sbr.rel (0) target = $region76
            $region75: #{lmhsa_forward.3} parent=71 // pred_region
              // Predicated region
              $region88: #{lmhsa_forward.3} parent=75 // pred_check
                _
              $region89: #{lmhsa_forward.3} parent=75 // pred_check_branch
                %527 = sbr.rel (0) target = $region91
              $region90: #{lmhsa_forward.3} parent=75 // pred_region
                loop: start=0, step=1, limit=1
                $region92: #{lmhsa_forward.3} parent=90 // loop_pre_header
                  _
                $region93: #{lmhsa_forward.3} parent=90 // loop_header
                  %s529 = sphi 0, %s533
                  %p530 = scmp.ge.s32.totalorder %s529, 1
                  %s534 = sphi %s445, %s445
                  %s535 = sphi %s442, %s442
                $region94: #{lmhsa_forward.3} parent=90 // loop_header_branch
                  %532 = sbr.rel (%p530) target = $region98
                $region95: #{lmhsa_forward.3} parent=90 // loop_body
                  %v536 = vld [vmem:[%s534] sm:$0xff]
                  %537 = vst [vmem:[%s535] sm:$0xff] %v536
                  %v538 = vld [vmem:[%s534 + $0x8] sm:$0xff]
                  %539 = vst [vmem:[%s535 + $0x8] sm:$0xff] %v538
                  %v540 = vld [vmem:[%s534 + $0x10] sm:$0xff]
                  %541 = vst [vmem:[%s535 + $0x10] sm:$0xff] %v540
                  %v542 = vld [vmem:[%s534 + $0x18] sm:$0xff]
                  %543 = vst [vmem:[%s535 + $0x18] sm:$0xff] %v542
                  %v544 = vld [vmem:[%s534 + $0x20] sm:$0xff]
                  %545 = vst [vmem:[%s535 + $0x20] sm:$0xff] %v544
                  %v546 = vld [vmem:[%s534 + $0x28] sm:$0xff]
                  %547 = vst [vmem:[%s535 + $0x28] sm:$0xff] %v546
                  %v548 = vld [vmem:[%s534 + $0x30] sm:$0xff]
                  %549 = vst [vmem:[%s535 + $0x30] sm:$0xff] %v548
                  %v550 = vld [vmem:[%s534 + $0x38] sm:$0xff]
                  %551 = vst [vmem:[%s535 + $0x38] sm:$0xff] %v550
                  %v552 = vld [vmem:[%s534 + $0x40] sm:$0xff]
                  %553 = vst [vmem:[%s535 + $0x40] sm:$0xff] %v552
                  %v554 = vld [vmem:[%s534 + $0x48] sm:$0xff]
                  %555 = vst [vmem:[%s535 + $0x48] sm:$0xff] %v554
                  %v556 = vld [vmem:[%s534 + $0x50] sm:$0xff]
                  %557 = vst [vmem:[%s535 + $0x50] sm:$0xff] %v556
                  %v558 = vld [vmem:[%s534 + $0x58] sm:$0xff]
                  %559 = vst [vmem:[%s535 + $0x58] sm:$0xff] %v558
                  %v560 = vld [vmem:[%s534 + $0x60] sm:$0xff]
                  %561 = vst [vmem:[%s535 + $0x60] sm:$0xff] %v560
                  %v562 = vld [vmem:[%s534 + $0x68] sm:$0xff]
                  %563 = vst [vmem:[%s535 + $0x68] sm:$0xff] %v562
                  %v564 = vld [vmem:[%s534 + $0x70] sm:$0xff]
                  %565 = vst [vmem:[%s535 + $0x70] sm:$0xff] %v564
                  %v566 = vld [vmem:[%s534 + $0x78] sm:$0xff]
                  %567 = vst [vmem:[%s535 + $0x78] sm:$0xff] %v566
                  %v568 = vld [vmem:[%s534 + $0x100] sm:$0xff]
                  %569 = vst [vmem:[%s535 + $0x80] sm:$0xff] %v568
                  %v570 = vld [vmem:[%s534 + $0x108] sm:$0xff]
                  %571 = vst [vmem:[%s535 + $0x88] sm:$0xff] %v570
                  %v572 = vld [vmem:[%s534 + $0x110] sm:$0xff]
                  %573 = vst [vmem:[%s535 + $0x90] sm:$0xff] %v572
                  %v574 = vld [vmem:[%s534 + $0x118] sm:$0xff]
                  %575 = vst [vmem:[%s535 + $0x98] sm:$0xff] %v574
                  %v576 = vld [vmem:[%s534 + $0x120] sm:$0xff]
                  %577 = vst [vmem:[%s535 + $0xa0] sm:$0xff] %v576
                  %v578 = vld [vmem:[%s534 + $0x128] sm:$0xff]
                  %579 = vst [vmem:[%s535 + $0xa8] sm:$0xff] %v578
                  %v580 = vld [vmem:[%s534 + $0x130] sm:$0xff]
                  %581 = vst [vmem:[%s535 + $0xb0] sm:$0xff] %v580
                  %v582 = vld [vmem:[%s534 + $0x138] sm:$0xff]
                  %583 = vst [vmem:[%s535 + $0xb8] sm:$0xff] %v582
                  %v584 = vld [vmem:[%s534 + $0x140] sm:$0xff]
                  %585 = vst [vmem:[%s535 + $0xc0] sm:$0xff] %v584
                  %v586 = vld [vmem:[%s534 + $0x148] sm:$0xff]
                  %587 = vst [vmem:[%s535 + $0xc8] sm:$0xff] %v586
                  %v588 = vld [vmem:[%s534 + $0x150] sm:$0xff]
                  %589 = vst [vmem:[%s535 + $0xd0] sm:$0xff] %v588
                  %v590 = vld [vmem:[%s534 + $0x158] sm:$0xff]
                  %591 = vst [vmem:[%s535 + $0xd8] sm:$0xff] %v590
                  %v592 = vld [vmem:[%s534 + $0x160] sm:$0xff]
                  %593 = vst [vmem:[%s535 + $0xe0] sm:$0xff] %v592
                  %v594 = vld [vmem:[%s534 + $0x168] sm:$0xff]
                  %595 = vst [vmem:[%s535 + $0xe8] sm:$0xff] %v594
                  %v596 = vld [vmem:[%s534 + $0x170] sm:$0xff]
                  %597 = vst [vmem:[%s535 + $0xf0] sm:$0xff] %v596
                  %v598 = vld [vmem:[%s534 + $0x178] sm:$0xff]
                  %599 = vst [vmem:[%s535 + $0xf8] sm:$0xff] %v598
                $region96: #{lmhsa_forward.3} parent=90 // loop_footer
                  %s533 = sadd.s32 1, %s529
                $region97: #{lmhsa_forward.3} parent=90 // loop_footer_branch
                  %528 = sbr.rel target = $region93
                $region98: #{lmhsa_forward.3} parent=90 // loop_exit
                  _
              $region91: #{lmhsa_forward.3} parent=75 // pred_fallthru
                _
              // Predicated region
              $region99: #{lmhsa_forward.3} parent=75 // pred_check
                _
              $region100: #{lmhsa_forward.3} parent=75 // pred_check_branch
                %601 = sbr.rel target = $region102
              $region101: #{lmhsa_forward.3} parent=75 // pred_region
                _
              $region102: #{lmhsa_forward.3} parent=75 // pred_fallthru
                _
            $region76: #{lmhsa_forward.3} parent=71 // pred_fallthru
              _
            // Predicated region
            $region77: #{lmhsa_forward.3} parent=71 // pred_check
              _
            $region78: #{lmhsa_forward.3} parent=71 // pred_check_branch
              %451 = sbr.rel target = $region80
            $region79: #{lmhsa_forward.3} parent=71 // pred_region
              %s453 = ssub.s32 256, 1
              loop: start=0, step=1, limit=1
              $region81: #{lmhsa_forward.3} parent=79 // loop_pre_header
                _
              $region82: #{lmhsa_forward.3} parent=79 // loop_header
                %s455 = sphi 0, %s459
                %p456 = scmp.ge.s32.totalorder %s455, 1
                %s460 = sphi %s445, %s445
                %s461 = sphi %s442, %s442
              $region83: #{lmhsa_forward.3} parent=79 // loop_header_branch
                %458 = sbr.rel (%p456) target = $region87
              $region84: #{lmhsa_forward.3} parent=79 // loop_body
                %v462 = vld [vmem:[%s460] sm:%s453]
                %463 = vst [vmem:[%s461] sm:%s453] %v462
                %v464 = vld [vmem:[%s460 + $0x8] sm:%s453]
                %465 = vst [vmem:[%s461 + $0x8] sm:%s453] %v464
                %v466 = vld [vmem:[%s460 + $0x10] sm:%s453]
                %467 = vst [vmem:[%s461 + $0x10] sm:%s453] %v466
                %v468 = vld [vmem:[%s460 + $0x18] sm:%s453]
                %469 = vst [vmem:[%s461 + $0x18] sm:%s453] %v468
                %v470 = vld [vmem:[%s460 + $0x20] sm:%s453]
                %471 = vst [vmem:[%s461 + $0x20] sm:%s453] %v470
                %v472 = vld [vmem:[%s460 + $0x28] sm:%s453]
                %473 = vst [vmem:[%s461 + $0x28] sm:%s453] %v472
                %v474 = vld [vmem:[%s460 + $0x30] sm:%s453]
                %475 = vst [vmem:[%s461 + $0x30] sm:%s453] %v474
                %v476 = vld [vmem:[%s460 + $0x38] sm:%s453]
                %477 = vst [vmem:[%s461 + $0x38] sm:%s453] %v476
                %v478 = vld [vmem:[%s460 + $0x40] sm:%s453]
                %479 = vst [vmem:[%s461 + $0x40] sm:%s453] %v478
                %v480 = vld [vmem:[%s460 + $0x48] sm:%s453]
                %481 = vst [vmem:[%s461 + $0x48] sm:%s453] %v480
                %v482 = vld [vmem:[%s460 + $0x50] sm:%s453]
                %483 = vst [vmem:[%s461 + $0x50] sm:%s453] %v482
                %v484 = vld [vmem:[%s460 + $0x58] sm:%s453]
                %485 = vst [vmem:[%s461 + $0x58] sm:%s453] %v484
                %v486 = vld [vmem:[%s460 + $0x60] sm:%s453]
                %487 = vst [vmem:[%s461 + $0x60] sm:%s453] %v486
                %v488 = vld [vmem:[%s460 + $0x68] sm:%s453]
                %489 = vst [vmem:[%s461 + $0x68] sm:%s453] %v488
                %v490 = vld [vmem:[%s460 + $0x70] sm:%s453]
                %491 = vst [vmem:[%s461 + $0x70] sm:%s453] %v490
                %v492 = vld [vmem:[%s460 + $0x78] sm:%s453]
                %493 = vst [vmem:[%s461 + $0x78] sm:%s453] %v492
                %v494 = vld [vmem:[%s460 + $0x100] sm:%s453]
                %495 = vst [vmem:[%s461 + $0x80] sm:%s453] %v494
                %v496 = vld [vmem:[%s460 + $0x108] sm:%s453]
                %497 = vst [vmem:[%s461 + $0x88] sm:%s453] %v496
                %v498 = vld [vmem:[%s460 + $0x110] sm:%s453]
                %499 = vst [vmem:[%s461 + $0x90] sm:%s453] %v498
                %v500 = vld [vmem:[%s460 + $0x118] sm:%s453]
                %501 = vst [vmem:[%s461 + $0x98] sm:%s453] %v500
                %v502 = vld [vmem:[%s460 + $0x120] sm:%s453]
                %503 = vst [vmem:[%s461 + $0xa0] sm:%s453] %v502
                %v504 = vld [vmem:[%s460 + $0x128] sm:%s453]
                %505 = vst [vmem:[%s461 + $0xa8] sm:%s453] %v504
                %v506 = vld [vmem:[%s460 + $0x130] sm:%s453]
                %507 = vst [vmem:[%s461 + $0xb0] sm:%s453] %v506
                %v508 = vld [vmem:[%s460 + $0x138] sm:%s453]
                %509 = vst [vmem:[%s461 + $0xb8] sm:%s453] %v508
                %v510 = vld [vmem:[%s460 + $0x140] sm:%s453]
                %511 = vst [vmem:[%s461 + $0xc0] sm:%s453] %v510
                %v512 = vld [vmem:[%s460 + $0x148] sm:%s453]
                %513 = vst [vmem:[%s461 + $0xc8] sm:%s453] %v512
                %v514 = vld [vmem:[%s460 + $0x150] sm:%s453]
                %515 = vst [vmem:[%s461 + $0xd0] sm:%s453] %v514
                %v516 = vld [vmem:[%s460 + $0x158] sm:%s453]
                %517 = vst [vmem:[%s461 + $0xd8] sm:%s453] %v516
                %v518 = vld [vmem:[%s460 + $0x160] sm:%s453]
                %519 = vst [vmem:[%s461 + $0xe0] sm:%s453] %v518
                %v520 = vld [vmem:[%s460 + $0x168] sm:%s453]
                %521 = vst [vmem:[%s461 + $0xe8] sm:%s453] %v520
                %v522 = vld [vmem:[%s460 + $0x170] sm:%s453]
                %523 = vst [vmem:[%s461 + $0xf0] sm:%s453] %v522
                %v524 = vld [vmem:[%s460 + $0x178] sm:%s453]
                %525 = vst [vmem:[%s461 + $0xf8] sm:%s453] %v524
              $region85: #{lmhsa_forward.3} parent=79 // loop_footer
                %s459 = sadd.s32 1, %s455
              $region86: #{lmhsa_forward.3} parent=79 // loop_footer_branch
                %454 = sbr.rel target = $region82
              $region87: #{lmhsa_forward.3} parent=79 // loop_exit
                _
            $region80: #{lmhsa_forward.3} parent=71 // pred_fallthru
              _
          $region72: #{lmhsa_forward.3} parent=67 // pred_fallthru
            _
          %602 = vnop
        $region68: #{lmhsa_forward.3} parent=51 // pred_fallthru
          _
      $region52: #{lmhsa_forward.3} parent=5 // pred_fallthru
        _
      %p603 = scmp.le.s32.totalorder 1, %s19
      %p604 = scmp.lt.s32.totalorder %s19, 5
      %p605 = pnand %p603, %p604
      %p606 = pneg %p605
      // Predicated region
      $region103: #{lmhsa_forward.3} parent=5 // pred_check
        _
      $region104: #{lmhsa_forward.3} parent=5 // pred_check_branch
        %608 = sbr.rel (%p605) target = $region106
      $region105: #{lmhsa_forward.3} parent=5 // pred_region
        %s609 = ssub.s32 %s19, 1
        %s610 = sand.u32 %s273, 1
        %s611 = sand.u32 %s273, 1
        %s612 = smul.addr %s611, 256
        %s613 = scalar_lea.vmem [#allocation2], %s612
        // Predicated region
        $region107: #{lmhsa_forward.3} parent=105 // pred_check
          %p614 = pneg %p286
        $region108: #{lmhsa_forward.3} parent=105 // pred_check_branch
          %616 = sbr.rel (%p614) target = $region110
        $region109: #{lmhsa_forward.3} parent=105 // pred_region
          _
        $region110: #{lmhsa_forward.3} parent=105 // pred_fallthru
          _
        %p617 = pneg %p52
        %p618 = pneg %p49
        %s619 = smul.u32 16, %s29
        %p620 = scmp.lt.s32.totalorder %s28, 1
        %s621 = scalar_select %p620, %s28, 1
        %p622 = scmp.lt.s32.totalorder %s619, 31
        %s623 = scalar_select %p622, %s619, 31
        %s624 = smul.addr %s621, 32
        %s625 = sadd.s32 %s623, %s624
        %s626 = smul.addr %s625, 8
        %s627 = scalar_lea.vmem %s1, %s626
        %p628 = pneg %p80
        %p629 = pneg %p77
        %s630 = smul.u32 16, %s29
        %p631 = scmp.lt.s32.totalorder %s28, 1
        %s632 = scalar_select %p631, %s28, 1
        %p633 = scmp.lt.s32.totalorder %s630, 31
        %s634 = scalar_select %p633, %s630, 31
        %s635 = smul.addr %s632, 32
        %s636 = sadd.s32 %s634, %s635
        %s637 = smul.addr %s636, 8
        %s638 = scalar_lea.vmem %s2, %s637
        %p639 = pneg %p108
        %p640 = pneg %p105
        %p641 = scmp.lt.s32.totalorder %s28, 1
        %s642 = scalar_select %p641, %s28, 1
        %s643 = smul.addr %s642, 24
        %s644 = smul.addr %s643, 8
        %s645 = scalar_lea.vmem %s3, %s644
        %p646 = pneg %p134
        %p647 = pneg %p131
        %p648 = pneg %p155
        %p649 = pneg %p152
        %p650 = pneg %p176
        %p651 = pneg %p173
        %p652 = pneg %p197
        %p653 = pneg %p194
        %p654 = pneg %p218
        %p655 = pneg %p215
        %p656 = pneg %p239
        %p657 = pneg %p236
        %p658 = pneg %p260
        %p659 = pneg %p257
        %s660 = sand.u32 %s273, 1
        %s661 = sand.u32 %s273, 1
        %s662 = smul.addr %s661, 256
        %s663 = scalar_lea.vmem [#allocation2], %s662
        %p664 = pneg %p286
        %p665 = pneg %p283
        %p666 = pneg %p307
        %p667 = pneg %p304
        %p668 = pneg %p328
        %p669 = pneg %p325
        %p670 = pneg %p356
        %p671 = pneg %p353
        %s672 = smul.u32 16, %s29
        %p673 = scmp.lt.s32.totalorder %s28, 1
        %s674 = scalar_select %p673, %s28, 1
        %p675 = scmp.lt.s32.totalorder %s672, 31
        %s676 = scalar_select %p675, %s672, 31
        %s677 = smul.addr %s674, 32
        %s678 = sadd.s32 %s676, %s677
        %s679 = smul.addr %s678, 8
        %s680 = scalar_lea.vmem %s13, %s679
        %s681 = smul.u32 16, %s29
        %p682 = scmp.lt.s32.totalorder %s28, 1
        %s683 = scalar_select %p682, %s28, 1
        %p684 = scmp.lt.s32.totalorder %s681, 31
        %s685 = scalar_select %p684, %s681, 31
        %s686 = smul.addr %s683, 32
        %s687 = sadd.s32 %s685, %s686
        %s688 = smul.addr %s687, 8
        %s689 = scalar_lea.vmem %s1, %s688
        %s690 = smul.u32 16, %s29
        %s691 = smul.u32 16, %s29
        %p692 = scmp.lt.s32.totalorder %s28, 1
        %s693 = scalar_select %p692, %s28, 1
        %p694 = scmp.lt.s32.totalorder %s691, 31
        %s695 = scalar_select %p694, %s691, 31
        %s696 = smul.addr %s693, 32
        %s697 = sadd.s32 %s695, %s696
        %s698 = smul.addr %s697, 8
        %s699 = scalar_lea.vmem %s2, %s698
        %s700 = smul.u32 16, %s29
        %p701 = scmp.lt.s32.totalorder %s28, 1
        %s702 = scalar_select %p701, %s28, 1
        %s703 = smul.addr %s702, 24
        %s704 = smul.addr %s703, 8
        %s705 = scalar_lea.vmem %s3, %s704
        %s706 = smul.u32 16, %s29
        %s707 = smul.u32 16, %s29
        %p708 = scmp.lt.s32.totalorder %s28, 1
        %s709 = scalar_select %p708, %s28, 1
        %p710 = scmp.lt.s32.totalorder %s707, 31
        %s711 = scalar_select %p710, %s707, 31
        %s712 = smul.addr %s709, 32
        %s713 = sadd.s32 %s711, %s712
        %s714 = smul.addr %s713, 8
        %s715 = scalar_lea.vmem %s13, %s714
        %s716 = smul.u32 16, %s29
        %v718 = vld [vmem:[%s0] sm:$0x1]
        %v719 = vld [vmem:[%s689] sm:$0xff]
        %v720 = vld [vmem:[%s689 + $0x8] sm:$0xff]
        %v721 = vld [vmem:[%s689 + $0x10] sm:$0xff]
        %v722 = vld [vmem:[%s689 + $0x18] sm:$0xff]
        %v723 = vld [vmem:[%s689 + $0x20] sm:$0xff]
        %v724 = vld [vmem:[%s689 + $0x28] sm:$0xff]
        %v725 = vld [vmem:[%s689 + $0x30] sm:$0xff]
        %v726 = vld [vmem:[%s689 + $0x38] sm:$0xff]
        %v727 = vld [vmem:[%s689 + $0x40] sm:$0xff]
        %v728 = vld [vmem:[%s689 + $0x48] sm:$0xff]
        %v729 = vld [vmem:[%s689 + $0x50] sm:$0xff]
        %v730 = vld [vmem:[%s689 + $0x58] sm:$0xff]
        %v731 = vld [vmem:[%s689 + $0x60] sm:$0xff]
        %v732 = vld [vmem:[%s689 + $0x68] sm:$0xff]
        %v733 = vld [vmem:[%s689 + $0x70] sm:$0xff]
        %v734 = vld [vmem:[%s689 + $0x78] sm:$0xff]
        %v736 = vlaneseq
        %v737 = vshrl.u32 %v736, 7
        %v738 = vsub.s32 0, %v737
        %v739 = vrot.slane %v718, %v738
        %740 = vset.pattern.permute.xlu0 0
        %741 = vperm.xlu0 %740, %v739
        %v742 = vpop.permute.xlu0 %741
        %v744 = vsub.f32 %v719, %v742
        %v745 = vsub.f32 %v720, %v742
        %v746 = vsub.f32 %v721, %v742
        %v747 = vsub.f32 %v722, %v742
        %v748 = vsub.f32 %v723, %v742
        %v749 = vsub.f32 %v724, %v742
        %v750 = vsub.f32 %v725, %v742
        %v751 = vsub.f32 %v726, %v742
        %v752 = vsub.f32 %v727, %v742
        %v753 = vsub.f32 %v728, %v742
        %v754 = vsub.f32 %v729, %v742
        %v755 = vsub.f32 %v730, %v742
        %v756 = vsub.f32 %v731, %v742
        %v757 = vsub.f32 %v732, %v742
        %v758 = vsub.f32 %v733, %v742
        %v759 = vsub.f32 %v734, %v742
        %760 = vset.pattern.permute.xlu0 1
        %761 = vperm.xlu0 %760, %v739
        %v762 = vpop.permute.xlu0 %761
        %v764 = vmul.f32 %v744, %v762
        %v765 = vmul.f32 %v745, %v762
        %v766 = vmul.f32 %v746, %v762
        %v767 = vmul.f32 %v747, %v762
        %v768 = vmul.f32 %v748, %v762
        %v769 = vmul.f32 %v749, %v762
        %v770 = vmul.f32 %v750, %v762
        %v771 = vmul.f32 %v751, %v762
        %v772 = vmul.f32 %v752, %v762
        %v773 = vmul.f32 %v753, %v762
        %v774 = vmul.f32 %v754, %v762
        %v775 = vmul.f32 %v755, %v762
        %v776 = vmul.f32 %v756, %v762
        %v777 = vmul.f32 %v757, %v762
        %v778 = vmul.f32 %v758, %v762
        %v779 = vmul.f32 %v759, %v762
        %v780 = vpack.c.bf16 %v765, %v764
        %v781 = vpack.c.bf16 %v767, %v766
        %v782 = vpack.c.bf16 %v769, %v768
        %v783 = vpack.c.bf16 %v771, %v770
        %v784 = vpack.c.bf16 %v773, %v772
        %v785 = vpack.c.bf16 %v775, %v774
        %v786 = vpack.c.bf16 %v777, %v776
        %v787 = vpack.c.bf16 %v779, %v778
        %v788 = vld [vmem:[%s4] sm:$0xf]
        %v789 = vld [vmem:[%s4 + $0x4] sm:$0xf]
        %v790 = vld [vmem:[%s4 + $0x8] sm:$0xf]
        %v791 = vld [vmem:[%s4 + $0xc] sm:$0xf]
        %v792 = vld [vmem:[%s5] sm:$0x1]
        %v794 = vlaneseq
        %v795 = vshrl.u32 %v794, 7
        %v796 = vsub.s32 0, %v795
        %v797 = vrot.slane %v792, %v796
        %v803 = vunpack.c.l.b16 %v788
        %v804 = vunpack.c.l.b16 %v789
        %v805 = vunpack.c.l.b16 %v790
        %v806 = vunpack.c.l.b16 %v791
        %v807 = vpack.c.b16 %v804, %v803
        %v808 = vpack.c.b16 %v806, %v805
        %vm811 = vcmask 261120
        %v813 = vsel %vm811, %v780, 0
        %v816 = vsel %vm811, %v781, 0
        %v819 = vsel %vm811, %v782, 0
        %v822 = vsel %vm811, %v783, 0
        %v825 = vsel %vm811, %v784, 0
        %v828 = vsel %vm811, %v785, 0
        %v831 = vsel %vm811, %v786, 0
        %v834 = vsel %vm811, %v787, 0
        %836 = vmatprep.subr.bf16.mxu0 0
        %837 = vmatpush1.bf16.msra.mxu0 0
        %838 = vmatprep.subr.bf16.mxu0 0
        %839 = vmatpush1.bf16.msra.mxu0 0
        %840 = vmatprep.subr.bf16.mxu0 0
        %841 = vmatpush1.bf16.msra.mxu0 0
        %842 = vmatprep.subr.bf16.mxu0 0
        %843 = vmatpush1.bf16.msra.mxu0 0
        %844 = vmatprep.subr.bf16.mxu0 0
        %845 = vmatpush1.bf16.msra.mxu0 0
        %846 = vmatprep.subr.bf16.mxu0 0
        %847 = vmatpush1.bf16.msra.mxu0 0
        %848 = vmatprep.subr.bf16.mxu0 0
        %849 = vmatpush1.bf16.msra.mxu0 %v808
        %850 = vmatprep.subr.bf16.mxu0 0
        %851 = vmatpush1.bf16.msra.mxu0 %v807
        %852 = vmatprep.subr.bf16.mxu0 0
        %853 = vmatpush2.bf16.msra.mxu0 0
        %854 = vmatprep.subr.bf16.mxu0 0
        %855 = vmatpush2.bf16.msra.mxu0 0
        %856 = vmatprep.subr.bf16.mxu0 0
        %857 = vmatpush2.bf16.msra.mxu0 0
        %858 = vmatprep.subr.bf16.mxu0 0
        %859 = vmatpush2.bf16.msra.mxu0 0
        %860 = vmatprep.subr.bf16.mxu0 0
        %861 = vmatpush2.bf16.msra.mxu0 0
        %862 = vmatprep.subr.bf16.mxu0 0
        %863 = vmatpush2.bf16.msra.mxu0 0
        %864 = vmatprep.subr.bf16.mxu0 0
        %865 = vmatpush2.bf16.msra.mxu0 0
        %866 = vmatprep.subr.bf16.mxu0 0
        %867 = vmatpush2.bf16.msra.mxu0 0
        %868 = vmatprep.mubr.bf16.mxu0 0
        %869 = vmatmul.mubr.bf16.gmra.mxu0 %v813
        %v870 = vpop.f32.mrf.mxu0
        %v871 = vadd.f32 %v797, %v870
        %v872 = vpop.f32.mrf.mxu0
        %v873 = vpop.f32.mrf.mxu0
        %v874 = vadd.f32 %v797, %v873
        %v875 = vpop.f32.mrf.mxu0
        %876 = vmatprep.mubr.bf16.mxu0 0
        %877 = vmatmul.mubr.bf16.gmra.mxu0 %v816
        %v878 = vpop.f32.mrf.mxu0
        %v879 = vadd.f32 %v797, %v878
        %v880 = vpop.f32.mrf.mxu0
        %v881 = vpop.f32.mrf.mxu0
        %v882 = vadd.f32 %v797, %v881
        %v883 = vpop.f32.mrf.mxu0
        %884 = vmatprep.mubr.bf16.mxu0 0
        %885 = vmatmul.mubr.bf16.gmra.mxu0 %v819
        %v886 = vpop.f32.mrf.mxu0
        %v887 = vadd.f32 %v797, %v886
        %v888 = vpop.f32.mrf.mxu0
        %v889 = vpop.f32.mrf.mxu0
        %v890 = vadd.f32 %v797, %v889
        %v891 = vpop.f32.mrf.mxu0
        %892 = vmatprep.mubr.bf16.mxu0 0
        %893 = vmatmul.mubr.bf16.gmra.mxu0 %v822
        %v894 = vpop.f32.mrf.mxu0
        %v895 = vadd.f32 %v797, %v894
        %v896 = vpop.f32.mrf.mxu0
        %v897 = vpop.f32.mrf.mxu0
        %v898 = vadd.f32 %v797, %v897
        %v899 = vpop.f32.mrf.mxu0
        %900 = vmatprep.mubr.bf16.mxu0 0
        %901 = vmatmul.mubr.bf16.gmra.mxu0 %v825
        %v902 = vpop.f32.mrf.mxu0
        %v903 = vadd.f32 %v797, %v902
        %v904 = vpop.f32.mrf.mxu0
        %v905 = vpop.f32.mrf.mxu0
        %v906 = vadd.f32 %v797, %v905
        %v907 = vpop.f32.mrf.mxu0
        %908 = vmatprep.mubr.bf16.mxu0 0
        %909 = vmatmul.mubr.bf16.gmra.mxu0 %v828
        %v910 = vpop.f32.mrf.mxu0
        %v911 = vadd.f32 %v797, %v910
        %v912 = vpop.f32.mrf.mxu0
        %v913 = vpop.f32.mrf.mxu0
        %v914 = vadd.f32 %v797, %v913
        %v915 = vpop.f32.mrf.mxu0
        %916 = vmatprep.mubr.bf16.mxu0 0
        %917 = vmatmul.mubr.bf16.gmra.mxu0 %v831
        %v918 = vpop.f32.mrf.mxu0
        %v919 = vadd.f32 %v797, %v918
        %v920 = vpop.f32.mrf.mxu0
        %v921 = vpop.f32.mrf.mxu0
        %v922 = vadd.f32 %v797, %v921
        %v923 = vpop.f32.mrf.mxu0
        %924 = vmatprep.mubr.bf16.mxu0 0
        %925 = vmatmul.mubr.bf16.gmra.mxu0 %v834
        %v926 = vpop.f32.mrf.mxu0
        %v927 = vadd.f32 %v797, %v926
        %v928 = vpop.f32.mrf.mxu0
        %v929 = vpop.f32.mrf.mxu0
        %v930 = vadd.f32 %v797, %v929
        %v931 = vpop.f32.mrf.mxu0
        %932 = vdwg.mxu0
        %v933 = vld [vmem:[%s705] sm:$0xff]
        %v934 = vld [vmem:[%s705 + $0x8] sm:$0xff]
        %v935 = vld [vmem:[%s705 + $0x10] sm:$0xff]
        %v936 = vld [vmem:[%s705 + $0x18] sm:$0xff]
        %v937 = vld [vmem:[%s705 + $0x20] sm:$0xff]
        %v938 = vld [vmem:[%s705 + $0x28] sm:$0xff]
        %v939 = vld [vmem:[%s705 + $0x30] sm:$0xff]
        %v940 = vld [vmem:[%s705 + $0x38] sm:$0xff]
        %v941 = vld [vmem:[%s705 + $0x40] sm:$0xff]
        %v942 = vld [vmem:[%s705 + $0x48] sm:$0xff]
        %v943 = vld [vmem:[%s705 + $0x50] sm:$0xff]
        %v944 = vld [vmem:[%s705 + $0x58] sm:$0xff]
        %v945 = vld [vmem:[%s705 + $0x60] sm:$0xff]
        %v946 = vld [vmem:[%s705 + $0x68] sm:$0xff]
        %v947 = vld [vmem:[%s705 + $0x70] sm:$0xff]
        %v948 = vld [vmem:[%s705 + $0x78] sm:$0xff]
        %v949 = vld [vmem:[%s705 + $0x80] sm:$0xff]
        %v950 = vld [vmem:[%s705 + $0x88] sm:$0xff]
        %v951 = vld [vmem:[%s705 + $0x90] sm:$0xff]
        %v952 = vld [vmem:[%s705 + $0x98] sm:$0xff]
        %v953 = vld [vmem:[%s705 + $0xa0] sm:$0xff]
        %v954 = vld [vmem:[%s705 + $0xa8] sm:$0xff]
        %v955 = vld [vmem:[%s705 + $0xb0] sm:$0xff]
        %v956 = vld [vmem:[%s705 + $0xb8] sm:$0xff]
        %v957 = vpack.c.bf16 %v936, %v933
        %v958 = vpack.c.bf16 %v937, %v934
        %v959 = vpack.c.bf16 %v938, %v935
        %v960 = vpack.c.bf16 %v942, %v939
        %v961 = vpack.c.bf16 %v943, %v940
        %v962 = vpack.c.bf16 %v944, %v941
        %v963 = vpack.c.bf16 %v948, %v945
        %v964 = vpack.c.bf16 %v949, %v946
        %v965 = vpack.c.bf16 %v950, %v947
        %v966 = vpack.c.bf16 %v954, %v951
        %v967 = vpack.c.bf16 %v955, %v952
        %v968 = vpack.c.bf16 %v956, %v953
        %v969 = vld [vmem:[%s6] sm:$0xf]
        %v970 = vld [vmem:[%s6 + $0x4] sm:$0xf]
        %v971 = vld [vmem:[%s6 + $0x8] sm:$0xf]
        %v972 = vld [vmem:[%s6 + $0xc] sm:$0xf]
        %v973 = vld [vmem:[%s6 + $0x10] sm:$0xf]
        %v974 = vld [vmem:[%s6 + $0x14] sm:$0xf]
        %v975 = vld [vmem:[%s6 + $0x18] sm:$0xf]
        %v976 = vld [vmem:[%s6 + $0x1c] sm:$0xf]
        %v977 = vld [vmem:[%s6 + $0x20] sm:$0xf]
        %v978 = vld [vmem:[%s6 + $0x24] sm:$0xf]
        %v979 = vld [vmem:[%s6 + $0x28] sm:$0xf]
        %v980 = vld [vmem:[%s6 + $0x2c] sm:$0xf]
        %v981 = vld [vmem:[%s6 + $0x30] sm:$0xf]
        %v982 = vld [vmem:[%s6 + $0x34] sm:$0xf]
        %v983 = vld [vmem:[%s6 + $0x38] sm:$0xf]
        %v984 = vld [vmem:[%s6 + $0x3c] sm:$0xf]
        %v985 = vld [vmem:[%s6 + $0x40] sm:$0xf]
        %v986 = vld [vmem:[%s6 + $0x44] sm:$0xf]
        %v987 = vld [vmem:[%s6 + $0x48] sm:$0xf]
        %v988 = vld [vmem:[%s6 + $0x4c] sm:$0xf]
        %v989 = vld [vmem:[%s6 + $0x50] sm:$0xf]
        %v990 = vld [vmem:[%s6 + $0x54] sm:$0xf]
        %v991 = vld [vmem:[%s6 + $0x58] sm:$0xf]
        %v992 = vld [vmem:[%s6 + $0x5c] sm:$0xf]
        %v993 = vld [vmem:[%s6 + $0x60] sm:$0xf]
        %v994 = vld [vmem:[%s6 + $0x64] sm:$0xf]
        %v995 = vld [vmem:[%s6 + $0x68] sm:$0xf]
        %v996 = vld [vmem:[%s6 + $0x6c] sm:$0xf]
        %v997 = vld [vmem:[%s6 + $0x70] sm:$0xf]
        %v998 = vld [vmem:[%s6 + $0x74] sm:$0xf]
        %v999 = vld [vmem:[%s6 + $0x78] sm:$0xf]
        %v1000 = vld [vmem:[%s6 + $0x7c] sm:$0xf]
        %v1001 = vld [vmem:[%s6 + $0x80] sm:$0xf]
        %v1002 = vld [vmem:[%s6 + $0x84] sm:$0xf]
        %v1003 = vld [vmem:[%s6 + $0x88] sm:$0xf]
        %v1004 = vld [vmem:[%s6 + $0x8c] sm:$0xf]
        %v1005 = vld [vmem:[%s7] sm:$0x1]
        %v1007 = vlaneseq
        %v1008 = vshrl.u32 %v1007, 7
        %v1009 = vsub.s32 0, %v1008
        %v1010 = vrot.slane %v1005, %v1009
        %v1048 = vunpack.c.l.b16 %v969
        %v1049 = vunpack.c.l.b16 %v970
        %v1050 = vunpack.c.l.b16 %v971
        %v1051 = vunpack.c.l.b16 %v972
        %v1052 = vunpack.c.l.b16 %v973
        %v1053 = vunpack.c.l.b16 %v974
        %v1054 = vunpack.c.l.b16 %v975
        %v1055 = vunpack.c.l.b16 %v976
        %v1056 = vunpack.c.l.b16 %v977
        %v1057 = vunpack.c.l.b16 %v978
        %v1058 = vunpack.c.l.b16 %v979
        %v1059 = vunpack.c.l.b16 %v980
        %v1060 = vunpack.c.l.b16 %v981
        %v1061 = vunpack.c.l.b16 %v982
        %v1062 = vunpack.c.l.b16 %v983
        %v1063 = vunpack.c.l.b16 %v984
        %v1064 = vunpack.c.l.b16 %v985
        %v1065 = vunpack.c.l.b16 %v986
        %v1066 = vunpack.c.l.b16 %v987
        %v1067 = vunpack.c.l.b16 %v988
        %v1068 = vunpack.c.l.b16 %v989
        %v1069 = vunpack.c.l.b16 %v990
        %v1070 = vunpack.c.l.b16 %v991
        %v1071 = vunpack.c.l.b16 %v992
        %v1072 = vunpack.c.l.b16 %v993
        %v1073 = vunpack.c.l.b16 %v994
        %v1074 = vunpack.c.l.b16 %v995
        %v1075 = vunpack.c.l.b16 %v996
        %v1076 = vunpack.c.l.b16 %v997
        %v1077 = vunpack.c.l.b16 %v998
        %v1078 = vunpack.c.l.b16 %v999
        %v1079 = vunpack.c.l.b16 %v1000
        %v1080 = vunpack.c.l.b16 %v1001
        %v1081 = vunpack.c.l.b16 %v1002
        %v1082 = vunpack.c.l.b16 %v1003
        %v1083 = vunpack.c.l.b16 %v1004
        %v1084 = vpack.c.b16 %v1049, %v1048
        %v1085 = vpack.c.b16 %v1051, %v1050
        %v1086 = vpack.c.b16 %v1053, %v1052
        %v1087 = vpack.c.b16 %v1055, %v1054
        %v1088 = vpack.c.b16 %v1057, %v1056
        %v1089 = vpack.c.b16 %v1059, %v1058
        %v1090 = vpack.c.b16 %v1061, %v1060
        %v1091 = vpack.c.b16 %v1063, %v1062
        %v1092 = vpack.c.b16 %v1065, %v1064
        %v1093 = vpack.c.b16 %v1067, %v1066
        %v1094 = vpack.c.b16 %v1069, %v1068
        %v1095 = vpack.c.b16 %v1071, %v1070
        %v1096 = vpack.c.b16 %v1073, %v1072
        %v1097 = vpack.c.b16 %v1075, %v1074
        %v1098 = vpack.c.b16 %v1077, %v1076
        %v1099 = vpack.c.b16 %v1079, %v1078
        %v1100 = vpack.c.b16 %v1081, %v1080
        %v1101 = vpack.c.b16 %v1083, %v1082
        %v1121 = vsel %vm811, %v959, 0
        %v1124 = vsel %vm811, %v962, 0
        %v1127 = vsel %vm811, %v965, 0
        %v1130 = vsel %vm811, %v968, 0
        %1132 = vmatprep.subr.bf16.mxu0 0
        %1133 = vmatpush1.bf16.msra.mxu0 %v1091
        %1134 = vmatprep.subr.bf16.mxu0 0
        %1135 = vmatpush1.bf16.msra.mxu0 %v1090
        %1136 = vmatprep.subr.bf16.mxu0 0
        %1137 = vmatpush1.bf16.msra.mxu0 %v1089
        %1138 = vmatprep.subr.bf16.mxu0 0
        %1139 = vmatpush1.bf16.msra.mxu0 %v1088
        %1140 = vmatprep.subr.bf16.mxu0 0
        %1141 = vmatpush1.bf16.msra.mxu0 %v1087
        %1142 = vmatprep.subr.bf16.mxu0 0
        %1143 = vmatpush1.bf16.msra.mxu0 %v1086
        %1144 = vmatprep.subr.bf16.mxu0 0
        %1145 = vmatpush1.bf16.msra.mxu0 %v1085
        %1146 = vmatprep.subr.bf16.mxu0 0
        %1147 = vmatpush1.bf16.msra.mxu0 %v1084
        %1148 = vmatprep.subr.bf16.mxu0 0
        %1149 = vmatpush2.bf16.msra.mxu0 %v1099
        %1150 = vmatprep.subr.bf16.mxu0 0
        %1151 = vmatpush2.bf16.msra.mxu0 %v1098
        %1152 = vmatprep.subr.bf16.mxu0 0
        %1153 = vmatpush2.bf16.msra.mxu0 %v1097
        %1154 = vmatprep.subr.bf16.mxu0 0
        %1155 = vmatpush2.bf16.msra.mxu0 %v1096
        %1156 = vmatprep.subr.bf16.mxu0 0
        %1157 = vmatpush2.bf16.msra.mxu0 %v1095
        %1158 = vmatprep.subr.bf16.mxu0 0
        %1159 = vmatpush2.bf16.msra.mxu0 %v1094
        %1160 = vmatprep.subr.bf16.mxu0 0
        %1161 = vmatpush2.bf16.msra.mxu0 %v1093
        %1162 = vmatprep.subr.bf16.mxu0 0
        %1163 = vmatpush2.bf16.msra.mxu0 %v1092
        %1164 = vmatprep.mubr.bf16.mxu0 %v958
        %1165 = vmatmul.mubr.bf16.gmra.mxu0 %v957
        %v1166 = vpop.f32.mrf.mxu0
        %v1167 = vadd.f32 %v1010, %v1166
        %v1168 = vpop.f32.mrf.mxu0
        %v1169 = vpop.f32.mrf.mxu0
        %v1170 = vadd.f32 %v1010, %v1169
        %v1171 = vpop.f32.mrf.mxu0
        %1172 = vmatprep.mubr.bf16.mxu0 %v961
        %1173 = vmatmul.mubr.bf16.gmra.mxu0 %v960
        %v1174 = vpop.f32.mrf.mxu0
        %v1175 = vadd.f32 %v1010, %v1174
        %v1176 = vpop.f32.mrf.mxu0
        %v1177 = vpop.f32.mrf.mxu0
        %v1178 = vadd.f32 %v1010, %v1177
        %v1179 = vpop.f32.mrf.mxu0
        %1180 = vmatprep.mubr.bf16.mxu0 %v964
        %1181 = vmatmul.mubr.bf16.gmra.mxu0 %v963
        %v1182 = vpop.f32.mrf.mxu0
        %v1183 = vadd.f32 %v1010, %v1182
        %v1184 = vpop.f32.mrf.mxu0
        %v1185 = vpop.f32.mrf.mxu0
        %v1186 = vadd.f32 %v1010, %v1185
        %v1187 = vpop.f32.mrf.mxu0
        %1188 = vmatprep.mubr.bf16.mxu0 %v967
        %1189 = vmatmul.mubr.bf16.gmra.mxu0 %v966
        %v1190 = vpop.f32.mrf.mxu0
        %v1191 = vadd.f32 %v1010, %v1190
        %v1192 = vpop.f32.mrf.mxu0
        %v1193 = vpop.f32.mrf.mxu0
        %v1194 = vadd.f32 %v1010, %v1193
        %v1195 = vpop.f32.mrf.mxu0
        %1196 = vdwg.mxu0
        %1197 = vmatprep.subr.bf16.mxu0 0
        %1198 = vmatpush1.bf16.msra.mxu0 0
        %1199 = vmatprep.subr.bf16.mxu0 0
        %1200 = vmatpush1.bf16.msra.mxu0 0
        %1201 = vmatprep.subr.bf16.mxu0 0
        %1202 = vmatpush1.bf16.msra.mxu0 0
        %1203 = vmatprep.subr.bf16.mxu0 0
        %1204 = vmatpush1.bf16.msra.mxu0 0
        %1205 = vmatprep.subr.bf16.mxu0 0
        %1206 = vmatpush1.bf16.msra.mxu0 0
        %1207 = vmatprep.subr.bf16.mxu0 0
        %1208 = vmatpush1.bf16.msra.mxu0 0
        %1209 = vmatprep.subr.bf16.mxu0 0
        %1210 = vmatpush1.bf16.msra.mxu0 %v1101
        %1211 = vmatprep.subr.bf16.mxu0 0
        %1212 = vmatpush1.bf16.msra.mxu0 %v1100
        %1213 = vmatprep.subr.bf16.mxu0 0
        %1214 = vmatpush2.bf16.msra.mxu0 0
        %1215 = vmatprep.subr.bf16.mxu0 0
        %1216 = vmatpush2.bf16.msra.mxu0 0
        %1217 = vmatprep.subr.bf16.mxu0 0
        %1218 = vmatpush2.bf16.msra.mxu0 0
        %1219 = vmatprep.subr.bf16.mxu0 0
        %1220 = vmatpush2.bf16.msra.mxu0 0
        %1221 = vmatprep.subr.bf16.mxu0 0
        %1222 = vmatpush2.bf16.msra.mxu0 0
        %1223 = vmatprep.subr.bf16.mxu0 0
        %1224 = vmatpush2.bf16.msra.mxu0 0
        %1225 = vmatprep.subr.bf16.mxu0 0
        %1226 = vmatpush2.bf16.msra.mxu0 0
        %1227 = vmatprep.subr.bf16.mxu0 0
        %1228 = vmatpush2.bf16.msra.mxu0 0
        %1229 = vmatprep.mubr.bf16.mxu0 0
        %1230 = vmatmul.mubr.bf16.gmra.mxu0 %v1121
        %v1231 = vpop.f32.mrf.mxu0
        %v1232 = vadd.f32 %v1167, %v1231
        %v1233 = vpop.f32.mrf.mxu0
        %v1234 = vpop.f32.mrf.mxu0
        %v1235 = vadd.f32 %v1170, %v1234
        %v1236 = vpop.f32.mrf.mxu0
        %1237 = vmatprep.mubr.bf16.mxu0 0
        %1238 = vmatmul.mubr.bf16.gmra.mxu0 %v1124
        %v1239 = vpop.f32.mrf.mxu0
        %v1240 = vadd.f32 %v1175, %v1239
        %v1241 = vpop.f32.mrf.mxu0
        %v1242 = vpop.f32.mrf.mxu0
        %v1243 = vadd.f32 %v1178, %v1242
        %v1244 = vpop.f32.mrf.mxu0
        %1245 = vmatprep.mubr.bf16.mxu0 0
        %1246 = vmatmul.mubr.bf16.gmra.mxu0 %v1127
        %v1247 = vpop.f32.mrf.mxu0
        %v1248 = vadd.f32 %v1183, %v1247
        %v1249 = vpop.f32.mrf.mxu0
        %v1250 = vpop.f32.mrf.mxu0
        %v1251 = vadd.f32 %v1186, %v1250
        %v1252 = vpop.f32.mrf.mxu0
        %1253 = vmatprep.mubr.bf16.mxu0 0
        %1254 = vmatmul.mubr.bf16.gmra.mxu0 %v1130
        %v1255 = vpop.f32.mrf.mxu0
        %v1256 = vadd.f32 %v1191, %v1255
        %v1257 = vpop.f32.mrf.mxu0
        %v1258 = vpop.f32.mrf.mxu0
        %v1259 = vadd.f32 %v1194, %v1258
        %v1260 = vpop.f32.mrf.mxu0
        %1261 = vdwg.mxu0
        %v1262 = vld [vmem:[%s8] sm:$0xf]
        %v1263 = vld [vmem:[%s8 + $0x4] sm:$0xf]
        %v1264 = vld [vmem:[%s8 + $0x8] sm:$0xf]
        %v1265 = vld [vmem:[%s8 + $0xc] sm:$0xf]
        %v1266 = vld [vmem:[%s8 + $0x10] sm:$0xf]
        %v1267 = vld [vmem:[%s8 + $0x14] sm:$0xf]
        %v1268 = vld [vmem:[%s8 + $0x18] sm:$0xf]
        %v1269 = vld [vmem:[%s8 + $0x1c] sm:$0xf]
        %v1270 = vld [vmem:[%s8 + $0x20] sm:$0xf]
        %v1271 = vld [vmem:[%s8 + $0x24] sm:$0xf]
        %v1272 = vld [vmem:[%s8 + $0x28] sm:$0xf]
        %v1273 = vld [vmem:[%s8 + $0x2c] sm:$0xf]
        %v1274 = vld [vmem:[%s8 + $0x30] sm:$0xf]
        %v1275 = vld [vmem:[%s8 + $0x34] sm:$0xf]
        %v1276 = vld [vmem:[%s8 + $0x38] sm:$0xf]
        %v1277 = vld [vmem:[%s8 + $0x3c] sm:$0xf]
        %v1278 = vld [vmem:[%s8 + $0x40] sm:$0xf]
        %v1279 = vld [vmem:[%s8 + $0x44] sm:$0xf]
        %v1280 = vld [vmem:[%s8 + $0x48] sm:$0xf]
        %v1281 = vld [vmem:[%s8 + $0x4c] sm:$0xf]
        %v1282 = vld [vmem:[%s8 + $0x50] sm:$0xf]
        %v1283 = vld [vmem:[%s8 + $0x54] sm:$0xf]
        %v1284 = vld [vmem:[%s8 + $0x58] sm:$0xf]
        %v1285 = vld [vmem:[%s8 + $0x5c] sm:$0xf]
        %v1286 = vld [vmem:[%s8 + $0x60] sm:$0xf]
        %v1287 = vld [vmem:[%s8 + $0x64] sm:$0xf]
        %v1288 = vld [vmem:[%s8 + $0x68] sm:$0xf]
        %v1289 = vld [vmem:[%s8 + $0x6c] sm:$0xf]
        %v1290 = vld [vmem:[%s8 + $0x70] sm:$0xf]
        %v1291 = vld [vmem:[%s8 + $0x74] sm:$0xf]
        %v1292 = vld [vmem:[%s8 + $0x78] sm:$0xf]
        %v1293 = vld [vmem:[%s8 + $0x7c] sm:$0xf]
        %v1294 = vld [vmem:[%s8 + $0x80] sm:$0xf]
        %v1295 = vld [vmem:[%s8 + $0x84] sm:$0xf]
        %v1296 = vld [vmem:[%s8 + $0x88] sm:$0xf]
        %v1297 = vld [vmem:[%s8 + $0x8c] sm:$0xf]
        %v1298 = vld [vmem:[%s9] sm:$0x1]
        %v1300 = vlaneseq
        %v1301 = vshrl.u32 %v1300, 7
        %v1302 = vsub.s32 0, %v1301
        %v1303 = vrot.slane %v1298, %v1302
        %v1341 = vunpack.c.l.b16 %v1262
        %v1342 = vunpack.c.l.b16 %v1263
        %v1343 = vunpack.c.l.b16 %v1264
        %v1344 = vunpack.c.l.b16 %v1265
        %v1345 = vunpack.c.l.b16 %v1266
        %v1346 = vunpack.c.l.b16 %v1267
        %v1347 = vunpack.c.l.b16 %v1268
        %v1348 = vunpack.c.l.b16 %v1269
        %v1349 = vunpack.c.l.b16 %v1270
        %v1350 = vunpack.c.l.b16 %v1271
        %v1351 = vunpack.c.l.b16 %v1272
        %v1352 = vunpack.c.l.b16 %v1273
        %v1353 = vunpack.c.l.b16 %v1274
        %v1354 = vunpack.c.l.b16 %v1275
        %v1355 = vunpack.c.l.b16 %v1276
        %v1356 = vunpack.c.l.b16 %v1277
        %v1357 = vunpack.c.l.b16 %v1278
        %v1358 = vunpack.c.l.b16 %v1279
        %v1359 = vunpack.c.l.b16 %v1280
        %v1360 = vunpack.c.l.b16 %v1281
        %v1361 = vunpack.c.l.b16 %v1282
        %v1362 = vunpack.c.l.b16 %v1283
        %v1363 = vunpack.c.l.b16 %v1284
        %v1364 = vunpack.c.l.b16 %v1285
        %v1365 = vunpack.c.l.b16 %v1286
        %v1366 = vunpack.c.l.b16 %v1287
        %v1367 = vunpack.c.l.b16 %v1288
        %v1368 = vunpack.c.l.b16 %v1289
        %v1369 = vunpack.c.l.b16 %v1290
        %v1370 = vunpack.c.l.b16 %v1291
        %v1371 = vunpack.c.l.b16 %v1292
        %v1372 = vunpack.c.l.b16 %v1293
        %v1373 = vunpack.c.l.b16 %v1294
        %v1374 = vunpack.c.l.b16 %v1295
        %v1375 = vunpack.c.l.b16 %v1296
        %v1376 = vunpack.c.l.b16 %v1297
        %v1377 = vpack.c.b16 %v1342, %v1341
        %v1378 = vpack.c.b16 %v1344, %v1343
        %v1379 = vpack.c.b16 %v1346, %v1345
        %v1380 = vpack.c.b16 %v1348, %v1347
        %v1381 = vpack.c.b16 %v1350, %v1349
        %v1382 = vpack.c.b16 %v1352, %v1351
        %v1383 = vpack.c.b16 %v1354, %v1353
        %v1384 = vpack.c.b16 %v1356, %v1355
        %v1385 = vpack.c.b16 %v1358, %v1357
        %v1386 = vpack.c.b16 %v1360, %v1359
        %v1387 = vpack.c.b16 %v1362, %v1361
        %v1388 = vpack.c.b16 %v1364, %v1363
        %v1389 = vpack.c.b16 %v1366, %v1365
        %v1390 = vpack.c.b16 %v1368, %v1367
        %v1391 = vpack.c.b16 %v1370, %v1369
        %v1392 = vpack.c.b16 %v1372, %v1371
        %v1393 = vpack.c.b16 %v1374, %v1373
        %v1394 = vpack.c.b16 %v1376, %v1375
        %1413 = vmatprep.subr.bf16.mxu0 0
        %1414 = vmatpush1.bf16.msra.mxu0 %v1384
        %1415 = vmatprep.subr.bf16.mxu0 0
        %1416 = vmatpush1.bf16.msra.mxu0 %v1383
        %1417 = vmatprep.subr.bf16.mxu0 0
        %1418 = vmatpush1.bf16.msra.mxu0 %v1382
        %1419 = vmatprep.subr.bf16.mxu0 0
        %1420 = vmatpush1.bf16.msra.mxu0 %v1381
        %1421 = vmatprep.subr.bf16.mxu0 0
        %1422 = vmatpush1.bf16.msra.mxu0 %v1380
        %1423 = vmatprep.subr.bf16.mxu0 0
        %1424 = vmatpush1.bf16.msra.mxu0 %v1379
        %1425 = vmatprep.subr.bf16.mxu0 0
        %1426 = vmatpush1.bf16.msra.mxu0 %v1378
        %1427 = vmatprep.subr.bf16.mxu0 0
        %1428 = vmatpush1.bf16.msra.mxu0 %v1377
        %1429 = vmatprep.subr.bf16.mxu0 0
        %1430 = vmatpush2.bf16.msra.mxu0 %v1392
        %1431 = vmatprep.subr.bf16.mxu0 0
        %1432 = vmatpush2.bf16.msra.mxu0 %v1391
        %1433 = vmatprep.subr.bf16.mxu0 0
        %1434 = vmatpush2.bf16.msra.mxu0 %v1390
        %1435 = vmatprep.subr.bf16.mxu0 0
        %1436 = vmatpush2.bf16.msra.mxu0 %v1389
        %1437 = vmatprep.subr.bf16.mxu0 0
        %1438 = vmatpush2.bf16.msra.mxu0 %v1388
        %1439 = vmatprep.subr.bf16.mxu0 0
        %1440 = vmatpush2.bf16.msra.mxu0 %v1387
        %1441 = vmatprep.subr.bf16.mxu0 0
        %1442 = vmatpush2.bf16.msra.mxu0 %v1386
        %1443 = vmatprep.subr.bf16.mxu0 0
        %1444 = vmatpush2.bf16.msra.mxu0 %v1385
        %1445 = vmatprep.mubr.bf16.mxu0 %v958
        %1446 = vmatmul.mubr.bf16.gmra.mxu0 %v957
        %v1447 = vpop.f32.mrf.mxu0
        %v1448 = vadd.f32 %v1303, %v1447
        %v1449 = vpop.f32.mrf.mxu0
        %v1450 = vpop.f32.mrf.mxu0
        %v1451 = vadd.f32 %v1303, %v1450
        %v1452 = vpop.f32.mrf.mxu0
        %1453 = vmatprep.mubr.bf16.mxu0 %v961
        %1454 = vmatmul.mubr.bf16.gmra.mxu0 %v960
        %v1455 = vpop.f32.mrf.mxu0
        %v1456 = vadd.f32 %v1303, %v1455
        %v1457 = vpop.f32.mrf.mxu0
        %v1458 = vpop.f32.mrf.mxu0
        %v1459 = vadd.f32 %v1303, %v1458
        %v1460 = vpop.f32.mrf.mxu0
        %1461 = vmatprep.mubr.bf16.mxu0 %v964
        %1462 = vmatmul.mubr.bf16.gmra.mxu0 %v963
        %v1463 = vpop.f32.mrf.mxu0
        %v1464 = vadd.f32 %v1303, %v1463
        %v1465 = vpop.f32.mrf.mxu0
        %v1466 = vpop.f32.mrf.mxu0
        %v1467 = vadd.f32 %v1303, %v1466
        %v1468 = vpop.f32.mrf.mxu0
        %1469 = vmatprep.mubr.bf16.mxu0 %v967
        %1470 = vmatmul.mubr.bf16.gmra.mxu0 %v966
        %v1471 = vpop.f32.mrf.mxu0
        %v1472 = vadd.f32 %v1303, %v1471
        %v1473 = vpop.f32.mrf.mxu0
        %v1474 = vpop.f32.mrf.mxu0
        %v1475 = vadd.f32 %v1303, %v1474
        %v1476 = vpop.f32.mrf.mxu0
        %1477 = vdwg.mxu0
        %1478 = vmatprep.subr.bf16.mxu0 0
        %1479 = vmatpush1.bf16.msra.mxu0 0
        %1480 = vmatprep.subr.bf16.mxu0 0
        %1481 = vmatpush1.bf16.msra.mxu0 0
        %1482 = vmatprep.subr.bf16.mxu0 0
        %1483 = vmatpush1.bf16.msra.mxu0 0
        %1484 = vmatprep.subr.bf16.mxu0 0
        %1485 = vmatpush1.bf16.msra.mxu0 0
        %1486 = vmatprep.subr.bf16.mxu0 0
        %1487 = vmatpush1.bf16.msra.mxu0 0
        %1488 = vmatprep.subr.bf16.mxu0 0
        %1489 = vmatpush1.bf16.msra.mxu0 0
        %1490 = vmatprep.subr.bf16.mxu0 0
        %1491 = vmatpush1.bf16.msra.mxu0 %v1394
        %1492 = vmatprep.subr.bf16.mxu0 0
        %1493 = vmatpush1.bf16.msra.mxu0 %v1393
        %1494 = vmatprep.subr.bf16.mxu0 0
        %1495 = vmatpush2.bf16.msra.mxu0 0
        %1496 = vmatprep.subr.bf16.mxu0 0
        %1497 = vmatpush2.bf16.msra.mxu0 0
        %1498 = vmatprep.subr.bf16.mxu0 0
        %1499 = vmatpush2.bf16.msra.mxu0 0
        %1500 = vmatprep.subr.bf16.mxu0 0
        %1501 = vmatpush2.bf16.msra.mxu0 0
        %1502 = vmatprep.subr.bf16.mxu0 0
        %1503 = vmatpush2.bf16.msra.mxu0 0
        %1504 = vmatprep.subr.bf16.mxu0 0
        %1505 = vmatpush2.bf16.msra.mxu0 0
        %1506 = vmatprep.subr.bf16.mxu0 0
        %1507 = vmatpush2.bf16.msra.mxu0 0
        %1508 = vmatprep.subr.bf16.mxu0 0
        %1509 = vmatpush2.bf16.msra.mxu0 0
        %1510 = vmatprep.mubr.bf16.mxu0 0
        %1511 = vmatmul.mubr.bf16.gmra.mxu0 %v1121
        %v1512 = vpop.f32.mrf.mxu0
        %v1513 = vadd.f32 %v1448, %v1512
        %v1514 = vpop.f32.mrf.mxu0
        %v1515 = vpop.f32.mrf.mxu0
        %v1516 = vadd.f32 %v1451, %v1515
        %v1517 = vpop.f32.mrf.mxu0
        %1518 = vmatprep.mubr.bf16.mxu0 0
        %1519 = vmatmul.mubr.bf16.gmra.mxu0 %v1124
        %v1520 = vpop.f32.mrf.mxu0
        %v1521 = vadd.f32 %v1456, %v1520
        %v1522 = vpop.f32.mrf.mxu0
        %v1523 = vpop.f32.mrf.mxu0
        %v1524 = vadd.f32 %v1459, %v1523
        %v1525 = vpop.f32.mrf.mxu0
        %1526 = vmatprep.mubr.bf16.mxu0 0
        %1527 = vmatmul.mubr.bf16.gmra.mxu0 %v1127
        %v1528 = vpop.f32.mrf.mxu0
        %v1529 = vadd.f32 %v1464, %v1528
        %v1530 = vpop.f32.mrf.mxu0
        %v1531 = vpop.f32.mrf.mxu0
        %v1532 = vadd.f32 %v1467, %v1531
        %v1533 = vpop.f32.mrf.mxu0
        %1534 = vmatprep.mubr.bf16.mxu0 0
        %1535 = vmatmul.mubr.bf16.gmra.mxu0 %v1130
        %v1536 = vpop.f32.mrf.mxu0
        %v1537 = vadd.f32 %v1472, %v1536
        %v1538 = vpop.f32.mrf.mxu0
        %v1539 = vpop.f32.mrf.mxu0
        %v1540 = vadd.f32 %v1475, %v1539
        %v1541 = vpop.f32.mrf.mxu0
        %1542 = vdwg.mxu0
        %v1543 = vpack.c.bf16 %v874, %v871
        %v1544 = vpack.c.bf16 %v882, %v879
        %v1545 = vpack.c.bf16 %v890, %v887
        %v1546 = vpack.c.bf16 %v898, %v895
        %v1547 = vpack.c.bf16 %v906, %v903
        %v1548 = vpack.c.bf16 %v914, %v911
        %v1549 = vpack.c.bf16 %v922, %v919
        %v1550 = vpack.c.bf16 %v930, %v927
        %v1551 = vpack.c.bf16 %v1235, %v1232
        %v1552 = vpack.c.bf16 %v1243, %v1240
        %v1553 = vpack.c.bf16 %v1251, %v1248
        %v1554 = vpack.c.bf16 %v1259, %v1256
        %v1555 = vpack.c.bf16 %v1516, %v1513
        %v1556 = vpack.c.bf16 %v1524, %v1521
        %v1557 = vpack.c.bf16 %v1532, %v1529
        %v1558 = vpack.c.bf16 %v1540, %v1537
        %vm1559 = vcmask 130048
        %v1561 = vsel %vm1559, %v1543, 0
        %v1564 = vsel %vm1559, %v1544, 0
        %v1567 = vsel %vm1559, %v1545, 0
        %v1570 = vsel %vm1559, %v1546, 0
        %v1573 = vsel %vm1559, %v1547, 0
        %v1576 = vsel %vm1559, %v1548, 0
        %v1579 = vsel %vm1559, %v1549, 0
        %v1582 = vsel %vm1559, %v1550, 0
        %v1585 = vsel %vm1559, %v1551, 0
        %v1588 = vsel %vm1559, %v1552, 0
        %v1591 = vsel %vm1559, %v1553, 0
        %v1594 = vsel %vm1559, %v1554, 0
        %1596 = vmatprep.subr.bf16.mxu0 0
        %1597 = vmatpush1.bf16.xpose.msra.mxu0 0
        %1598 = vmatprep.subr.bf16.mxu0 0
        %1599 = vmatpush1.bf16.xpose.msra.mxu0 0
        %1600 = vmatprep.subr.bf16.mxu0 0
        %1601 = vmatpush1.bf16.xpose.msra.mxu0 0
        %1602 = vmatprep.subr.bf16.mxu0 0
        %1603 = vmatpush1.bf16.xpose.msra.mxu0 0
        %1604 = vmatprep.subr.bf16.mxu0 0
        %1605 = vmatpush1.bf16.xpose.msra.mxu0 %v1594
        %1606 = vmatprep.subr.bf16.mxu0 0
        %1607 = vmatpush1.bf16.xpose.msra.mxu0 %v1591
        %1608 = vmatprep.subr.bf16.mxu0 0
        %1609 = vmatpush1.bf16.xpose.msra.mxu0 %v1588
        %1610 = vmatprep.subr.bf16.mxu0 0
        %1611 = vmatpush1.bf16.xpose.msra.mxu0 %v1585
        %1612 = vmatprep.subr.bf16.mxu0 0
        %1613 = vmatpush2.bf16.xpose.msra.mxu0 0
        %1614 = vmatprep.subr.bf16.mxu0 0
        %1615 = vmatpush2.bf16.xpose.msra.mxu0 0
        %1616 = vmatprep.subr.bf16.mxu0 0
        %1617 = vmatpush2.bf16.xpose.msra.mxu0 0
        %1618 = vmatprep.subr.bf16.mxu0 0
        %1619 = vmatpush2.bf16.xpose.msra.mxu0 0
        %1620 = vmatprep.subr.bf16.mxu0 0
        %1621 = vmatpush2.bf16.xpose.msra.mxu0 0
        %1622 = vmatprep.subr.bf16.mxu0 0
        %1623 = vmatpush2.bf16.xpose.msra.mxu0 0
        %1624 = vmatprep.subr.bf16.mxu0 0
        %1625 = vmatpush2.bf16.xpose.msra.mxu0 0
        %1626 = vmatprep.subr.bf16.mxu0 0
        %1627 = vmatpush2.bf16.xpose.msra.mxu0 0
        %1628 = vmatprep.mubr.bf16.mxu0 0
        %1629 = vmatmul.mubr.bf16.gmra.mxu0 %v1561
        %v1630 = vpop.f32.mrf.mxu0
        %v1631 = vadd.f32 0.0, %v1630
        %v1632 = vpop.f32.mrf.mxu0
        %v1633 = vpop.f32.mrf.mxu0
        %v1634 = vadd.f32 0.0, %v1633
        %v1635 = vpop.f32.mrf.mxu0
        %1636 = vmatprep.mubr.bf16.mxu0 0
        %1637 = vmatmul.mubr.bf16.gmra.mxu0 %v1564
        %v1638 = vpop.f32.mrf.mxu0
        %v1639 = vadd.f32 0.0, %v1638
        %v1640 = vpop.f32.mrf.mxu0
        %v1641 = vpop.f32.mrf.mxu0
        %v1642 = vadd.f32 0.0, %v1641
        %v1643 = vpop.f32.mrf.mxu0
        %1644 = vmatprep.mubr.bf16.mxu0 0
        %1645 = vmatmul.mubr.bf16.gmra.mxu0 %v1567
        %v1646 = vpop.f32.mrf.mxu0
        %v1647 = vadd.f32 0.0, %v1646
        %v1648 = vpop.f32.mrf.mxu0
        %v1649 = vpop.f32.mrf.mxu0
        %v1650 = vadd.f32 0.0, %v1649
        %v1651 = vpop.f32.mrf.mxu0
        %1652 = vmatprep.mubr.bf16.mxu0 0
        %1653 = vmatmul.mubr.bf16.gmra.mxu0 %v1570
        %v1654 = vpop.f32.mrf.mxu0
        %v1655 = vadd.f32 0.0, %v1654
        %v1656 = vpop.f32.mrf.mxu0
        %v1657 = vpop.f32.mrf.mxu0
        %v1658 = vadd.f32 0.0, %v1657
        %v1659 = vpop.f32.mrf.mxu0
        %1660 = vmatprep.mubr.bf16.mxu0 0
        %1661 = vmatmul.mubr.bf16.gmra.mxu0 %v1573
        %v1662 = vpop.f32.mrf.mxu0
        %v1663 = vadd.f32 0.0, %v1662
        %v1664 = vpop.f32.mrf.mxu0
        %v1665 = vpop.f32.mrf.mxu0
        %v1666 = vadd.f32 0.0, %v1665
        %v1667 = vpop.f32.mrf.mxu0
        %1668 = vmatprep.mubr.bf16.mxu0 0
        %1669 = vmatmul.mubr.bf16.gmra.mxu0 %v1576
        %v1670 = vpop.f32.mrf.mxu0
        %v1671 = vadd.f32 0.0, %v1670
        %v1672 = vpop.f32.mrf.mxu0
        %v1673 = vpop.f32.mrf.mxu0
        %v1674 = vadd.f32 0.0, %v1673
        %v1675 = vpop.f32.mrf.mxu0
        %1676 = vmatprep.mubr.bf16.mxu0 0
        %1677 = vmatmul.mubr.bf16.gmra.mxu0 %v1579
        %v1678 = vpop.f32.mrf.mxu0
        %v1679 = vadd.f32 0.0, %v1678
        %v1680 = vpop.f32.mrf.mxu0
        %v1681 = vpop.f32.mrf.mxu0
        %v1682 = vadd.f32 0.0, %v1681
        %v1683 = vpop.f32.mrf.mxu0
        %1684 = vmatprep.mubr.bf16.mxu0 0
        %1685 = vmatmul.mubr.bf16.gmra.mxu0 %v1582
        %v1686 = vpop.f32.mrf.mxu0
        %v1687 = vadd.f32 0.0, %v1686
        %v1688 = vpop.f32.mrf.mxu0
        %v1689 = vpop.f32.mrf.mxu0
        %v1690 = vadd.f32 0.0, %v1689
        %v1691 = vpop.f32.mrf.mxu0
        %1692 = vdwg.mxu0
        %v1693 = vmul.f32 %v1631, 0.25
        %v1694 = vmul.f32 %v1634, 0.25
        %v1695 = vmul.f32 %v1639, 0.25
        %v1696 = vmul.f32 %v1642, 0.25
        %v1697 = vmul.f32 %v1647, 0.25
        %v1698 = vmul.f32 %v1650, 0.25
        %v1699 = vmul.f32 %v1655, 0.25
        %v1700 = vmul.f32 %v1658, 0.25
        %v1701 = vmul.f32 %v1663, 0.25
        %v1702 = vmul.f32 %v1666, 0.25
        %v1703 = vmul.f32 %v1671, 0.25
        %v1704 = vmul.f32 %v1674, 0.25
        %v1705 = vmul.f32 %v1679, 0.25
        %v1706 = vmul.f32 %v1682, 0.25
        %v1707 = vmul.f32 %v1687, 0.25
        %v1708 = vmul.f32 %v1690, 0.25
        %v1709 = vld [vmem:[%s613] sm:$0xff]
        %v1710 = vld [vmem:[%s613 + $0x8] sm:$0xff]
        %v1711 = vld [vmem:[%s613 + $0x10] sm:$0xff]
        %v1712 = vld [vmem:[%s613 + $0x18] sm:$0xff]
        %v1713 = vld [vmem:[%s613 + $0x20] sm:$0xff]
        %v1714 = vld [vmem:[%s613 + $0x28] sm:$0xff]
        %v1715 = vld [vmem:[%s613 + $0x30] sm:$0xff]
        %v1716 = vld [vmem:[%s613 + $0x38] sm:$0xff]
        %v1717 = vld [vmem:[%s613 + $0x40] sm:$0xff]
        %v1718 = vld [vmem:[%s613 + $0x48] sm:$0xff]
        %v1719 = vld [vmem:[%s613 + $0x50] sm:$0xff]
        %v1720 = vld [vmem:[%s613 + $0x58] sm:$0xff]
        %v1721 = vld [vmem:[%s613 + $0x60] sm:$0xff]
        %v1722 = vld [vmem:[%s613 + $0x68] sm:$0xff]
        %v1723 = vld [vmem:[%s613 + $0x70] sm:$0xff]
        %v1724 = vld [vmem:[%s613 + $0x78] sm:$0xff]
        %v1725 = vadd.f32 %v1693, %v1709
        %v1726 = vadd.f32 %v1694, %v1710
        %v1727 = vadd.f32 %v1695, %v1711
        %v1728 = vadd.f32 %v1696, %v1712
        %v1729 = vadd.f32 %v1697, %v1713
        %v1730 = vadd.f32 %v1698, %v1714
        %v1731 = vadd.f32 %v1699, %v1715
        %v1732 = vadd.f32 %v1700, %v1716
        %v1733 = vadd.f32 %v1701, %v1717
        %v1734 = vadd.f32 %v1702, %v1718
        %v1735 = vadd.f32 %v1703, %v1719
        %v1736 = vadd.f32 %v1704, %v1720
        %v1737 = vadd.f32 %v1705, %v1721
        %v1738 = vadd.f32 %v1706, %v1722
        %v1739 = vadd.f32 %v1707, %v1723
        %v1740 = vadd.f32 %v1708, %v1724
        %vm1741 = vcmask 523264
        %v1742 = vsel %vm1741, %v1725, -inf
        %1743 = vmax.xlane.f32.xlu0 %v1742
        %v1744 = vpop.xlane.xlu0 %1743
        %v1745 = vsel %vm1741, %v1726, -inf
        %1746 = vmax.xlane.f32.xlu0 %v1745
        %v1747 = vpop.xlane.xlu0 %1746
        %v1748 = vsel %vm1741, %v1727, -inf
        %1749 = vmax.xlane.f32.xlu0 %v1748
        %v1750 = vpop.xlane.xlu0 %1749
        %v1751 = vsel %vm1741, %v1728, -inf
        %1752 = vmax.xlane.f32.xlu0 %v1751
        %v1753 = vpop.xlane.xlu0 %1752
        %v1754 = vsel %vm1741, %v1729, -inf
        %1755 = vmax.xlane.f32.xlu0 %v1754
        %v1756 = vpop.xlane.xlu0 %1755
        %v1757 = vsel %vm1741, %v1730, -inf
        %1758 = vmax.xlane.f32.xlu0 %v1757
        %v1759 = vpop.xlane.xlu0 %1758
        %v1760 = vsel %vm1741, %v1731, -inf
        %1761 = vmax.xlane.f32.xlu0 %v1760
        %v1762 = vpop.xlane.xlu0 %1761
        %v1763 = vsel %vm1741, %v1732, -inf
        %1764 = vmax.xlane.f32.xlu0 %v1763
        %v1765 = vpop.xlane.xlu0 %1764
        %v1766 = vsel %vm1741, %v1733, -inf
        %1767 = vmax.xlane.f32.xlu0 %v1766
        %v1768 = vpop.xlane.xlu0 %1767
        %v1769 = vsel %vm1741, %v1734, -inf
        %1770 = vmax.xlane.f32.xlu0 %v1769
        %v1771 = vpop.xlane.xlu0 %1770
        %v1772 = vsel %vm1741, %v1735, -inf
        %1773 = vmax.xlane.f32.xlu0 %v1772
        %v1774 = vpop.xlane.xlu0 %1773
        %v1775 = vsel %vm1741, %v1736, -inf
        %1776 = vmax.xlane.f32.xlu0 %v1775
        %v1777 = vpop.xlane.xlu0 %1776
        %v1778 = vsel %vm1741, %v1737, -inf
        %1779 = vmax.xlane.f32.xlu0 %v1778
        %v1780 = vpop.xlane.xlu0 %1779
        %v1781 = vsel %vm1741, %v1738, -inf
        %1782 = vmax.xlane.f32.xlu0 %v1781
        %v1783 = vpop.xlane.xlu0 %1782
        %v1784 = vsel %vm1741, %v1739, -inf
        %1785 = vmax.xlane.f32.xlu0 %v1784
        %v1786 = vpop.xlane.xlu0 %1785
        %v1787 = vsel %vm1741, %v1740, -inf
        %1788 = vmax.xlane.f32.xlu0 %v1787
        %v1789 = vpop.xlane.xlu0 %1788
        %v1790 = vsub.f32 %v1725, %v1744
        %v1791 = vsub.f32 %v1726, %v1747
        %v1792 = vsub.f32 %v1727, %v1750
        %v1793 = vsub.f32 %v1728, %v1753
        %v1794 = vsub.f32 %v1729, %v1756
        %v1795 = vsub.f32 %v1730, %v1759
        %v1796 = vsub.f32 %v1731, %v1762
        %v1797 = vsub.f32 %v1732, %v1765
        %v1798 = vsub.f32 %v1733, %v1768
        %v1799 = vsub.f32 %v1734, %v1771
        %v1800 = vsub.f32 %v1735, %v1774
        %v1801 = vsub.f32 %v1736, %v1777
        %v1802 = vsub.f32 %v1737, %v1780
        %v1803 = vsub.f32 %v1738, %v1783
        %v1804 = vsub.f32 %v1739, %v1786
        %v1805 = vsub.f32 %v1740, %v1789
        %v1806 = vmul.f32 %v1790, 1.442695
        %v1807 = vpow.pop %v1806
        %v1808 = vmul.f32 %v1791, 1.442695
        %v1809 = vpow.pop %v1808
        %v1810 = vmul.f32 %v1792, 1.442695
        %v1811 = vpow.pop %v1810
        %v1812 = vmul.f32 %v1793, 1.442695
        %v1813 = vpow.pop %v1812
        %v1814 = vmul.f32 %v1794, 1.442695
        %v1815 = vpow.pop %v1814
        %v1816 = vmul.f32 %v1795, 1.442695
        %v1817 = vpow.pop %v1816
        %v1818 = vmul.f32 %v1796, 1.442695
        %v1819 = vpow.pop %v1818
        %v1820 = vmul.f32 %v1797, 1.442695
        %v1821 = vpow.pop %v1820
        %v1822 = vmul.f32 %v1798, 1.442695
        %v1823 = vpow.pop %v1822
        %v1824 = vmul.f32 %v1799, 1.442695
        %v1825 = vpow.pop %v1824
        %v1826 = vmul.f32 %v1800, 1.442695
        %v1827 = vpow.pop %v1826
        %v1828 = vmul.f32 %v1801, 1.442695
        %v1829 = vpow.pop %v1828
        %v1830 = vmul.f32 %v1802, 1.442695
        %v1831 = vpow.pop %v1830
        %v1832 = vmul.f32 %v1803, 1.442695
        %v1833 = vpow.pop %v1832
        %v1834 = vmul.f32 %v1804, 1.442695
        %v1835 = vpow.pop %v1834
        %v1836 = vmul.f32 %v1805, 1.442695
        %v1837 = vpow.pop %v1836
        %v1838 = vsel %vm1741, %v1807, 0.0
        %1839 = vadd.xlane.f32.xlu0 %v1838
        %v1840 = vpop.xlane.xlu0 %1839
        %v1841 = vsel %vm1741, %v1809, 0.0
        %1842 = vadd.xlane.f32.xlu0 %v1841
        %v1843 = vpop.xlane.xlu0 %1842
        %v1844 = vsel %vm1741, %v1811, 0.0
        %1845 = vadd.xlane.f32.xlu0 %v1844
        %v1846 = vpop.xlane.xlu0 %1845
        %v1847 = vsel %vm1741, %v1813, 0.0
        %1848 = vadd.xlane.f32.xlu0 %v1847
        %v1849 = vpop.xlane.xlu0 %1848
        %v1850 = vsel %vm1741, %v1815, 0.0
        %1851 = vadd.xlane.f32.xlu0 %v1850
        %v1852 = vpop.xlane.xlu0 %1851
        %v1853 = vsel %vm1741, %v1817, 0.0
        %1854 = vadd.xlane.f32.xlu0 %v1853
        %v1855 = vpop.xlane.xlu0 %1854
        %v1856 = vsel %vm1741, %v1819, 0.0
        %1857 = vadd.xlane.f32.xlu0 %v1856
        %v1858 = vpop.xlane.xlu0 %1857
        %v1859 = vsel %vm1741, %v1821, 0.0
        %1860 = vadd.xlane.f32.xlu0 %v1859
        %v1861 = vpop.xlane.xlu0 %1860
        %v1862 = vsel %vm1741, %v1823, 0.0
        %1863 = vadd.xlane.f32.xlu0 %v1862
        %v1864 = vpop.xlane.xlu0 %1863
        %v1865 = vsel %vm1741, %v1825, 0.0
        %1866 = vadd.xlane.f32.xlu0 %v1865
        %v1867 = vpop.xlane.xlu0 %1866
        %v1868 = vsel %vm1741, %v1827, 0.0
        %1869 = vadd.xlane.f32.xlu0 %v1868
        %v1870 = vpop.xlane.xlu0 %1869
        %v1871 = vsel %vm1741, %v1829, 0.0
        %1872 = vadd.xlane.f32.xlu0 %v1871
        %v1873 = vpop.xlane.xlu0 %1872
        %v1874 = vsel %vm1741, %v1831, 0.0
        %1875 = vadd.xlane.f32.xlu0 %v1874
        %v1876 = vpop.xlane.xlu0 %1875
        %v1877 = vsel %vm1741, %v1833, 0.0
        %1878 = vadd.xlane.f32.xlu0 %v1877
        %v1879 = vpop.xlane.xlu0 %1878
        %v1880 = vsel %vm1741, %v1835, 0.0
        %1881 = vadd.xlane.f32.xlu0 %v1880
        %v1882 = vpop.xlane.xlu0 %1881
        %v1883 = vsel %vm1741, %v1837, 0.0
        %1884 = vadd.xlane.f32.xlu0 %v1883
        %v1885 = vpop.xlane.xlu0 %1884
        %v1886 = vrcp.pop %v1840
        %v1887 = vrcp.pop %v1843
        %v1888 = vrcp.pop %v1846
        %v1889 = vrcp.pop %v1849
        %v1890 = vrcp.pop %v1852
        %v1891 = vrcp.pop %v1855
        %v1892 = vrcp.pop %v1858
        %v1893 = vrcp.pop %v1861
        %v1894 = vrcp.pop %v1864
        %v1895 = vrcp.pop %v1867
        %v1896 = vrcp.pop %v1870
        %v1897 = vrcp.pop %v1873
        %v1898 = vrcp.pop %v1876
        %v1899 = vrcp.pop %v1879
        %v1900 = vrcp.pop %v1882
        %v1901 = vrcp.pop %v1885
        %v1902 = vmul.f32 %v1807, %v1886
        %v1903 = vmul.f32 %v1809, %v1887
        %v1904 = vmul.f32 %v1811, %v1888
        %v1905 = vmul.f32 %v1813, %v1889
        %v1906 = vmul.f32 %v1815, %v1890
        %v1907 = vmul.f32 %v1817, %v1891
        %v1908 = vmul.f32 %v1819, %v1892
        %v1909 = vmul.f32 %v1821, %v1893
        %v1910 = vmul.f32 %v1823, %v1894
        %v1911 = vmul.f32 %v1825, %v1895
        %v1912 = vmul.f32 %v1827, %v1896
        %v1913 = vmul.f32 %v1829, %v1897
        %v1914 = vmul.f32 %v1831, %v1898
        %v1915 = vmul.f32 %v1833, %v1899
        %v1916 = vmul.f32 %v1835, %v1900
        %v1917 = vmul.f32 %v1837, %v1901
        %v1918 = vpack.c.bf16 %v1903, %v1902
        %v1919 = vpack.c.bf16 %v1905, %v1904
        %v1920 = vpack.c.bf16 %v1907, %v1906
        %v1921 = vpack.c.bf16 %v1909, %v1908
        %v1922 = vpack.c.bf16 %v1911, %v1910
        %v1923 = vpack.c.bf16 %v1913, %v1912
        %v1924 = vpack.c.bf16 %v1915, %v1914
        %v1925 = vpack.c.bf16 %v1917, %v1916
        %v1927 = vsel %vm1741, %v1918, 0
        %v1930 = vsel %vm1741, %v1919, 0
        %v1933 = vsel %vm1741, %v1920, 0
        %v1936 = vsel %vm1741, %v1921, 0
        %v1939 = vsel %vm1741, %v1922, 0
        %v1942 = vsel %vm1741, %v1923, 0
        %v1945 = vsel %vm1741, %v1924, 0
        %v1948 = vsel %vm1741, %v1925, 0
        %1950 = vmatprep.subr.bf16.mxu0 0
        %1951 = vmatpush1.bf16.msra.mxu0 0
        %1952 = vmatprep.subr.bf16.mxu0 0
        %1953 = vmatpush1.bf16.msra.mxu0 0
        %1954 = vmatprep.subr.bf16.mxu0 0
        %1955 = vmatpush1.bf16.msra.mxu0 0
        %1956 = vmatprep.subr.bf16.mxu0 0
        %1957 = vmatpush1.bf16.msra.mxu0 0
        %1958 = vmatprep.subr.bf16.mxu0 0
        %1959 = vmatpush1.bf16.msra.mxu0 %v1558
        %1960 = vmatprep.subr.bf16.mxu0 0
        %1961 = vmatpush1.bf16.msra.mxu0 %v1557
        %1962 = vmatprep.subr.bf16.mxu0 0
        %1963 = vmatpush1.bf16.msra.mxu0 %v1556
        %1964 = vmatprep.subr.bf16.mxu0 0
        %1965 = vmatpush1.bf16.msra.mxu0 %v1555
        %1966 = vmatprep.subr.bf16.mxu0 0
        %1967 = vmatpush2.bf16.msra.mxu0 0
        %1968 = vmatprep.subr.bf16.mxu0 0
        %1969 = vmatpush2.bf16.msra.mxu0 0
        %1970 = vmatprep.subr.bf16.mxu0 0
        %1971 = vmatpush2.bf16.msra.mxu0 0
        %1972 = vmatprep.subr.bf16.mxu0 0
        %1973 = vmatpush2.bf16.msra.mxu0 0
        %1974 = vmatprep.subr.bf16.mxu0 0
        %1975 = vmatpush2.bf16.msra.mxu0 0
        %1976 = vmatprep.subr.bf16.mxu0 0
        %1977 = vmatpush2.bf16.msra.mxu0 0
        %1978 = vmatprep.subr.bf16.mxu0 0
        %1979 = vmatpush2.bf16.msra.mxu0 0
        %1980 = vmatprep.subr.bf16.mxu0 0
        %1981 = vmatpush2.bf16.msra.mxu0 0
        %1982 = vmatprep.mubr.bf16.mxu0 0
        %1983 = vmatmul.mubr.bf16.gmra.mxu0 %v1927
        %v1984 = vpop.f32.mrf.mxu0
        %v1985 = vadd.f32 0.0, %v1984
        %v1986 = vpop.f32.mrf.mxu0
        %v1987 = vpop.f32.mrf.mxu0
        %v1988 = vadd.f32 0.0, %v1987
        %v1989 = vpop.f32.mrf.mxu0
        %1990 = vmatprep.mubr.bf16.mxu0 0
        %1991 = vmatmul.mubr.bf16.gmra.mxu0 %v1930
        %v1992 = vpop.f32.mrf.mxu0
        %v1993 = vadd.f32 0.0, %v1992
        %v1994 = vpop.f32.mrf.mxu0
        %v1995 = vpop.f32.mrf.mxu0
        %v1996 = vadd.f32 0.0, %v1995
        %v1997 = vpop.f32.mrf.mxu0
        %1998 = vmatprep.mubr.bf16.mxu0 0
        %1999 = vmatmul.mubr.bf16.gmra.mxu0 %v1933
        %v2000 = vpop.f32.mrf.mxu0
        %v2001 = vadd.f32 0.0, %v2000
        %v2002 = vpop.f32.mrf.mxu0
        %v2003 = vpop.f32.mrf.mxu0
        %v2004 = vadd.f32 0.0, %v2003
        %v2005 = vpop.f32.mrf.mxu0
        %2006 = vmatprep.mubr.bf16.mxu0 0
        %2007 = vmatmul.mubr.bf16.gmra.mxu0 %v1936
        %v2008 = vpop.f32.mrf.mxu0
        %v2009 = vadd.f32 0.0, %v2008
        %v2010 = vpop.f32.mrf.mxu0
        %v2011 = vpop.f32.mrf.mxu0
        %v2012 = vadd.f32 0.0, %v2011
        %v2013 = vpop.f32.mrf.mxu0
        %2014 = vmatprep.mubr.bf16.mxu0 0
        %2015 = vmatmul.mubr.bf16.gmra.mxu0 %v1939
        %v2016 = vpop.f32.mrf.mxu0
        %v2017 = vadd.f32 0.0, %v2016
        %v2018 = vpop.f32.mrf.mxu0
        %v2019 = vpop.f32.mrf.mxu0
        %v2020 = vadd.f32 0.0, %v2019
        %v2021 = vpop.f32.mrf.mxu0
        %2022 = vmatprep.mubr.bf16.mxu0 0
        %2023 = vmatmul.mubr.bf16.gmra.mxu0 %v1942
        %v2024 = vpop.f32.mrf.mxu0
        %v2025 = vadd.f32 0.0, %v2024
        %v2026 = vpop.f32.mrf.mxu0
        %v2027 = vpop.f32.mrf.mxu0
        %v2028 = vadd.f32 0.0, %v2027
        %v2029 = vpop.f32.mrf.mxu0
        %2030 = vmatprep.mubr.bf16.mxu0 0
        %2031 = vmatmul.mubr.bf16.gmra.mxu0 %v1945
        %v2032 = vpop.f32.mrf.mxu0
        %v2033 = vadd.f32 0.0, %v2032
        %v2034 = vpop.f32.mrf.mxu0
        %v2035 = vpop.f32.mrf.mxu0
        %v2036 = vadd.f32 0.0, %v2035
        %v2037 = vpop.f32.mrf.mxu0
        %2038 = vmatprep.mubr.bf16.mxu0 0
        %2039 = vmatmul.mubr.bf16.gmra.mxu0 %v1948
        %v2040 = vpop.f32.mrf.mxu0
        %v2041 = vadd.f32 0.0, %v2040
        %v2042 = vpop.f32.mrf.mxu0
        %v2043 = vpop.f32.mrf.mxu0
        %v2044 = vadd.f32 0.0, %v2043
        %v2045 = vpop.f32.mrf.mxu0
        %2046 = vdwg.mxu0
        %2055 = vrot.lane.b32.xlu0 %v1543, 112
        %v2056 = vpop.permute.xlu0 %2055
        %2057 = vrot.lane.b32.xlu0 %v1544, 112
        %v2058 = vpop.permute.xlu0 %2057
        %2059 = vrot.lane.b32.xlu0 %v1545, 112
        %v2060 = vpop.permute.xlu0 %2059
        %2061 = vrot.lane.b32.xlu0 %v1546, 112
        %v2062 = vpop.permute.xlu0 %2061
        %2063 = vrot.lane.b32.xlu0 %v1547, 112
        %v2064 = vpop.permute.xlu0 %2063
        %2065 = vrot.lane.b32.xlu0 %v1548, 112
        %v2066 = vpop.permute.xlu0 %2065
        %2067 = vrot.lane.b32.xlu0 %v1549, 112
        %v2068 = vpop.permute.xlu0 %2067
        %2069 = vrot.lane.b32.xlu0 %v1550, 112
        %v2070 = vpop.permute.xlu0 %2069
        %2075 = vrot.lane.b32.xlu0 %v1551, 112
        %v2076 = vpop.permute.xlu0 %2075
        %2077 = vrot.lane.b32.xlu0 %v1552, 112
        %v2078 = vpop.permute.xlu0 %2077
        %2079 = vrot.lane.b32.xlu0 %v1553, 112
        %v2080 = vpop.permute.xlu0 %2079
        %2081 = vrot.lane.b32.xlu0 %v1554, 112
        %v2082 = vpop.permute.xlu0 %2081
        %v2084 = vsel %vm1559, %v2056, 0
        %v2087 = vsel %vm1559, %v2058, 0
        %v2090 = vsel %vm1559, %v2060, 0
        %v2093 = vsel %vm1559, %v2062, 0
        %v2096 = vsel %vm1559, %v2064, 0
        %v2099 = vsel %vm1559, %v2066, 0
        %v2102 = vsel %vm1559, %v2068, 0
        %v2105 = vsel %vm1559, %v2070, 0
        %v2108 = vsel %vm1559, %v2076, 0
        %v2111 = vsel %vm1559, %v2078, 0
        %v2114 = vsel %vm1559, %v2080, 0
        %v2117 = vsel %vm1559, %v2082, 0
        %2119 = vmatprep.subr.bf16.mxu0 0
        %2120 = vmatpush1.bf16.xpose.msra.mxu0 0
        %2121 = vmatprep.subr.bf16.mxu0 0
        %2122 = vmatpush1.bf16.xpose.msra.mxu0 0
        %2123 = vmatprep.subr.bf16.mxu0 0
        %2124 = vmatpush1.bf16.xpose.msra.mxu0 0
        %2125 = vmatprep.subr.bf16.mxu0 0
        %2126 = vmatpush1.bf16.xpose.msra.mxu0 0
        %2127 = vmatprep.subr.bf16.mxu0 0
        %2128 = vmatpush1.bf16.xpose.msra.mxu0 %v2117
        %2129 = vmatprep.subr.bf16.mxu0 0
        %2130 = vmatpush1.bf16.xpose.msra.mxu0 %v2114
        %2131 = vmatprep.subr.bf16.mxu0 0
        %2132 = vmatpush1.bf16.xpose.msra.mxu0 %v2111
        %2133 = vmatprep.subr.bf16.mxu0 0
        %2134 = vmatpush1.bf16.xpose.msra.mxu0 %v2108
        %2135 = vmatprep.subr.bf16.mxu0 0
        %2136 = vmatpush2.bf16.xpose.msra.mxu0 0
        %2137 = vmatprep.subr.bf16.mxu0 0
        %2138 = vmatpush2.bf16.xpose.msra.mxu0 0
        %2139 = vmatprep.subr.bf16.mxu0 0
        %2140 = vmatpush2.bf16.xpose.msra.mxu0 0
        %2141 = vmatprep.subr.bf16.mxu0 0
        %2142 = vmatpush2.bf16.xpose.msra.mxu0 0
        %2143 = vmatprep.subr.bf16.mxu0 0
        %2144 = vmatpush2.bf16.xpose.msra.mxu0 0
        %2145 = vmatprep.subr.bf16.mxu0 0
        %2146 = vmatpush2.bf16.xpose.msra.mxu0 0
        %2147 = vmatprep.subr.bf16.mxu0 0
        %2148 = vmatpush2.bf16.xpose.msra.mxu0 0
        %2149 = vmatprep.subr.bf16.mxu0 0
        %2150 = vmatpush2.bf16.xpose.msra.mxu0 0
        %2151 = vmatprep.mubr.bf16.mxu0 0
        %2152 = vmatmul.mubr.bf16.gmra.mxu0 %v2084
        %v2153 = vpop.f32.mrf.mxu0
        %v2154 = vadd.f32 0.0, %v2153
        %v2155 = vpop.f32.mrf.mxu0
        %v2156 = vpop.f32.mrf.mxu0
        %v2157 = vadd.f32 0.0, %v2156
        %v2158 = vpop.f32.mrf.mxu0
        %2159 = vmatprep.mubr.bf16.mxu0 0
        %2160 = vmatmul.mubr.bf16.gmra.mxu0 %v2087
        %v2161 = vpop.f32.mrf.mxu0
        %v2162 = vadd.f32 0.0, %v2161
        %v2163 = vpop.f32.mrf.mxu0
        %v2164 = vpop.f32.mrf.mxu0
        %v2165 = vadd.f32 0.0, %v2164
        %v2166 = vpop.f32.mrf.mxu0
        %2167 = vmatprep.mubr.bf16.mxu0 0
        %2168 = vmatmul.mubr.bf16.gmra.mxu0 %v2090
        %v2169 = vpop.f32.mrf.mxu0
        %v2170 = vadd.f32 0.0, %v2169
        %v2171 = vpop.f32.mrf.mxu0
        %v2172 = vpop.f32.mrf.mxu0
        %v2173 = vadd.f32 0.0, %v2172
        %v2174 = vpop.f32.mrf.mxu0
        %2175 = vmatprep.mubr.bf16.mxu0 0
        %2176 = vmatmul.mubr.bf16.gmra.mxu0 %v2093
        %v2177 = vpop.f32.mrf.mxu0
        %v2178 = vadd.f32 0.0, %v2177
        %v2179 = vpop.f32.mrf.mxu0
        %v2180 = vpop.f32.mrf.mxu0
        %v2181 = vadd.f32 0.0, %v2180
        %v2182 = vpop.f32.mrf.mxu0
        %2183 = vmatprep.mubr.bf16.mxu0 0
        %2184 = vmatmul.mubr.bf16.gmra.mxu0 %v2096
        %v2185 = vpop.f32.mrf.mxu0
        %v2186 = vadd.f32 0.0, %v2185
        %v2187 = vpop.f32.mrf.mxu0
        %v2188 = vpop.f32.mrf.mxu0
        %v2189 = vadd.f32 0.0, %v2188
        %v2190 = vpop.f32.mrf.mxu0
        %2191 = vmatprep.mubr.bf16.mxu0 0
        %2192 = vmatmul.mubr.bf16.gmra.mxu0 %v2099
        %v2193 = vpop.f32.mrf.mxu0
        %v2194 = vadd.f32 0.0, %v2193
        %v2195 = vpop.f32.mrf.mxu0
        %v2196 = vpop.f32.mrf.mxu0
        %v2197 = vadd.f32 0.0, %v2196
        %v2198 = vpop.f32.mrf.mxu0
        %2199 = vmatprep.mubr.bf16.mxu0 0
        %2200 = vmatmul.mubr.bf16.gmra.mxu0 %v2102
        %v2201 = vpop.f32.mrf.mxu0
        %v2202 = vadd.f32 0.0, %v2201
        %v2203 = vpop.f32.mrf.mxu0
        %v2204 = vpop.f32.mrf.mxu0
        %v2205 = vadd.f32 0.0, %v2204
        %v2206 = vpop.f32.mrf.mxu0
        %2207 = vmatprep.mubr.bf16.mxu0 0
        %2208 = vmatmul.mubr.bf16.gmra.mxu0 %v2105
        %v2209 = vpop.f32.mrf.mxu0
        %v2210 = vadd.f32 0.0, %v2209
        %v2211 = vpop.f32.mrf.mxu0
        %v2212 = vpop.f32.mrf.mxu0
        %v2213 = vadd.f32 0.0, %v2212
        %v2214 = vpop.f32.mrf.mxu0
        %2215 = vdwg.mxu0
        %v2216 = vmul.f32 %v2154, 0.25
        %v2217 = vmul.f32 %v2157, 0.25
        %v2218 = vmul.f32 %v2162, 0.25
        %v2219 = vmul.f32 %v2165, 0.25
        %v2220 = vmul.f32 %v2170, 0.25
        %v2221 = vmul.f32 %v2173, 0.25
        %v2222 = vmul.f32 %v2178, 0.25
        %v2223 = vmul.f32 %v2181, 0.25
        %v2224 = vmul.f32 %v2186, 0.25
        %v2225 = vmul.f32 %v2189, 0.25
        %v2226 = vmul.f32 %v2194, 0.25
        %v2227 = vmul.f32 %v2197, 0.25
        %v2228 = vmul.f32 %v2202, 0.25
        %v2229 = vmul.f32 %v2205, 0.25
        %v2230 = vmul.f32 %v2210, 0.25
        %v2231 = vmul.f32 %v2213, 0.25
        %s2232 = scalar_lea.vmem %s613, 128 [#allocation2]
        %v2233 = vld [vmem:[%s2232] sm:$0xff]
        %v2234 = vld [vmem:[%s2232 + $0x8] sm:$0xff]
        %v2235 = vld [vmem:[%s2232 + $0x10] sm:$0xff]
        %v2236 = vld [vmem:[%s2232 + $0x18] sm:$0xff]
        %v2237 = vld [vmem:[%s2232 + $0x20] sm:$0xff]
        %v2238 = vld [vmem:[%s2232 + $0x28] sm:$0xff]
        %v2239 = vld [vmem:[%s2232 + $0x30] sm:$0xff]
        %v2240 = vld [vmem:[%s2232 + $0x38] sm:$0xff]
        %v2241 = vld [vmem:[%s2232 + $0x40] sm:$0xff]
        %v2242 = vld [vmem:[%s2232 + $0x48] sm:$0xff]
        %v2243 = vld [vmem:[%s2232 + $0x50] sm:$0xff]
        %v2244 = vld [vmem:[%s2232 + $0x58] sm:$0xff]
        %v2245 = vld [vmem:[%s2232 + $0x60] sm:$0xff]
        %v2246 = vld [vmem:[%s2232 + $0x68] sm:$0xff]
        %v2247 = vld [vmem:[%s2232 + $0x70] sm:$0xff]
        %v2248 = vld [vmem:[%s2232 + $0x78] sm:$0xff]
        %v2249 = vadd.f32 %v2216, %v2233
        %v2250 = vadd.f32 %v2217, %v2234
        %v2251 = vadd.f32 %v2218, %v2235
        %v2252 = vadd.f32 %v2219, %v2236
        %v2253 = vadd.f32 %v2220, %v2237
        %v2254 = vadd.f32 %v2221, %v2238
        %v2255 = vadd.f32 %v2222, %v2239
        %v2256 = vadd.f32 %v2223, %v2240
        %v2257 = vadd.f32 %v2224, %v2241
        %v2258 = vadd.f32 %v2225, %v2242
        %v2259 = vadd.f32 %v2226, %v2243
        %v2260 = vadd.f32 %v2227, %v2244
        %v2261 = vadd.f32 %v2228, %v2245
        %v2262 = vadd.f32 %v2229, %v2246
        %v2263 = vadd.f32 %v2230, %v2247
        %v2264 = vadd.f32 %v2231, %v2248
        %v2265 = vsel %vm1741, %v2249, -inf
        %2266 = vmax.xlane.f32.xlu0 %v2265
        %v2267 = vpop.xlane.xlu0 %2266
        %v2268 = vsel %vm1741, %v2250, -inf
        %2269 = vmax.xlane.f32.xlu0 %v2268
        %v2270 = vpop.xlane.xlu0 %2269
        %v2271 = vsel %vm1741, %v2251, -inf
        %2272 = vmax.xlane.f32.xlu0 %v2271
        %v2273 = vpop.xlane.xlu0 %2272
        %v2274 = vsel %vm1741, %v2252, -inf
        %2275 = vmax.xlane.f32.xlu0 %v2274
        %v2276 = vpop.xlane.xlu0 %2275
        %v2277 = vsel %vm1741, %v2253, -inf
        %2278 = vmax.xlane.f32.xlu0 %v2277
        %v2279 = vpop.xlane.xlu0 %2278
        %v2280 = vsel %vm1741, %v2254, -inf
        %2281 = vmax.xlane.f32.xlu0 %v2280
        %v2282 = vpop.xlane.xlu0 %2281
        %v2283 = vsel %vm1741, %v2255, -inf
        %2284 = vmax.xlane.f32.xlu0 %v2283
        %v2285 = vpop.xlane.xlu0 %2284
        %v2286 = vsel %vm1741, %v2256, -inf
        %2287 = vmax.xlane.f32.xlu0 %v2286
        %v2288 = vpop.xlane.xlu0 %2287
        %v2289 = vsel %vm1741, %v2257, -inf
        %2290 = vmax.xlane.f32.xlu0 %v2289
        %v2291 = vpop.xlane.xlu0 %2290
        %v2292 = vsel %vm1741, %v2258, -inf
        %2293 = vmax.xlane.f32.xlu0 %v2292
        %v2294 = vpop.xlane.xlu0 %2293
        %v2295 = vsel %vm1741, %v2259, -inf
        %2296 = vmax.xlane.f32.xlu0 %v2295
        %v2297 = vpop.xlane.xlu0 %2296
        %v2298 = vsel %vm1741, %v2260, -inf
        %2299 = vmax.xlane.f32.xlu0 %v2298
        %v2300 = vpop.xlane.xlu0 %2299
        %v2301 = vsel %vm1741, %v2261, -inf
        %2302 = vmax.xlane.f32.xlu0 %v2301
        %v2303 = vpop.xlane.xlu0 %2302
        %v2304 = vsel %vm1741, %v2262, -inf
        %2305 = vmax.xlane.f32.xlu0 %v2304
        %v2306 = vpop.xlane.xlu0 %2305
        %v2307 = vsel %vm1741, %v2263, -inf
        %2308 = vmax.xlane.f32.xlu0 %v2307
        %v2309 = vpop.xlane.xlu0 %2308
        %v2310 = vsel %vm1741, %v2264, -inf
        %2311 = vmax.xlane.f32.xlu0 %v2310
        %v2312 = vpop.xlane.xlu0 %2311
        %v2313 = vsub.f32 %v2249, %v2267
        %v2314 = vsub.f32 %v2250, %v2270
        %v2315 = vsub.f32 %v2251, %v2273
        %v2316 = vsub.f32 %v2252, %v2276
        %v2317 = vsub.f32 %v2253, %v2279
        %v2318 = vsub.f32 %v2254, %v2282
        %v2319 = vsub.f32 %v2255, %v2285
        %v2320 = vsub.f32 %v2256, %v2288
        %v2321 = vsub.f32 %v2257, %v2291
        %v2322 = vsub.f32 %v2258, %v2294
        %v2323 = vsub.f32 %v2259, %v2297
        %v2324 = vsub.f32 %v2260, %v2300
        %v2325 = vsub.f32 %v2261, %v2303
        %v2326 = vsub.f32 %v2262, %v2306
        %v2327 = vsub.f32 %v2263, %v2309
        %v2328 = vsub.f32 %v2264, %v2312
        %v2329 = vmul.f32 %v2313, 1.442695
        %v2330 = vpow.pop %v2329
        %v2331 = vmul.f32 %v2314, 1.442695
        %v2332 = vpow.pop %v2331
        %v2333 = vmul.f32 %v2315, 1.442695
        %v2334 = vpow.pop %v2333
        %v2335 = vmul.f32 %v2316, 1.442695
        %v2336 = vpow.pop %v2335
        %v2337 = vmul.f32 %v2317, 1.442695
        %v2338 = vpow.pop %v2337
        %v2339 = vmul.f32 %v2318, 1.442695
        %v2340 = vpow.pop %v2339
        %v2341 = vmul.f32 %v2319, 1.442695
        %v2342 = vpow.pop %v2341
        %v2343 = vmul.f32 %v2320, 1.442695
        %v2344 = vpow.pop %v2343
        %v2345 = vmul.f32 %v2321, 1.442695
        %v2346 = vpow.pop %v2345
        %v2347 = vmul.f32 %v2322, 1.442695
        %v2348 = vpow.pop %v2347
        %v2349 = vmul.f32 %v2323, 1.442695
        %v2350 = vpow.pop %v2349
        %v2351 = vmul.f32 %v2324, 1.442695
        %v2352 = vpow.pop %v2351
        %v2353 = vmul.f32 %v2325, 1.442695
        %v2354 = vpow.pop %v2353
        %v2355 = vmul.f32 %v2326, 1.442695
        %v2356 = vpow.pop %v2355
        %v2357 = vmul.f32 %v2327, 1.442695
        %v2358 = vpow.pop %v2357
        %v2359 = vmul.f32 %v2328, 1.442695
        %v2360 = vpow.pop %v2359
        %v2361 = vsel %vm1741, %v2330, 0.0
        %2362 = vadd.xlane.f32.xlu0 %v2361
        %v2363 = vpop.xlane.xlu0 %2362
        %v2364 = vsel %vm1741, %v2332, 0.0
        %2365 = vadd.xlane.f32.xlu0 %v2364
        %v2366 = vpop.xlane.xlu0 %2365
        %v2367 = vsel %vm1741, %v2334, 0.0
        %2368 = vadd.xlane.f32.xlu0 %v2367
        %v2369 = vpop.xlane.xlu0 %2368
        %v2370 = vsel %vm1741, %v2336, 0.0
        %2371 = vadd.xlane.f32.xlu0 %v2370
        %v2372 = vpop.xlane.xlu0 %2371
        %v2373 = vsel %vm1741, %v2338, 0.0
        %2374 = vadd.xlane.f32.xlu0 %v2373
        %v2375 = vpop.xlane.xlu0 %2374
        %v2376 = vsel %vm1741, %v2340, 0.0
        %2377 = vadd.xlane.f32.xlu0 %v2376
        %v2378 = vpop.xlane.xlu0 %2377
        %v2379 = vsel %vm1741, %v2342, 0.0
        %2380 = vadd.xlane.f32.xlu0 %v2379
        %v2381 = vpop.xlane.xlu0 %2380
        %v2382 = vsel %vm1741, %v2344, 0.0
        %2383 = vadd.xlane.f32.xlu0 %v2382
        %v2384 = vpop.xlane.xlu0 %2383
        %v2385 = vsel %vm1741, %v2346, 0.0
        %2386 = vadd.xlane.f32.xlu0 %v2385
        %v2387 = vpop.xlane.xlu0 %2386
        %v2388 = vsel %vm1741, %v2348, 0.0
        %2389 = vadd.xlane.f32.xlu0 %v2388
        %v2390 = vpop.xlane.xlu0 %2389
        %v2391 = vsel %vm1741, %v2350, 0.0
        %2392 = vadd.xlane.f32.xlu0 %v2391
        %v2393 = vpop.xlane.xlu0 %2392
        %v2394 = vsel %vm1741, %v2352, 0.0
        %2395 = vadd.xlane.f32.xlu0 %v2394
        %v2396 = vpop.xlane.xlu0 %2395
        %v2397 = vsel %vm1741, %v2354, 0.0
        %2398 = vadd.xlane.f32.xlu0 %v2397
        %v2399 = vpop.xlane.xlu0 %2398
        %v2400 = vsel %vm1741, %v2356, 0.0
        %2401 = vadd.xlane.f32.xlu0 %v2400
        %v2402 = vpop.xlane.xlu0 %2401
        %v2403 = vsel %vm1741, %v2358, 0.0
        %2404 = vadd.xlane.f32.xlu0 %v2403
        %v2405 = vpop.xlane.xlu0 %2404
        %v2406 = vsel %vm1741, %v2360, 0.0
        %2407 = vadd.xlane.f32.xlu0 %v2406
        %v2408 = vpop.xlane.xlu0 %2407
        %v2409 = vrcp.pop %v2363
        %v2410 = vrcp.pop %v2366
        %v2411 = vrcp.pop %v2369
        %v2412 = vrcp.pop %v2372
        %v2413 = vrcp.pop %v2375
        %v2414 = vrcp.pop %v2378
        %v2415 = vrcp.pop %v2381
        %v2416 = vrcp.pop %v2384
        %v2417 = vrcp.pop %v2387
        %v2418 = vrcp.pop %v2390
        %v2419 = vrcp.pop %v2393
        %v2420 = vrcp.pop %v2396
        %v2421 = vrcp.pop %v2399
        %v2422 = vrcp.pop %v2402
        %v2423 = vrcp.pop %v2405
        %v2424 = vrcp.pop %v2408
        %v2425 = vmul.f32 %v2330, %v2409
        %v2426 = vmul.f32 %v2332, %v2410
        %v2427 = vmul.f32 %v2334, %v2411
        %v2428 = vmul.f32 %v2336, %v2412
        %v2429 = vmul.f32 %v2338, %v2413
        %v2430 = vmul.f32 %v2340, %v2414
        %v2431 = vmul.f32 %v2342, %v2415
        %v2432 = vmul.f32 %v2344, %v2416
        %v2433 = vmul.f32 %v2346, %v2417
        %v2434 = vmul.f32 %v2348, %v2418
        %v2435 = vmul.f32 %v2350, %v2419
        %v2436 = vmul.f32 %v2352, %v2420
        %v2437 = vmul.f32 %v2354, %v2421
        %v2438 = vmul.f32 %v2356, %v2422
        %v2439 = vmul.f32 %v2358, %v2423
        %v2440 = vmul.f32 %v2360, %v2424
        %v2441 = vpack.c.bf16 %v2426, %v2425
        %v2442 = vpack.c.bf16 %v2428, %v2427
        %v2443 = vpack.c.bf16 %v2430, %v2429
        %v2444 = vpack.c.bf16 %v2432, %v2431
        %v2445 = vpack.c.bf16 %v2434, %v2433
        %v2446 = vpack.c.bf16 %v2436, %v2435
        %v2447 = vpack.c.bf16 %v2438, %v2437
        %v2448 = vpack.c.bf16 %v2440, %v2439
        %2453 = vrot.lane.b32.xlu0 %v1555, 112
        %v2454 = vpop.permute.xlu0 %2453
        %2455 = vrot.lane.b32.xlu0 %v1556, 112
        %v2456 = vpop.permute.xlu0 %2455
        %2457 = vrot.lane.b32.xlu0 %v1557, 112
        %v2458 = vpop.permute.xlu0 %2457
        %2459 = vrot.lane.b32.xlu0 %v1558, 112
        %v2460 = vpop.permute.xlu0 %2459
        %v2466 = vsel %vm1741, %v2441, 0
        %v2469 = vsel %vm1741, %v2442, 0
        %v2472 = vsel %vm1741, %v2443, 0
        %v2475 = vsel %vm1741, %v2444, 0
        %v2478 = vsel %vm1741, %v2445, 0
        %v2481 = vsel %vm1741, %v2446, 0
        %v2484 = vsel %vm1741, %v2447, 0
        %v2487 = vsel %vm1741, %v2448, 0
        %2489 = vmatprep.subr.bf16.mxu0 0
        %2490 = vmatpush1.bf16.msra.mxu0 0
        %2491 = vmatprep.subr.bf16.mxu0 0
        %2492 = vmatpush1.bf16.msra.mxu0 0
        %2493 = vmatprep.subr.bf16.mxu0 0
        %2494 = vmatpush1.bf16.msra.mxu0 0
        %2495 = vmatprep.subr.bf16.mxu0 0
        %2496 = vmatpush1.bf16.msra.mxu0 0
        %2497 = vmatprep.subr.bf16.mxu0 0
        %2498 = vmatpush1.bf16.msra.mxu0 %v2460
        %2499 = vmatprep.subr.bf16.mxu0 0
        %2500 = vmatpush1.bf16.msra.mxu0 %v2458
        %2501 = vmatprep.subr.bf16.mxu0 0
        %2502 = vmatpush1.bf16.msra.mxu0 %v2456
        %2503 = vmatprep.subr.bf16.mxu0 0
        %2504 = vmatpush1.bf16.msra.mxu0 %v2454
        %2505 = vmatprep.subr.bf16.mxu0 0
        %2506 = vmatpush2.bf16.msra.mxu0 0
        %2507 = vmatprep.subr.bf16.mxu0 0
        %2508 = vmatpush2.bf16.msra.mxu0 0
        %2509 = vmatprep.subr.bf16.mxu0 0
        %2510 = vmatpush2.bf16.msra.mxu0 0
        %2511 = vmatprep.subr.bf16.mxu0 0
        %2512 = vmatpush2.bf16.msra.mxu0 0
        %2513 = vmatprep.subr.bf16.mxu0 0
        %2514 = vmatpush2.bf16.msra.mxu0 0
        %2515 = vmatprep.subr.bf16.mxu0 0
        %2516 = vmatpush2.bf16.msra.mxu0 0
        %2517 = vmatprep.subr.bf16.mxu0 0
        %2518 = vmatpush2.bf16.msra.mxu0 0
        %2519 = vmatprep.subr.bf16.mxu0 0
        %2520 = vmatpush2.bf16.msra.mxu0 0
        %2521 = vmatprep.mubr.bf16.mxu0 0
        %2522 = vmatmul.mubr.bf16.gmra.mxu0 %v2466
        %v2523 = vpop.f32.mrf.mxu0
        %v2524 = vadd.f32 0.0, %v2523
        %v2525 = vpop.f32.mrf.mxu0
        %v2526 = vpop.f32.mrf.mxu0
        %v2527 = vadd.f32 0.0, %v2526
        %v2528 = vpop.f32.mrf.mxu0
        %2529 = vmatprep.mubr.bf16.mxu0 0
        %2530 = vmatmul.mubr.bf16.gmra.mxu0 %v2469
        %v2531 = vpop.f32.mrf.mxu0
        %v2532 = vadd.f32 0.0, %v2531
        %v2533 = vpop.f32.mrf.mxu0
        %v2534 = vpop.f32.mrf.mxu0
        %v2535 = vadd.f32 0.0, %v2534
        %v2536 = vpop.f32.mrf.mxu0
        %2537 = vmatprep.mubr.bf16.mxu0 0
        %2538 = vmatmul.mubr.bf16.gmra.mxu0 %v2472
        %v2539 = vpop.f32.mrf.mxu0
        %v2540 = vadd.f32 0.0, %v2539
        %v2541 = vpop.f32.mrf.mxu0
        %v2542 = vpop.f32.mrf.mxu0
        %v2543 = vadd.f32 0.0, %v2542
        %v2544 = vpop.f32.mrf.mxu0
        %2545 = vmatprep.mubr.bf16.mxu0 0
        %2546 = vmatmul.mubr.bf16.gmra.mxu0 %v2475
        %v2547 = vpop.f32.mrf.mxu0
        %v2548 = vadd.f32 0.0, %v2547
        %v2549 = vpop.f32.mrf.mxu0
        %v2550 = vpop.f32.mrf.mxu0
        %v2551 = vadd.f32 0.0, %v2550
        %v2552 = vpop.f32.mrf.mxu0
        %2553 = vmatprep.mubr.bf16.mxu0 0
        %2554 = vmatmul.mubr.bf16.gmra.mxu0 %v2478
        %v2555 = vpop.f32.mrf.mxu0
        %v2556 = vadd.f32 0.0, %v2555
        %v2557 = vpop.f32.mrf.mxu0
        %v2558 = vpop.f32.mrf.mxu0
        %v2559 = vadd.f32 0.0, %v2558
        %v2560 = vpop.f32.mrf.mxu0
        %2561 = vmatprep.mubr.bf16.mxu0 0
        %2562 = vmatmul.mubr.bf16.gmra.mxu0 %v2481
        %v2563 = vpop.f32.mrf.mxu0
        %v2564 = vadd.f32 0.0, %v2563
        %v2565 = vpop.f32.mrf.mxu0
        %v2566 = vpop.f32.mrf.mxu0
        %v2567 = vadd.f32 0.0, %v2566
        %v2568 = vpop.f32.mrf.mxu0
        %2569 = vmatprep.mubr.bf16.mxu0 0
        %2570 = vmatmul.mubr.bf16.gmra.mxu0 %v2484
        %v2571 = vpop.f32.mrf.mxu0
        %v2572 = vadd.f32 0.0, %v2571
        %v2573 = vpop.f32.mrf.mxu0
        %v2574 = vpop.f32.mrf.mxu0
        %v2575 = vadd.f32 0.0, %v2574
        %v2576 = vpop.f32.mrf.mxu0
        %2577 = vmatprep.mubr.bf16.mxu0 0
        %2578 = vmatmul.mubr.bf16.gmra.mxu0 %v2487
        %v2579 = vpop.f32.mrf.mxu0
        %v2580 = vadd.f32 0.0, %v2579
        %v2581 = vpop.f32.mrf.mxu0
        %v2582 = vpop.f32.mrf.mxu0
        %v2583 = vadd.f32 0.0, %v2582
        %v2584 = vpop.f32.mrf.mxu0
        %2585 = vdwg.mxu0
        %2602 = vrot.lane.b32.xlu0 %v2524, 16
        %v2603 = vpop.permute.xlu0 %2602
        %2604 = vrot.lane.b32.xlu0 %v2527, 16
        %v2605 = vpop.permute.xlu0 %2604
        %2606 = vrot.lane.b32.xlu0 %v2532, 16
        %v2607 = vpop.permute.xlu0 %2606
        %2608 = vrot.lane.b32.xlu0 %v2535, 16
        %v2609 = vpop.permute.xlu0 %2608
        %2610 = vrot.lane.b32.xlu0 %v2540, 16
        %v2611 = vpop.permute.xlu0 %2610
        %2612 = vrot.lane.b32.xlu0 %v2543, 16
        %v2613 = vpop.permute.xlu0 %2612
        %2614 = vrot.lane.b32.xlu0 %v2548, 16
        %v2615 = vpop.permute.xlu0 %2614
        %2616 = vrot.lane.b32.xlu0 %v2551, 16
        %v2617 = vpop.permute.xlu0 %2616
        %2618 = vrot.lane.b32.xlu0 %v2556, 16
        %v2619 = vpop.permute.xlu0 %2618
        %2620 = vrot.lane.b32.xlu0 %v2559, 16
        %v2621 = vpop.permute.xlu0 %2620
        %2622 = vrot.lane.b32.xlu0 %v2564, 16
        %v2623 = vpop.permute.xlu0 %2622
        %2624 = vrot.lane.b32.xlu0 %v2567, 16
        %v2625 = vpop.permute.xlu0 %2624
        %2626 = vrot.lane.b32.xlu0 %v2572, 16
        %v2627 = vpop.permute.xlu0 %2626
        %2628 = vrot.lane.b32.xlu0 %v2575, 16
        %v2629 = vpop.permute.xlu0 %2628
        %2630 = vrot.lane.b32.xlu0 %v2580, 16
        %v2631 = vpop.permute.xlu0 %2630
        %2632 = vrot.lane.b32.xlu0 %v2583, 16
        %v2633 = vpop.permute.xlu0 %2632
        %v2650 = vsel %vm1559, %v1985, %v2603
        %v2651 = vsel %vm1559, %v1988, %v2605
        %v2652 = vsel %vm1559, %v1993, %v2607
        %v2653 = vsel %vm1559, %v1996, %v2609
        %v2654 = vsel %vm1559, %v2001, %v2611
        %v2655 = vsel %vm1559, %v2004, %v2613
        %v2656 = vsel %vm1559, %v2009, %v2615
        %v2657 = vsel %vm1559, %v2012, %v2617
        %v2658 = vsel %vm1559, %v2017, %v2619
        %v2659 = vsel %vm1559, %v2020, %v2621
        %v2660 = vsel %vm1559, %v2025, %v2623
        %v2661 = vsel %vm1559, %v2028, %v2625
        %v2662 = vsel %vm1559, %v2033, %v2627
        %v2663 = vsel %vm1559, %v2036, %v2629
        %v2664 = vsel %vm1559, %v2041, %v2631
        %v2665 = vsel %vm1559, %v2044, %v2633
        %v2666 = vpack.c.bf16 %v2651, %v2650
        %v2667 = vpack.c.bf16 %v2653, %v2652
        %v2668 = vpack.c.bf16 %v2655, %v2654
        %v2669 = vpack.c.bf16 %v2657, %v2656
        %v2670 = vpack.c.bf16 %v2659, %v2658
        %v2671 = vpack.c.bf16 %v2661, %v2660
        %v2672 = vpack.c.bf16 %v2663, %v2662
        %v2673 = vpack.c.bf16 %v2665, %v2664
        %v2674 = vld [vmem:[%s11] sm:$0xf]
        %v2675 = vld [vmem:[%s11 + $0x4] sm:$0xf]
        %v2676 = vld [vmem:[%s11 + $0x8] sm:$0xf]
        %v2677 = vld [vmem:[%s11 + $0xc] sm:$0xf]
        %v2678 = vld [vmem:[%s12] sm:$0x1]
        %v2680 = vlaneseq
        %v2681 = vshrl.u32 %v2680, 7
        %v2682 = vsub.s32 0, %v2681
        %v2683 = vrot.slane %v2678, %v2682
        %v2689 = vunpack.c.l.b16 %v2674
        %v2690 = vunpack.c.l.b16 %v2675
        %v2691 = vunpack.c.l.b16 %v2676
        %v2692 = vunpack.c.l.b16 %v2677
        %v2693 = vpack.c.b16 %v2690, %v2689
        %v2694 = vpack.c.b16 %v2692, %v2691
        %v2698 = vsel %vm811, %v2666, 0
        %v2701 = vsel %vm811, %v2667, 0
        %v2704 = vsel %vm811, %v2668, 0
        %v2707 = vsel %vm811, %v2669, 0
        %v2710 = vsel %vm811, %v2670, 0
        %v2713 = vsel %vm811, %v2671, 0
        %v2716 = vsel %vm811, %v2672, 0
        %v2719 = vsel %vm811, %v2673, 0
        %2721 = vmatprep.subr.bf16.mxu0 0
        %2722 = vmatpush1.bf16.msra.mxu0 0
        %2723 = vmatprep.subr.bf16.mxu0 0
        %2724 = vmatpush1.bf16.msra.mxu0 0
        %2725 = vmatprep.subr.bf16.mxu0 0
        %2726 = vmatpush1.bf16.msra.mxu0 0
        %2727 = vmatprep.subr.bf16.mxu0 0
        %2728 = vmatpush1.bf16.msra.mxu0 0
        %2729 = vmatprep.subr.bf16.mxu0 0
        %2730 = vmatpush1.bf16.msra.mxu0 0
        %2731 = vmatprep.subr.bf16.mxu0 0
        %2732 = vmatpush1.bf16.msra.mxu0 0
        %2733 = vmatprep.subr.bf16.mxu0 0
        %2734 = vmatpush1.bf16.msra.mxu0 %v2694
        %2735 = vmatprep.subr.bf16.mxu0 0
        %2736 = vmatpush1.bf16.msra.mxu0 %v2693
        %2737 = vmatprep.subr.bf16.mxu0 0
        %2738 = vmatpush2.bf16.msra.mxu0 0
        %2739 = vmatprep.subr.bf16.mxu0 0
        %2740 = vmatpush2.bf16.msra.mxu0 0
        %2741 = vmatprep.subr.bf16.mxu0 0
        %2742 = vmatpush2.bf16.msra.mxu0 0
        %2743 = vmatprep.subr.bf16.mxu0 0
        %2744 = vmatpush2.bf16.msra.mxu0 0
        %2745 = vmatprep.subr.bf16.mxu0 0
        %2746 = vmatpush2.bf16.msra.mxu0 0
        %2747 = vmatprep.subr.bf16.mxu0 0
        %2748 = vmatpush2.bf16.msra.mxu0 0
        %2749 = vmatprep.subr.bf16.mxu0 0
        %2750 = vmatpush2.bf16.msra.mxu0 0
        %2751 = vmatprep.subr.bf16.mxu0 0
        %2752 = vmatpush2.bf16.msra.mxu0 0
        %2753 = vmatprep.mubr.bf16.mxu0 0
        %2754 = vmatmul.mubr.bf16.gmra.mxu0 %v2698
        %v2755 = vpop.f32.mrf.mxu0
        %v2756 = vadd.f32 %v2683, %v2755
        %v2757 = vpop.f32.mrf.mxu0
        %v2758 = vpop.f32.mrf.mxu0
        %v2759 = vadd.f32 %v2683, %v2758
        %v2760 = vpop.f32.mrf.mxu0
        %2761 = vmatprep.mubr.bf16.mxu0 0
        %2762 = vmatmul.mubr.bf16.gmra.mxu0 %v2701
        %v2763 = vpop.f32.mrf.mxu0
        %v2764 = vadd.f32 %v2683, %v2763
        %v2765 = vpop.f32.mrf.mxu0
        %v2766 = vpop.f32.mrf.mxu0
        %v2767 = vadd.f32 %v2683, %v2766
        %v2768 = vpop.f32.mrf.mxu0
        %2769 = vmatprep.mubr.bf16.mxu0 0
        %2770 = vmatmul.mubr.bf16.gmra.mxu0 %v2704
        %v2771 = vpop.f32.mrf.mxu0
        %v2772 = vadd.f32 %v2683, %v2771
        %v2773 = vpop.f32.mrf.mxu0
        %v2774 = vpop.f32.mrf.mxu0
        %v2775 = vadd.f32 %v2683, %v2774
        %v2776 = vpop.f32.mrf.mxu0
        %2777 = vmatprep.mubr.bf16.mxu0 0
        %2778 = vmatmul.mubr.bf16.gmra.mxu0 %v2707
        %v2779 = vpop.f32.mrf.mxu0
        %v2780 = vadd.f32 %v2683, %v2779
        %v2781 = vpop.f32.mrf.mxu0
        %v2782 = vpop.f32.mrf.mxu0
        %v2783 = vadd.f32 %v2683, %v2782
        %v2784 = vpop.f32.mrf.mxu0
        %2785 = vmatprep.mubr.bf16.mxu0 0
        %2786 = vmatmul.mubr.bf16.gmra.mxu0 %v2710
        %v2787 = vpop.f32.mrf.mxu0
        %v2788 = vadd.f32 %v2683, %v2787
        %v2789 = vpop.f32.mrf.mxu0
        %v2790 = vpop.f32.mrf.mxu0
        %v2791 = vadd.f32 %v2683, %v2790
        %v2792 = vpop.f32.mrf.mxu0
        %2793 = vmatprep.mubr.bf16.mxu0 0
        %2794 = vmatmul.mubr.bf16.gmra.mxu0 %v2713
        %v2795 = vpop.f32.mrf.mxu0
        %v2796 = vadd.f32 %v2683, %v2795
        %v2797 = vpop.f32.mrf.mxu0
        %v2798 = vpop.f32.mrf.mxu0
        %v2799 = vadd.f32 %v2683, %v2798
        %v2800 = vpop.f32.mrf.mxu0
        %2801 = vmatprep.mubr.bf16.mxu0 0
        %2802 = vmatmul.mubr.bf16.gmra.mxu0 %v2716
        %v2803 = vpop.f32.mrf.mxu0
        %v2804 = vadd.f32 %v2683, %v2803
        %v2805 = vpop.f32.mrf.mxu0
        %v2806 = vpop.f32.mrf.mxu0
        %v2807 = vadd.f32 %v2683, %v2806
        %v2808 = vpop.f32.mrf.mxu0
        %2809 = vmatprep.mubr.bf16.mxu0 0
        %2810 = vmatmul.mubr.bf16.gmra.mxu0 %v2719
        %v2811 = vpop.f32.mrf.mxu0
        %v2812 = vadd.f32 %v2683, %v2811
        %v2813 = vpop.f32.mrf.mxu0
        %v2814 = vpop.f32.mrf.mxu0
        %v2815 = vadd.f32 %v2683, %v2814
        %v2816 = vpop.f32.mrf.mxu0
        %2817 = vdwg.mxu0
        %v2818 = vld [vmem:[%s699] sm:$0xff]
        %v2819 = vld [vmem:[%s699 + $0x8] sm:$0xff]
        %v2820 = vld [vmem:[%s699 + $0x10] sm:$0xff]
        %v2821 = vld [vmem:[%s699 + $0x18] sm:$0xff]
        %v2822 = vld [vmem:[%s699 + $0x20] sm:$0xff]
        %v2823 = vld [vmem:[%s699 + $0x28] sm:$0xff]
        %v2824 = vld [vmem:[%s699 + $0x30] sm:$0xff]
        %v2825 = vld [vmem:[%s699 + $0x38] sm:$0xff]
        %v2826 = vld [vmem:[%s699 + $0x40] sm:$0xff]
        %v2827 = vld [vmem:[%s699 + $0x48] sm:$0xff]
        %v2828 = vld [vmem:[%s699 + $0x50] sm:$0xff]
        %v2829 = vld [vmem:[%s699 + $0x58] sm:$0xff]
        %v2830 = vld [vmem:[%s699 + $0x60] sm:$0xff]
        %v2831 = vld [vmem:[%s699 + $0x68] sm:$0xff]
        %v2832 = vld [vmem:[%s699 + $0x70] sm:$0xff]
        %v2833 = vld [vmem:[%s699 + $0x78] sm:$0xff]
        %v2834 = vadd.f32 %v2756, %v2818
        %v2835 = vadd.f32 %v2759, %v2819
        %v2836 = vadd.f32 %v2764, %v2820
        %v2837 = vadd.f32 %v2767, %v2821
        %v2838 = vadd.f32 %v2772, %v2822
        %v2839 = vadd.f32 %v2775, %v2823
        %v2840 = vadd.f32 %v2780, %v2824
        %v2841 = vadd.f32 %v2783, %v2825
        %v2842 = vadd.f32 %v2788, %v2826
        %v2843 = vadd.f32 %v2791, %v2827
        %v2844 = vadd.f32 %v2796, %v2828
        %v2845 = vadd.f32 %v2799, %v2829
        %v2846 = vadd.f32 %v2804, %v2830
        %v2847 = vadd.f32 %v2807, %v2831
        %v2848 = vadd.f32 %v2812, %v2832
        %v2849 = vadd.f32 %v2815, %v2833
        %2850 = vst.msk [vmem:[%s715] sm:$0xff] %vm811, %v2834
        %2851 = vst.msk [vmem:[%s715 + $0x8] sm:$0xff] %vm811, %v2835
        %2852 = vst.msk [vmem:[%s715 + $0x10] sm:$0xff] %vm811, %v2836
        %2853 = vst.msk [vmem:[%s715 + $0x18] sm:$0xff] %vm811, %v2837
        %2854 = vst.msk [vmem:[%s715 + $0x20] sm:$0xff] %vm811, %v2838
        %2855 = vst.msk [vmem:[%s715 + $0x28] sm:$0xff] %vm811, %v2839
        %2856 = vst.msk [vmem:[%s715 + $0x30] sm:$0xff] %vm811, %v2840
        %2857 = vst.msk [vmem:[%s715 + $0x38] sm:$0xff] %vm811, %v2841
        %2858 = vst.msk [vmem:[%s715 + $0x40] sm:$0xff] %vm811, %v2842
        %2859 = vst.msk [vmem:[%s715 + $0x48] sm:$0xff] %vm811, %v2843
        %2860 = vst.msk [vmem:[%s715 + $0x50] sm:$0xff] %vm811, %v2844
        %2861 = vst.msk [vmem:[%s715 + $0x58] sm:$0xff] %vm811, %v2845
        %2862 = vst.msk [vmem:[%s715 + $0x60] sm:$0xff] %vm811, %v2846
        %2863 = vst.msk [vmem:[%s715 + $0x68] sm:$0xff] %vm811, %v2847
        %2864 = vst.msk [vmem:[%s715 + $0x70] sm:$0xff] %vm811, %v2848
        %2865 = vst.msk [vmem:[%s715 + $0x78] sm:$0xff] %vm811, %v2849
        %s2866 = smul.u32 16, %s29
        %p2867 = scmp.lt.s32.totalorder %s28, 1
        %s2868 = scalar_select %p2867, %s28, 1
        %p2869 = scmp.lt.s32.totalorder %s2866, 31
        %s2870 = scalar_select %p2869, %s2866, 31
        %s2871 = smul.addr %s2868, 32
        %s2872 = sadd.s32 %s2870, %s2871
        %s2873 = smul.addr %s2872, 8
        %s2874 = scalar_lea.vmem %s13, %s2873
        // Predicated region
        $region111: #{lmhsa_forward.3} parent=105 // pred_check
          %p2875 = pneg %p353
        $region112: #{lmhsa_forward.3} parent=105 // pred_check_branch
          %2877 = sbr.rel (%p2875) target = $region114
        $region113: #{lmhsa_forward.3} parent=105 // pred_region
          %s2878 = smul.u32 16, %s29
        $region114: #{lmhsa_forward.3} parent=105 // pred_fallthru
          _
      $region106: #{lmhsa_forward.3} parent=5 // pred_fallthru
        _
      %p2879 = scmp.le.s32.totalorder 2, %s19
      // Predicated region
      $region115: #{lmhsa_forward.3} parent=5 // pred_check
        %p2880 = pneg %p2879
      $region116: #{lmhsa_forward.3} parent=5 // pred_check_branch
        %2882 = sbr.rel (%p2880) target = $region118
      $region117: #{lmhsa_forward.3} parent=5 // pred_region
        %s2883 = ssub.s32 %s19, 2
        // Predicated region
        $region119: #{lmhsa_forward.3} parent=117 // pred_check
          %p2884 = pneg %p359
        $region120: #{lmhsa_forward.3} parent=117 // pred_check_branch
          %2886 = sbr.rel (%p2884) target = $region122
        $region121: #{lmhsa_forward.3} parent=117 // pred_region
          %s2887 = smul.u32 16, %s31
          %p2888 = scmp.lt.s32.totalorder %s30, 1
          %s2889 = scalar_select %p2888, %s30, 1
          %p2890 = scmp.lt.s32.totalorder %s2887, 31
          %s2891 = scalar_select %p2890, %s2887, 31
          %s2892 = smul.addr %s2889, 32
          %s2893 = sadd.s32 %s2891, %s2892
          %s2894 = smul.addr %s2893, 8
          %s2895 = scalar_lea.vmem %s13, %s2894
        $region122: #{lmhsa_forward.3} parent=117 // pred_fallthru
          _
      $region118: #{lmhsa_forward.3} parent=5 // pred_fallthru
        _
    $region6: #{lmhsa_forward.3} parent=1 // loop_footer
      %s23 = sadd.s32 1, %s19
    $region7: #{lmhsa_forward.3} parent=1 // loop_footer_branch
      %18 = sbr.rel target = $region3
    $region8: #{lmhsa_forward.3} parent=1 // loop_exit
      _

</llo_original>
